<compile_context>
chip_gen: v5e
topology: v5e:2x2
jax: 0.10.0
libtpu: 0.0.40
codegen_flags: <defaults>
</compile_context>

<pallas_src>
import functools

import jax
import jax.numpy as jnp
from jax.experimental import pallas as pl
from jax.experimental.pallas import tpu as pltpu


def _mish(t):
    # Mish(x) = x * tanh(softplus(x)); softplus thresholded like PyTorch (20).
    sp = jnp.where(t > 20.0, t, jnp.log(1.0 + jnp.exp(jnp.minimum(t, 20.0))))
    return t * jnp.tanh(sp)


def _sigmoid(t):
    return 1.0 / (1.0 + jnp.exp(-t))


def _residual_block_kernel(x_ref, bn_ref, w1_ref, w2_ref, cb_ref, wg_ref, bg_ref,
                           o_ref, pad_ref, col_ref, *, h, w, c, kh, kw, ph, pw,
                           inv_rescale, mm_dtype):
    """Fused ResidualBlock for one batch element.

    x_ref  : (1, C, H*W)        channel-major, lane-dense activation block
    bn_ref : (4, C)             rows = [scale1, shift1, scale2, shift2] (folded BN)
    w1_ref : (KH*KW*C, C)       conv1 weights, im2col layout
    w2_ref : (KH*KW*C, C)       conv2 weights, im2col layout
    cb_ref : (2, C)             conv biases
    wg_ref : (C, 2C)            gate 1x1 weights (cols [:C] tanh branch, [C:] sigmoid)
    bg_ref : (1, 2C)            gate bias (same split)
    o_ref  : (1, C, H*W)        output block (lane-dense store, last dim % 128 == 0)
    pad_ref: (H+2ph, W+2pw, C)  VMEM scratch implementing the conv zero padding
    col_ref: (H*W, KH*KW*C)     VMEM scratch holding the im2col patch matrix
    """
    hw = h * w

    x_flat = x_ref[0].astype(jnp.float32).T          # (H*W, C)
    bn = bn_ref[...].astype(jnp.float32)             # (4, C)

    # Zero halo once per grid step; interior is fully overwritten before each use.
    pad_ref[...] = jnp.zeros_like(pad_ref)

    def conv_im2col(act_flat, w_col_ref, bias):
        # act_flat: (H*W, C) f32. One MXU matmul with K = KH*KW*C.
        pad_ref[ph:ph + h, pw:pw + w, :] = act_flat.reshape(h, w, c)
        for i in range(kh):
            for j in range(kw):
                off = (i * kw + j) * c
                col_ref[:, off:off + c] = pad_ref[i:i + h, j:j + w, :].reshape(hw, c)
        out = jnp.dot(col_ref[...].astype(mm_dtype),
                      w_col_ref[...].astype(mm_dtype),
                      preferred_element_type=jnp.float32)
        return out + bias                             # (H*W, C) f32

    # BN1 -> Mish -> Conv1
    a1 = _mish(x_flat * bn[0] + bn[1])
    h1 = conv_im2col(a1, w1_ref, cb_ref[0])

    # BN2 -> Mish -> Conv2
    a2 = _mish(h1 * bn[2] + bn[3])
    h2 = conv_im2col(a2, w2_ref, cb_ref[1])

    # GateLayer: 1x1 conv to 2C channels, tanh(even ch) * sigmoid(odd ch)
    y = jnp.dot(h2.astype(mm_dtype), wg_ref[...].astype(mm_dtype),
                preferred_element_type=jnp.float32) + bg_ref[0]
    g = jnp.tanh(y[:, :c]) * _sigmoid(y[:, c:])       # (H*W, C)

    # Residual + rescale; store channel-major -> lane-dense (C, H*W) block.
    out = (g + x_flat) * inv_rescale
    o_ref[0] = out.T.astype(o_ref.dtype)


def residual_block_pallas(x, params, *, kernel_size=3, rescale=1.0, eps=1e-5,
                          matmul_dtype=jnp.float32):
    """ResidualBlock forward (NCHW in / NCHW out), eval-mode BatchNorm."""
    n, c, h, w = x.shape
    k = kernel_size
    assert k % 2 == 1
    p = k // 2
    hw = h * w
    f32 = jnp.float32

    # ---- parameter folding / repacking (plain-JAX glue, once per call) ----
    def fold_bn(gamma, beta, mean, var):
        s = gamma.astype(f32) / jnp.sqrt(var.astype(f32) + eps)
        return s, beta.astype(f32) - mean.astype(f32) * s

    s1, t1 = fold_bn(params["bn1_gamma"], params["bn1_beta"],
                     params["bn1_mean"], params["bn1_var"])
    s2, t2 = fold_bn(params["bn2_gamma"], params["bn2_beta"],
                     params["bn2_mean"], params["bn2_var"])
    bn = jnp.stack([s1, t1, s2, t2], axis=0)                       # (4, C)

    def im2col_w(wt):  # (Cout, Cin, KH, KW) -> (KH*KW*Cin, Cout)
        return jnp.transpose(wt.astype(f32), (2, 3, 1, 0)).reshape(k * k * c, c)

    w1 = im2col_w(params["conv1_w"]).astype(matmul_dtype)
    w2 = im2col_w(params["conv2_w"]).astype(matmul_dtype)
    cb = jnp.stack([params["conv1_b"].astype(f32),
                    params["conv2_b"].astype(f32)], axis=0)        # (2, C)

    wg_full = params["gate_w"].astype(f32).reshape(2 * c, c).T      # (C, 2C)
    wg = jnp.concatenate([wg_full[:, 0::2], wg_full[:, 1::2]],
                         axis=1).astype(matmul_dtype)               # tanh | sigmoid
    gb = params["gate_b"].astype(f32)
    bg = jnp.concatenate([gb[0::2], gb[1::2]]).reshape(1, 2 * c)

    # NCHW -> (N, C, H*W): pure reshape, no transpose / HBM round trip.
    x_cm = x.reshape(n, c, hw)

    kernel = functools.partial(
        _residual_block_kernel, h=h, w=w, c=c, kh=k, kw=k, ph=p, pw=p,
        inv_rescale=float(1.0 / rescale), mm_dtype=matmul_dtype)

    out = pl.pallas_call(
        kernel,
        out_shape=jax.ShapeDtypeStruct((n, c, hw), x.dtype),
        grid=(n,),
        in_specs=[
            pl.BlockSpec((1, c, hw), lambda i: (i, 0, 0)),
            pl.BlockSpec((4, c), lambda i: (0, 0)),
            pl.BlockSpec((k * k * c, c), lambda i: (0, 0)),
            pl.BlockSpec((k * k * c, c), lambda i: (0, 0)),
            pl.BlockSpec((2, c), lambda i: (0, 0)),
            pl.BlockSpec((c, 2 * c), lambda i: (0, 0)),
            pl.BlockSpec((1, 2 * c), lambda i: (0, 0)),
        ],
        out_specs=pl.BlockSpec((1, c, hw), lambda i: (i, 0, 0)),
        scratch_shapes=[
            pltpu.VMEM((h + 2 * p, w + 2 * p, c), jnp.float32),   # padded activation
            pltpu.VMEM((hw, k * k * c), jnp.float32),             # im2col patches
        ],
        compiler_params=pltpu.CompilerParams(dimension_semantics=("parallel",)),
    )(x_cm, bn, w1, w2, cb, wg, bg)

    return out.reshape(n, c, h, w)


def residual_block_reference(x, p, *, kernel_size=3, rescale=1.0, eps=1e-5):
    """Pure-JAX reference matching the PyTorch module (eval-mode BN)."""
    pad = kernel_size // 2

    def bn(t, gamma, beta, mean, var):
        s = gamma / jnp.sqrt(var + eps)
        return t * s[None, :, None, None] + (beta - mean * s)[None, :, None, None]

    def conv(t, wt, b, padding):
        out = jax.lax.conv_general_dilated(
            t, wt, window_strides=(1, 1),
            padding=[(padding, padding), (padding, padding)],
            dimension_numbers=("NCHW", "OIHW", "NCHW"))
        return out + b[None, :, None, None]

    h = conv(_mish(bn(x, p["bn1_gamma"], p["bn1_beta"], p["bn1_mean"], p["bn1_var"])),
             p["conv1_w"], p["conv1_b"], pad)
    h = conv(_mish(bn(h, p["bn2_gamma"], p["bn2_beta"], p["bn2_mean"], p["bn2_var"])),
             p["conv2_w"], p["conv2_b"], pad)
    y = conv(h, p["gate_w"], p["gate_b"], 0)
    h = jnp.tanh(y[:, 0::2]) * _sigmoid(y[:, 1::2])
    return (h + x) / rescale


if __name__ == "__main__":
    N, C, H, W = 2, 4, 16, 16
    K = 3

    key = jax.random.PRNGKey(0)
    ks = jax.random.split(key, 16)
    bnd = 1.0 / (C * K * K) ** 0.5
    bnd_g = 1.0 / C ** 0.5

    params = {
        "bn1_gamma": jax.random.uniform(ks[0], (C,), jnp.float32, 0.5, 1.5),
        "bn1_beta": 0.1 * jax.random.normal(ks[1], (C,), jnp.float32),
        "bn1_mean": 0.1 * jax.random.normal(ks[2], (C,), jnp.float32),
        "bn1_var": jax.random.uniform(ks[3], (C,), jnp.float32, 0.5, 1.5),
        "conv1_w": jax.random.uniform(ks[4], (C, C, K, K), jnp.float32, -bnd, bnd),
        "conv1_b": jax.random.uniform(ks[5], (C,), jnp.float32, -bnd, bnd),
        "bn2_gamma": jax.random.uniform(ks[6], (C,), jnp.float32, 0.5, 1.5),
        "bn2_beta": 0.1 * jax.random.normal(ks[7], (C,), jnp.float32),
        "bn2_mean": 0.1 * jax.random.normal(ks[8], (C,), jnp.float32),
        "bn2_var": jax.random.uniform(ks[9], (C,), jnp.float32, 0.5, 1.5),
        "conv2_w": jax.random.uniform(ks[10], (C, C, K, K), jnp.float32, -bnd, bnd),
        "conv2_b": jax.random.uniform(ks[11], (C,), jnp.float32, -bnd, bnd),
        "gate_w": jax.random.uniform(ks[12], (2 * C, C, 1, 1), jnp.float32, -bnd_g, bnd_g),
        "gate_b": jax.random.uniform(ks[13], (2 * C,), jnp.float32, -bnd_g, bnd_g),
    }
    x = jax.random.normal(ks[14], (N, C, H, W), jnp.float32)

    out = residual_block_pallas(x, params, kernel_size=K, rescale=1.0)
    out = jax.block_until_ready(out)

    ref = residual_block_reference(x, params, kernel_size=K, rescale=1.0)

    assert out.shape == (N, C, H, W)
    assert jnp.allclose(out, ref, atol=1e-3, rtol=1e-3), \
        float(jnp.max(jnp.abs(out - ref)))
    print("KERNEL_OK")
</pallas_src>

<mosaic_0001>
module attributes {stable_mosaic.version = 11 : i64} {
  func.func @_residual_block_kernel(%arg0: i32, %arg1: memref<1x4x256xf32, #tpu.memory_space<vmem>>, %arg2: memref<4x4xf32, #tpu.memory_space<vmem>>, %arg3: memref<36x4xf32, #tpu.memory_space<vmem>>, %arg4: memref<36x4xf32, #tpu.memory_space<vmem>>, %arg5: memref<2x4xf32, #tpu.memory_space<vmem>>, %arg6: memref<4x8xf32, #tpu.memory_space<vmem>>, %arg7: memref<1x8xf32, #tpu.memory_space<vmem>>, %arg8: memref<1x4x256xf32, #tpu.memory_space<vmem>>, %arg9: memref<18x18x4xf32, #tpu.memory_space<vmem>>, %arg10: memref<256x36xf32, #tpu.memory_space<vmem>>) attributes {dimension_semantics = [#tpu.dimension_semantics<parallel>], iteration_bounds = array<i64: 2>, scalar_prefetch = 0 : i64, scratch_operands = 2 : i64, tpu.core_type = #tpu.core_type<tc>, window_params = [{transform_indices = @transform_0, window_bounds = array<i64: 1, 4, 256>}, {pipeline_mode = #tpu.pipeline_mode<synchronous>, transform_indices = @transform_1, window_bounds = array<i64: 4, 4>}, {pipeline_mode = #tpu.pipeline_mode<synchronous>, transform_indices = @transform_2, window_bounds = array<i64: 36, 4>}, {pipeline_mode = #tpu.pipeline_mode<synchronous>, transform_indices = @transform_3, window_bounds = array<i64: 36, 4>}, {pipeline_mode = #tpu.pipeline_mode<synchronous>, transform_indices = @transform_4, window_bounds = array<i64: 2, 4>}, {pipeline_mode = #tpu.pipeline_mode<synchronous>, transform_indices = @transform_5, window_bounds = array<i64: 4, 8>}, {pipeline_mode = #tpu.pipeline_mode<synchronous>, transform_indices = @transform_6, window_bounds = array<i64: 1, 8>}, {transform_indices = @transform_7, window_bounds = array<i64: 1, 4, 256>}]} {
    %c0 = arith.constant 0 : index
    %c0_0 = arith.constant 0 : index
    %c0_1 = arith.constant 0 : index
    %0 = vector.load %arg1[%c0, %c0_0, %c0_1] : memref<1x4x256xf32, #tpu.memory_space<vmem>>, vector<1x4x256xf32>
    %1 = vector.shape_cast %0 : vector<1x4x256xf32> to vector<4x256xf32>
    %2 = tpu.transpose %1, [1, 0] : vector<4x256xf32> -> vector<256x4xf32>
    %c0_2 = arith.constant 0 : index
    %c0_3 = arith.constant 0 : index
    %3 = vector.load %arg2[%c0_2, %c0_3] : memref<4x4xf32, #tpu.memory_space<vmem>>, vector<4x4xf32>
    %cst = arith.constant 0.000000e+00 : f32
    %4 = vector.broadcast %cst : f32 to vector<18x18x4xf32>
    %c0_4 = arith.constant 0 : index
    %c0_5 = arith.constant 0 : index
    %c0_6 = arith.constant 0 : index
    %5 = vector.load %arg9[%c0_4, %c0_5, %c0_6] : memref<18x18x4xf32, #tpu.memory_space<vmem>>, vector<18x18x4xf32>
    tpu.vector_store %arg9[%c0_4, %c0_5, %c0_6], %4 {strides = array<i32>} : memref<18x18x4xf32, #tpu.memory_space<vmem>>, vector<18x18x4xf32>,
    %6 = vector.extract_strided_slice %3 {offsets = [0, 0], sizes = [1, 4], strides = [1, 1]} : vector<4x4xf32> to vector<1x4xf32>
    %7 = vector.shape_cast %6 : vector<1x4xf32> to vector<4xf32>
    %8 = vector.shape_cast %7 : vector<4xf32> to vector<1x4xf32>
    %9 = vector.broadcast %8 : vector<1x4xf32> to vector<256x4xf32>
    %10 = arith.mulf %2, %9 : vector<256x4xf32>
    %11 = vector.extract_strided_slice %3 {offsets = [1, 0], sizes = [1, 4], strides = [1, 1]} : vector<4x4xf32> to vector<1x4xf32>
    %12 = vector.shape_cast %11 : vector<1x4xf32> to vector<4xf32>
    %13 = vector.shape_cast %12 : vector<4xf32> to vector<1x4xf32>
    %14 = vector.broadcast %13 : vector<1x4xf32> to vector<256x4xf32>
    %15 = arith.addf %10, %14 : vector<256x4xf32>
    %cst_7 = arith.constant 2.000000e+01 : f32
    %16 = vector.broadcast %cst_7 : f32 to vector<256x4xf32>
    %17 = arith.cmpf ogt, %15, %16 : vector<256x4xf32>
    %cst_8 = arith.constant 2.000000e+01 : f32
    %18 = vector.broadcast %cst_8 : f32 to vector<256x4xf32>
    %19 = arith.minimumf %15, %18 : vector<256x4xf32>
    %20 = math.exp %19 : vector<256x4xf32>
    %cst_9 = arith.constant 1.000000e+00 : f32
    %21 = vector.broadcast %cst_9 : f32 to vector<256x4xf32>
    %22 = arith.addf %21, %20 : vector<256x4xf32>
    %23 = math.log %22 : vector<256x4xf32>
    %24 = arith.select %17, %15, %23 : vector<256x4xi1>, vector<256x4xf32>
    %25 = math.tanh %24 : vector<256x4xf32>
    %26 = arith.mulf %15, %25 : vector<256x4xf32>
    %c0_10 = arith.constant 0 : index
    %c0_11 = arith.constant 0 : index
    %27 = vector.load %arg5[%c0_10, %c0_11] : memref<2x4xf32, #tpu.memory_space<vmem>>, vector<1x4xf32>
    %28 = vector.shape_cast %27 : vector<1x4xf32> to vector<4xf32>
    %29 = vector.shape_cast %26 : vector<256x4xf32> to vector<16x16x4xf32>
    %c1 = arith.constant 1 : index
    %c1_12 = arith.constant 1 : index
    %c0_13 = arith.constant 0 : index
    %30 = vector.load %arg9[%c1, %c1_12, %c0_13] : memref<18x18x4xf32, #tpu.memory_space<vmem>>, vector<16x16x4xf32>
    tpu.vector_store %arg9[%c1, %c1_12, %c0_13], %29 {strides = array<i32>} : memref<18x18x4xf32, #tpu.memory_space<vmem>>, vector<16x16x4xf32>,
    %c0_14 = arith.constant 0 : index
    %c0_15 = arith.constant 0 : index
    %c0_16 = arith.constant 0 : index
    %31 = vector.load %arg9[%c0_14, %c0_15, %c0_16] : memref<18x18x4xf32, #tpu.memory_space<vmem>>, vector<16x16x4xf32>
    %32 = vector.shape_cast %31 : vector<16x16x4xf32> to vector<256x4xf32>
    %c0_17 = arith.constant 0 : index
    %c0_18 = arith.constant 0 : index
    %33 = vector.load %arg10[%c0_17, %c0_18] : memref<256x36xf32, #tpu.memory_space<vmem>>, vector<256x4xf32>
    tpu.vector_store %arg10[%c0_17, %c0_18], %32 {strides = array<i32>} : memref<256x36xf32, #tpu.memory_space<vmem>>, vector<256x4xf32>,
    %c0_19 = arith.constant 0 : index
    %c1_20 = arith.constant 1 : index
    %c0_21 = arith.constant 0 : index
    %34 = vector.load %arg9[%c0_19, %c1_20, %c0_21] : memref<18x18x4xf32, #tpu.memory_space<vmem>>, vector<16x16x4xf32>
    %35 = vector.shape_cast %34 : vector<16x16x4xf32> to vector<256x4xf32>
    %c0_22 = arith.constant 0 : index
    %c4 = arith.constant 4 : index
    %36 = vector.load %arg10[%c0_22, %c4] : memref<256x36xf32, #tpu.memory_space<vmem>>, vector<256x4xf32>
    tpu.vector_store %arg10[%c0_22, %c4], %35 {strides = array<i32>} : memref<256x36xf32, #tpu.memory_space<vmem>>, vector<256x4xf32>,
    %c0_23 = arith.constant 0 : index
    %c2 = arith.constant 2 : index
    %c0_24 = arith.constant 0 : index
    %37 = vector.load %arg9[%c0_23, %c2, %c0_24] : memref<18x18x4xf32, #tpu.memory_space<vmem>>, vector<16x16x4xf32>
    %38 = vector.shape_cast %37 : vector<16x16x4xf32> to vector<256x4xf32>
    %c0_25 = arith.constant 0 : index
    %c8 = arith.constant 8 : index
    %39 = vector.load %arg10[%c0_25, %c8] : memref<256x36xf32, #tpu.memory_space<vmem>>, vector<256x4xf32>
    tpu.vector_store %arg10[%c0_25, %c8], %38 {strides = array<i32>} : memref<256x36xf32, #tpu.memory_space<vmem>>, vector<256x4xf32>,
    %c1_26 = arith.constant 1 : index
    %c0_27 = arith.constant 0 : index
    %c0_28 = arith.constant 0 : index
    %40 = vector.load %arg9[%c1_26, %c0_27, %c0_28] : memref<18x18x4xf32, #tpu.memory_space<vmem>>, vector<16x16x4xf32>
    %41 = vector.shape_cast %40 : vector<16x16x4xf32> to vector<256x4xf32>
    %c0_29 = arith.constant 0 : index
    %c12 = arith.constant 12 : index
    %42 = vector.load %arg10[%c0_29, %c12] : memref<256x36xf32, #tpu.memory_space<vmem>>, vector<256x4xf32>
    tpu.vector_store %arg10[%c0_29, %c12], %41 {strides = array<i32>} : memref<256x36xf32, #tpu.memory_space<vmem>>, vector<256x4xf32>,
    %c1_30 = arith.constant 1 : index
    %c1_31 = arith.constant 1 : index
    %c0_32 = arith.constant 0 : index
    %43 = vector.load %arg9[%c1_30, %c1_31, %c0_32] : memref<18x18x4xf32, #tpu.memory_space<vmem>>, vector<16x16x4xf32>
    %44 = vector.shape_cast %43 : vector<16x16x4xf32> to vector<256x4xf32>
    %c0_33 = arith.constant 0 : index
    %c16 = arith.constant 16 : index
    %45 = vector.load %arg10[%c0_33, %c16] : memref<256x36xf32, #tpu.memory_space<vmem>>, vector<256x4xf32>
    tpu.vector_store %arg10[%c0_33, %c16], %44 {strides = array<i32>} : memref<256x36xf32, #tpu.memory_space<vmem>>, vector<256x4xf32>,
    %c1_34 = arith.constant 1 : index
    %c2_35 = arith.constant 2 : index
    %c0_36 = arith.constant 0 : index
    %46 = vector.load %arg9[%c1_34, %c2_35, %c0_36] : memref<18x18x4xf32, #tpu.memory_space<vmem>>, vector<16x16x4xf32>
    %47 = vector.shape_cast %46 : vector<16x16x4xf32> to vector<256x4xf32>
    %c0_37 = arith.constant 0 : index
    %c20 = arith.constant 20 : index
    %48 = vector.load %arg10[%c0_37, %c20] : memref<256x36xf32, #tpu.memory_space<vmem>>, vector<256x4xf32>
    tpu.vector_store %arg10[%c0_37, %c20], %47 {strides = array<i32>} : memref<256x36xf32, #tpu.memory_space<vmem>>, vector<256x4xf32>,
    %c2_38 = arith.constant 2 : index
    %c0_39 = arith.constant 0 : index
    %c0_40 = arith.constant 0 : index
    %49 = vector.load %arg9[%c2_38, %c0_39, %c0_40] : memref<18x18x4xf32, #tpu.memory_space<vmem>>, vector<16x16x4xf32>
    %50 = vector.shape_cast %49 : vector<16x16x4xf32> to vector<256x4xf32>
    %c0_41 = arith.constant 0 : index
    %c24 = arith.constant 24 : index
    %51 = vector.load %arg10[%c0_41, %c24] : memref<256x36xf32, #tpu.memory_space<vmem>>, vector<256x4xf32>
    tpu.vector_store %arg10[%c0_41, %c24], %50 {strides = array<i32>} : memref<256x36xf32, #tpu.memory_space<vmem>>, vector<256x4xf32>,
    %c2_42 = arith.constant 2 : index
    %c1_43 = arith.constant 1 : index
    %c0_44 = arith.constant 0 : index
    %52 = vector.load %arg9[%c2_42, %c1_43, %c0_44] : memref<18x18x4xf32, #tpu.memory_space<vmem>>, vector<16x16x4xf32>
    %53 = vector.shape_cast %52 : vector<16x16x4xf32> to vector<256x4xf32>
    %c0_45 = arith.constant 0 : index
    %c28 = arith.constant 28 : index
    %54 = vector.load %arg10[%c0_45, %c28] : memref<256x36xf32, #tpu.memory_space<vmem>>, vector<256x4xf32>
    tpu.vector_store %arg10[%c0_45, %c28], %53 {strides = array<i32>} : memref<256x36xf32, #tpu.memory_space<vmem>>, vector<256x4xf32>,
    %c2_46 = arith.constant 2 : index
    %c2_47 = arith.constant 2 : index
    %c0_48 = arith.constant 0 : index
    %55 = vector.load %arg9[%c2_46, %c2_47, %c0_48] : memref<18x18x4xf32, #tpu.memory_space<vmem>>, vector<16x16x4xf32>
    %56 = vector.shape_cast %55 : vector<16x16x4xf32> to vector<256x4xf32>
    %c0_49 = arith.constant 0 : index
    %c32 = arith.constant 32 : index
    %57 = vector.load %arg10[%c0_49, %c32] : memref<256x36xf32, #tpu.memory_space<vmem>>, vector<256x4xf32>
    tpu.vector_store %arg10[%c0_49, %c32], %56 {strides = array<i32>} : memref<256x36xf32, #tpu.memory_space<vmem>>, vector<256x4xf32>,
    %c0_50 = arith.constant 0 : index
    %c0_51 = arith.constant 0 : index
    %58 = vector.load %arg10[%c0_50, %c0_51] : memref<256x36xf32, #tpu.memory_space<vmem>>, vector<256x36xf32>
    %c0_52 = arith.constant 0 : index
    %c0_53 = arith.constant 0 : index
    %59 = vector.load %arg3[%c0_52, %c0_53] : memref<36x4xf32, #tpu.memory_space<vmem>>, vector<36x4xf32>
    %cst_54 = arith.constant dense<0.000000e+00> : vector<256x4xf32>
    %60 = tpu.matmul %58, %59, %cst_54 {dimension_numbers = #tpu.dot_dimension_numbers<[1], [0], [0], [1], [0, 0, 1, 1], [], []>} : vector<256x36xf32>, vector<36x4xf32>, vector<256x4xf32> -> vector<256x4xf32>
    %61 = vector.shape_cast %28 : vector<4xf32> to vector<1x4xf32>
    %62 = vector.broadcast %61 : vector<1x4xf32> to vector<256x4xf32>
    %63 = arith.addf %60, %62 : vector<256x4xf32>
    %64 = vector.extract_strided_slice %3 {offsets = [2, 0], sizes = [1, 4], strides = [1, 1]} : vector<4x4xf32> to vector<1x4xf32>
    %65 = vector.shape_cast %64 : vector<1x4xf32> to vector<4xf32>
    %66 = vector.shape_cast %65 : vector<4xf32> to vector<1x4xf32>
    %67 = vector.broadcast %66 : vector<1x4xf32> to vector<256x4xf32>
    %68 = arith.mulf %63, %67 : vector<256x4xf32>
    %69 = vector.extract_strided_slice %3 {offsets = [3, 0], sizes = [1, 4], strides = [1, 1]} : vector<4x4xf32> to vector<1x4xf32>
    %70 = vector.shape_cast %69 : vector<1x4xf32> to vector<4xf32>
    %71 = vector.shape_cast %70 : vector<4xf32> to vector<1x4xf32>
    %72 = vector.broadcast %71 : vector<1x4xf32> to vector<256x4xf32>
    %73 = arith.addf %68, %72 : vector<256x4xf32>
    %cst_55 = arith.constant 2.000000e+01 : f32
    %74 = vector.broadcast %cst_55 : f32 to vector<256x4xf32>
    %75 = arith.cmpf ogt, %73, %74 : vector<256x4xf32>
    %cst_56 = arith.constant 2.000000e+01 : f32
    %76 = vector.broadcast %cst_56 : f32 to vector<256x4xf32>
    %77 = arith.minimumf %73, %76 : vector<256x4xf32>
    %78 = math.exp %77 : vector<256x4xf32>
    %cst_57 = arith.constant 1.000000e+00 : f32
    %79 = vector.broadcast %cst_57 : f32 to vector<256x4xf32>
    %80 = arith.addf %79, %78 : vector<256x4xf32>
    %81 = math.log %80 : vector<256x4xf32>
    %82 = arith.select %75, %73, %81 : vector<256x4xi1>, vector<256x4xf32>
    %83 = math.tanh %82 : vector<256x4xf32>
    %84 = arith.mulf %73, %83 : vector<256x4xf32>
    %c1_58 = arith.constant 1 : index
    %c0_59 = arith.constant 0 : index
    %85 = vector.load %arg5[%c1_58, %c0_59] : memref<2x4xf32, #tpu.memory_space<vmem>>, vector<1x4xf32>
    %86 = vector.shape_cast %85 : vector<1x4xf32> to vector<4xf32>
    %87 = vector.shape_cast %84 : vector<256x4xf32> to vector<16x16x4xf32>
    %c1_60 = arith.constant 1 : index
    %c1_61 = arith.constant 1 : index
    %c0_62 = arith.constant 0 : index
    %88 = vector.load %arg9[%c1_60, %c1_61, %c0_62] : memref<18x18x4xf32, #tpu.memory_space<vmem>>, vector<16x16x4xf32>
    tpu.vector_store %arg9[%c1_60, %c1_61, %c0_62], %87 {strides = array<i32>} : memref<18x18x4xf32, #tpu.memory_space<vmem>>, vector<16x16x4xf32>,
    %c0_63 = arith.constant 0 : index
    %c0_64 = arith.constant 0 : index
    %c0_65 = arith.constant 0 : index
    %89 = vector.load %arg9[%c0_63, %c0_64, %c0_65] : memref<18x18x4xf32, #tpu.memory_space<vmem>>, vector<16x16x4xf32>
    %90 = vector.shape_cast %89 : vector<16x16x4xf32> to vector<256x4xf32>
    %c0_66 = arith.constant 0 : index
    %c0_67 = arith.constant 0 : index
    %91 = vector.load %arg10[%c0_66, %c0_67] : memref<256x36xf32, #tpu.memory_space<vmem>>, vector<256x4xf32>
    tpu.vector_store %arg10[%c0_66, %c0_67], %90 {strides = array<i32>} : memref<256x36xf32, #tpu.memory_space<vmem>>, vector<256x4xf32>,
    %c0_68 = arith.constant 0 : index
    %c1_69 = arith.constant 1 : index
    %c0_70 = arith.constant 0 : index
    %92 = vector.load %arg9[%c0_68, %c1_69, %c0_70] : memref<18x18x4xf32, #tpu.memory_space<vmem>>, vector<16x16x4xf32>
    %93 = vector.shape_cast %92 : vector<16x16x4xf32> to vector<256x4xf32>
    %c0_71 = arith.constant 0 : index
    %c4_72 = arith.constant 4 : index
    %94 = vector.load %arg10[%c0_71, %c4_72] : memref<256x36xf32, #tpu.memory_space<vmem>>, vector<256x4xf32>
    tpu.vector_store %arg10[%c0_71, %c4_72], %93 {strides = array<i32>} : memref<256x36xf32, #tpu.memory_space<vmem>>, vector<256x4xf32>,
    %c0_73 = arith.constant 0 : index
    %c2_74 = arith.constant 2 : index
    %c0_75 = arith.constant 0 : index
    %95 = vector.load %arg9[%c0_73, %c2_74, %c0_75] : memref<18x18x4xf32, #tpu.memory_space<vmem>>, vector<16x16x4xf32>
    %96 = vector.shape_cast %95 : vector<16x16x4xf32> to vector<256x4xf32>
    %c0_76 = arith.constant 0 : index
    %c8_77 = arith.constant 8 : index
    %97 = vector.load %arg10[%c0_76, %c8_77] : memref<256x36xf32, #tpu.memory_space<vmem>>, vector<256x4xf32>
    tpu.vector_store %arg10[%c0_76, %c8_77], %96 {strides = array<i32>} : memref<256x36xf32, #tpu.memory_space<vmem>>, vector<256x4xf32>,
    %c1_78 = arith.constant 1 : index
    %c0_79 = arith.constant 0 : index
    %c0_80 = arith.constant 0 : index
    %98 = vector.load %arg9[%c1_78, %c0_79, %c0_80] : memref<18x18x4xf32, #tpu.memory_space<vmem>>, vector<16x16x4xf32>
    %99 = vector.shape_cast %98 : vector<16x16x4xf32> to vector<256x4xf32>
    %c0_81 = arith.constant 0 : index
    %c12_82 = arith.constant 12 : index
    %100 = vector.load %arg10[%c0_81, %c12_82] : memref<256x36xf32, #tpu.memory_space<vmem>>, vector<256x4xf32>
    tpu.vector_store %arg10[%c0_81, %c12_82], %99 {strides = array<i32>} : memref<256x36xf32, #tpu.memory_space<vmem>>, vector<256x4xf32>,
    %c1_83 = arith.constant 1 : index
    %c1_84 = arith.constant 1 : index
    %c0_85 = arith.constant 0 : index
    %101 = vector.load %arg9[%c1_83, %c1_84, %c0_85] : memref<18x18x4xf32, #tpu.memory_space<vmem>>, vector<16x16x4xf32>
    %102 = vector.shape_cast %101 : vector<16x16x4xf32> to vector<256x4xf32>
    %c0_86 = arith.constant 0 : index
    %c16_87 = arith.constant 16 : index
    %103 = vector.load %arg10[%c0_86, %c16_87] : memref<256x36xf32, #tpu.memory_space<vmem>>, vector<256x4xf32>
    tpu.vector_store %arg10[%c0_86, %c16_87], %102 {strides = array<i32>} : memref<256x36xf32, #tpu.memory_space<vmem>>, vector<256x4xf32>,
    %c1_88 = arith.constant 1 : index
    %c2_89 = arith.constant 2 : index
    %c0_90 = arith.constant 0 : index
    %104 = vector.load %arg9[%c1_88, %c2_89, %c0_90] : memref<18x18x4xf32, #tpu.memory_space<vmem>>, vector<16x16x4xf32>
    %105 = vector.shape_cast %104 : vector<16x16x4xf32> to vector<256x4xf32>
    %c0_91 = arith.constant 0 : index
    %c20_92 = arith.constant 20 : index
    %106 = vector.load %arg10[%c0_91, %c20_92] : memref<256x36xf32, #tpu.memory_space<vmem>>, vector<256x4xf32>
    tpu.vector_store %arg10[%c0_91, %c20_92], %105 {strides = array<i32>} : memref<256x36xf32, #tpu.memory_space<vmem>>, vector<256x4xf32>,
    %c2_93 = arith.constant 2 : index
    %c0_94 = arith.constant 0 : index
    %c0_95 = arith.constant 0 : index
    %107 = vector.load %arg9[%c2_93, %c0_94, %c0_95] : memref<18x18x4xf32, #tpu.memory_space<vmem>>, vector<16x16x4xf32>
    %108 = vector.shape_cast %107 : vector<16x16x4xf32> to vector<256x4xf32>
    %c0_96 = arith.constant 0 : index
    %c24_97 = arith.constant 24 : index
    %109 = vector.load %arg10[%c0_96, %c24_97] : memref<256x36xf32, #tpu.memory_space<vmem>>, vector<256x4xf32>
    tpu.vector_store %arg10[%c0_96, %c24_97], %108 {strides = array<i32>} : memref<256x36xf32, #tpu.memory_space<vmem>>, vector<256x4xf32>,
    %c2_98 = arith.constant 2 : index
    %c1_99 = arith.constant 1 : index
    %c0_100 = arith.constant 0 : index
    %110 = vector.load %arg9[%c2_98, %c1_99, %c0_100] : memref<18x18x4xf32, #tpu.memory_space<vmem>>, vector<16x16x4xf32>
    %111 = vector.shape_cast %110 : vector<16x16x4xf32> to vector<256x4xf32>
    %c0_101 = arith.constant 0 : index
    %c28_102 = arith.constant 28 : index
    %112 = vector.load %arg10[%c0_101, %c28_102] : memref<256x36xf32, #tpu.memory_space<vmem>>, vector<256x4xf32>
    tpu.vector_store %arg10[%c0_101, %c28_102], %111 {strides = array<i32>} : memref<256x36xf32, #tpu.memory_space<vmem>>, vector<256x4xf32>,
    %c2_103 = arith.constant 2 : index
    %c2_104 = arith.constant 2 : index
    %c0_105 = arith.constant 0 : index
    %113 = vector.load %arg9[%c2_103, %c2_104, %c0_105] : memref<18x18x4xf32, #tpu.memory_space<vmem>>, vector<16x16x4xf32>
    %114 = vector.shape_cast %113 : vector<16x16x4xf32> to vector<256x4xf32>
    %c0_106 = arith.constant 0 : index
    %c32_107 = arith.constant 32 : index
    %115 = vector.load %arg10[%c0_106, %c32_107] : memref<256x36xf32, #tpu.memory_space<vmem>>, vector<256x4xf32>
    tpu.vector_store %arg10[%c0_106, %c32_107], %114 {strides = array<i32>} : memref<256x36xf32, #tpu.memory_space<vmem>>, vector<256x4xf32>,
    %c0_108 = arith.constant 0 : index
    %c0_109 = arith.constant 0 : index
    %116 = vector.load %arg10[%c0_108, %c0_109] : memref<256x36xf32, #tpu.memory_space<vmem>>, vector<256x36xf32>
    %c0_110 = arith.constant 0 : index
    %c0_111 = arith.constant 0 : index
    %117 = vector.load %arg4[%c0_110, %c0_111] : memref<36x4xf32, #tpu.memory_space<vmem>>, vector<36x4xf32>
    %cst_112 = arith.constant dense<0.000000e+00> : vector<256x4xf32>
    %118 = tpu.matmul %116, %117, %cst_112 {dimension_numbers = #tpu.dot_dimension_numbers<[1], [0], [0], [1], [0, 0, 1, 1], [], []>} : vector<256x36xf32>, vector<36x4xf32>, vector<256x4xf32> -> vector<256x4xf32>
    %119 = vector.shape_cast %86 : vector<4xf32> to vector<1x4xf32>
    %120 = vector.broadcast %119 : vector<1x4xf32> to vector<256x4xf32>
    %121 = arith.addf %118, %120 : vector<256x4xf32>
    %c0_113 = arith.constant 0 : index
    %c0_114 = arith.constant 0 : index
    %122 = vector.load %arg6[%c0_113, %c0_114] : memref<4x8xf32, #tpu.memory_space<vmem>>, vector<4x8xf32>
    %cst_115 = arith.constant dense<0.000000e+00> : vector<256x8xf32>
    %123 = tpu.matmul %121, %122, %cst_115 {dimension_numbers = #tpu.dot_dimension_numbers<[1], [0], [0], [1], [0, 0, 1, 1], [], []>} : vector<256x4xf32>, vector<4x8xf32>, vector<256x8xf32> -> vector<256x8xf32>
    %c0_116 = arith.constant 0 : index
    %c0_117 = arith.constant 0 : index
    %124 = vector.load %arg7[%c0_116, %c0_117] : memref<1x8xf32, #tpu.memory_space<vmem>>, vector<1x8xf32>
    %125 = vector.shape_cast %124 : vector<1x8xf32> to vector<8xf32>
    %126 = vector.shape_cast %125 : vector<8xf32> to vector<1x8xf32>
    %127 = vector.broadcast %126 : vector<1x8xf32> to vector<256x8xf32>
    %128 = arith.addf %123, %127 : vector<256x8xf32>
    %129 = vector.extract_strided_slice %128 {offsets = [0, 0], sizes = [256, 4], strides = [1, 1]} : vector<256x8xf32> to vector<256x4xf32>
    %130 = math.tanh %129 : vector<256x4xf32>
    %131 = vector.extract_strided_slice %128 {offsets = [0, 4], sizes = [256, 4], strides = [1, 1]} : vector<256x8xf32> to vector<256x4xf32>
    %cst_118 = arith.constant 0.000000e+00 : f32
    %132 = vector.broadcast %cst_118 : f32 to vector<256x4xf32>
    %133 = arith.subf %132, %131 : vector<256x4xf32>
    %134 = math.exp %133 : vector<256x4xf32>
    %cst_119 = arith.constant 1.000000e+00 : f32
    %135 = vector.broadcast %cst_119 : f32 to vector<256x4xf32>
    %136 = arith.addf %135, %134 : vector<256x4xf32>
    %cst_120 = arith.constant 1.000000e+00 : f32
    %137 = vector.broadcast %cst_120 : f32 to vector<256x4xf32>
    %138 = arith.divf %137, %136 : vector<256x4xf32>
    %139 = arith.mulf %130, %138 : vector<256x4xf32>
    %140 = arith.addf %139, %2 : vector<256x4xf32>
    %cst_121 = arith.constant 1.000000e+00 : f32
    %141 = vector.broadcast %cst_121 : f32 to vector<256x4xf32>
    %142 = arith.mulf %140, %141 : vector<256x4xf32>
    %143 = tpu.transpose %142, [1, 0] : vector<256x4xf32> -> vector<4x256xf32>
    %c0_122 = arith.constant 0 : index
    %c0_123 = arith.constant 0 : index
    %c0_124 = arith.constant 0 : index
    %144 = vector.load %arg8[%c0_122, %c0_123, %c0_124] : memref<1x4x256xf32, #tpu.memory_space<vmem>>, vector<1x4x256xf32>
    %145 = vector.shape_cast %144 : vector<1x4x256xf32> to vector<4x256xf32>
    %146 = vector.shape_cast %143 : vector<4x256xf32> to vector<1x4x256xf32>
    tpu.vector_store %arg8[%c0_122, %c0_123, %c0_124], %146 {strides = array<i32>} : memref<1x4x256xf32, #tpu.memory_space<vmem>>, vector<1x4x256xf32>,
    return
  }
  func.func @transform_0(%arg0: i32) -> (i32, i32, i32) {
    %c0_i32 = arith.constant 0 : i32
    %c0_i32_0 = arith.constant 0 : i32
    %c0_i32_1 = arith.constant 0 : i32
    return %arg0, %c0_i32, %c0_i32_0 : i32, i32, i32
  }
  func.func @transform_1(%arg0: i32) -> (i32, i32) {
    %c0_i32 = arith.constant 0 : i32
    %c0_i32_0 = arith.constant 0 : i32
    %c0_i32_1 = arith.constant 0 : i32
    return %c0_i32, %c0_i32_0 : i32, i32
  }
  func.func @transform_2(%arg0: i32) -> (i32, i32) {
    %c0_i32 = arith.constant 0 : i32
    %c0_i32_0 = arith.constant 0 : i32
    %c0_i32_1 = arith.constant 0 : i32
    return %c0_i32, %c0_i32_0 : i32, i32
  }
  func.func @transform_3(%arg0: i32) -> (i32, i32) {
    %c0_i32 = arith.constant 0 : i32
    %c0_i32_0 = arith.constant 0 : i32
    %c0_i32_1 = arith.constant 0 : i32
    return %c0_i32, %c0_i32_0 : i32, i32
  }
  func.func @transform_4(%arg0: i32) -> (i32, i32) {
    %c0_i32 = arith.constant 0 : i32
    %c0_i32_0 = arith.constant 0 : i32
    %c0_i32_1 = arith.constant 0 : i32
    return %c0_i32, %c0_i32_0 : i32, i32
  }
  func.func @transform_5(%arg0: i32) -> (i32, i32) {
    %c0_i32 = arith.constant 0 : i32
    %c0_i32_0 = arith.constant 0 : i32
    %c0_i32_1 = arith.constant 0 : i32
    return %c0_i32, %c0_i32_0 : i32, i32
  }
  func.func @transform_6(%arg0: i32) -> (i32, i32) {
    %c0_i32 = arith.constant 0 : i32
    %c0_i32_0 = arith.constant 0 : i32
    %c0_i32_1 = arith.constant 0 : i32
    return %c0_i32, %c0_i32_0 : i32, i32
  }
  func.func @transform_7(%arg0: i32) -> (i32, i32, i32) {
    %c0_i32 = arith.constant 0 : i32
    %c0_i32_0 = arith.constant 0 : i32
    %c0_i32_1 = arith.constant 0 : i32
    return %arg0, %c0_i32, %c0_i32_0 : i32, i32, i32
  }
}

</mosaic_0001>

<llo_original>
// kernel: tpu_custom_call.1
$region0: #{tpu_custom_call.1}
  #allocation0 [shape = 'u32[]', space=smem, size = 0x4, offset = 0x4, fixed_abs, tag = 'smem constant byte address 0x4 - core index']
  #allocation1 [shape = 'u32[72,128]{1,0:T(1,128)}', space=vmem, size = 0x9000, scoped, tag = 'internal scratch']
  #allocation2 [shape = 'f32[18,18,4]{2,1,0:T(8,128)}', space=vmem, size = 0x36000, scoped, tag = 'scratch operand']
  #allocation3 [shape = 'f32[256,36]{1,0:T(8,128)}', space=vmem, size = 0x20000, scoped, tag = 'scratch operand']
  %s0 = inlined_call_operand.vmem [shape: f32[2,4,256], index: 0, kind: input, shape index: {}]
  %s1 = inlined_call_operand.vmem [shape: f32[4,4], index: 1, kind: input, shape index: {}]
  %s2 = inlined_call_operand.vmem [shape: f32[36,4], index: 2, kind: input, shape index: {}]
  %s3 = inlined_call_operand.vmem [shape: f32[36,4], index: 3, kind: input, shape index: {}]
  %s4 = inlined_call_operand.vmem [shape: f32[2,4], index: 4, kind: input, shape index: {}]
  %s5 = inlined_call_operand.vmem [shape: f32[4,8], index: 5, kind: input, shape index: {}]
  %s6 = inlined_call_operand.vmem [shape: f32[1,8], index: 6, kind: input, shape index: {}]
  %s7 = inlined_call_operand.hbm [shape: f32[2,4,256], index: 7, kind: output, shape index: {}]
  %s8 = sld [smem:[#allocation0]]
  $region61: #{tpu_custom_call.1} parent=0
    _
  %s10 = ssub.s32 1, %s8
  %s11 = scalar_select 0, %s10, %s8
  $region1: #{tpu_custom_call.1} parent=0
    #allocation4 [shape = 'u8[8192]{0}', space=vmem, size = 0x2000, scoped, tag = 'output window, operand 0']
    #allocation5 [shape = 's32[2]{0}', space=sflag, size = 0x8, scoped, tag = 'scoped memory for tpu_custom_call.1']
    %12 = vsyncpa [#allocation5], 0
    %s13 = scalar_lea.sflag [#allocation5], 1
    %14 = vsyncpa %s13, 0
    loop: start=0, step=1, limit=4
    $region2: #{tpu_custom_call.1} parent=1 // loop_pre_header
      _
    $region3: #{tpu_custom_call.1} parent=1 // loop_header
      %s16 = sphi 0, %s20
      %p17 = scmp.ge.s32.totalorder %s16, 4
      %s26 = sphi 0, %s28
      %s29 = sphi 0, %s26
      %s30 = sphi 0, %s29
      %s46 = sphi 0, %s30
      %s50 = sphi 0, %s50
      %s52 = sphi 0, %s50
      %s53 = sphi 0, %s52
      %s67 = sphi 0, %s53
      %s71 = sphi 0, %s71
      %s73 = sphi 0, %s71
      %s74 = sphi 0, %s73
      %s88 = sphi 0, %s74
      %s92 = sphi 0, %s92
      %s94 = sphi 0, %s92
      %s95 = sphi 0, %s94
      %s109 = sphi 0, %s95
      %s113 = sphi 0, %s113
      %s115 = sphi 0, %s113
      %s116 = sphi 0, %s115
      %s130 = sphi 0, %s116
      %s134 = sphi 0, %s134
      %s136 = sphi 0, %s134
      %s137 = sphi 0, %s136
      %s151 = sphi 0, %s137
      %s155 = sphi 0, %s155
      %s157 = sphi 0, %s155
      %s158 = sphi 0, %s157
      %s172 = sphi 0, %s158
      %s178 = sphi 0, %s180
      %s181 = sphi 0, %s178
      %s182 = sphi 0, %s181
      %s198 = sphi 0, %s182
    $region4: #{tpu_custom_call.1} parent=1 // loop_header_branch
      %19 = sbr.rel (%p17) target = $region8
    $region5: #{tpu_custom_call.1} parent=1 // loop_body
      %s21 = ssub.s32 %s16, 1
      %s22 = ssub.s32 %s16, 2
      %s23 = sadd.s32 %s16, 1
      %s24 = ssub.s32 %s16, %s23
      %p25 = scmp.eq.s32.totalorder %s24, 0
      %s27 = sadd.s32 %s26, 1
      %s28 = scalar_select %p25, %s26, %s27
      %p31 = pneg %p25
      %p32 = scmp.eq.s32.totalorder %s16, 1
      %p33 = por %p31, %p32
      %p34 = scmp.ne.s32.totalorder %s26, %s29
      %p35 = scmp.eq.s32.totalorder %s16, 0
      %p36 = por %p34, %p35
      %p37 = scmp.ne.s32.totalorder %s26, %s29
      %p38 = scmp.eq.s32.totalorder %s21, 1
      %p39 = por %p37, %p38
      %p40 = scmp.ne.s32.totalorder %s29, %s30
      %p41 = scmp.eq.s32.totalorder %s21, 0
      %p42 = por %p40, %p41
      %p43 = scmp.ne.s32.totalorder %s29, %s30
      %p44 = scmp.eq.s32.totalorder %s22, 1
      %p45 = por %p43, %p44
      %p47 = scmp.ne.s32.totalorder %s30, %s46
      %p48 = scmp.eq.s32.totalorder %s22, 0
      %p49 = por %p47, %p48
      %s51 = sadd.s32 %s50, 1
      %p54 = scmp.eq.s32.totalorder %s16, 1
      %p55 = scmp.ne.s32.totalorder %s50, %s52
      %p56 = scmp.eq.s32.totalorder %s16, 0
      %p57 = por %p55, %p56
      %p58 = scmp.ne.s32.totalorder %s50, %s52
      %p59 = scmp.eq.s32.totalorder %s21, 1
      %p60 = por %p58, %p59
      %p61 = scmp.ne.s32.totalorder %s52, %s53
      %p62 = scmp.eq.s32.totalorder %s21, 0
      %p63 = por %p61, %p62
      %p64 = scmp.ne.s32.totalorder %s52, %s53
      %p65 = scmp.eq.s32.totalorder %s22, 1
      %p66 = por %p64, %p65
      %p68 = scmp.ne.s32.totalorder %s53, %s67
      %p69 = scmp.eq.s32.totalorder %s22, 0
      %p70 = por %p68, %p69
      %s72 = sadd.s32 %s71, 1
      %p75 = scmp.eq.s32.totalorder %s16, 1
      %p76 = scmp.ne.s32.totalorder %s71, %s73
      %p77 = scmp.eq.s32.totalorder %s16, 0
      %p78 = por %p76, %p77
      %p79 = scmp.ne.s32.totalorder %s71, %s73
      %p80 = scmp.eq.s32.totalorder %s21, 1
      %p81 = por %p79, %p80
      %p82 = scmp.ne.s32.totalorder %s73, %s74
      %p83 = scmp.eq.s32.totalorder %s21, 0
      %p84 = por %p82, %p83
      %p85 = scmp.ne.s32.totalorder %s73, %s74
      %p86 = scmp.eq.s32.totalorder %s22, 1
      %p87 = por %p85, %p86
      %p89 = scmp.ne.s32.totalorder %s74, %s88
      %p90 = scmp.eq.s32.totalorder %s22, 0
      %p91 = por %p89, %p90
      %s93 = sadd.s32 %s92, 1
      %p96 = scmp.eq.s32.totalorder %s16, 1
      %p97 = scmp.ne.s32.totalorder %s92, %s94
      %p98 = scmp.eq.s32.totalorder %s16, 0
      %p99 = por %p97, %p98
      %p100 = scmp.ne.s32.totalorder %s92, %s94
      %p101 = scmp.eq.s32.totalorder %s21, 1
      %p102 = por %p100, %p101
      %p103 = scmp.ne.s32.totalorder %s94, %s95
      %p104 = scmp.eq.s32.totalorder %s21, 0
      %p105 = por %p103, %p104
      %p106 = scmp.ne.s32.totalorder %s94, %s95
      %p107 = scmp.eq.s32.totalorder %s22, 1
      %p108 = por %p106, %p107
      %p110 = scmp.ne.s32.totalorder %s95, %s109
      %p111 = scmp.eq.s32.totalorder %s22, 0
      %p112 = por %p110, %p111
      %s114 = sadd.s32 %s113, 1
      %p117 = scmp.eq.s32.totalorder %s16, 1
      %p118 = scmp.ne.s32.totalorder %s113, %s115
      %p119 = scmp.eq.s32.totalorder %s16, 0
      %p120 = por %p118, %p119
      %p121 = scmp.ne.s32.totalorder %s113, %s115
      %p122 = scmp.eq.s32.totalorder %s21, 1
      %p123 = por %p121, %p122
      %p124 = scmp.ne.s32.totalorder %s115, %s116
      %p125 = scmp.eq.s32.totalorder %s21, 0
      %p126 = por %p124, %p125
      %p127 = scmp.ne.s32.totalorder %s115, %s116
      %p128 = scmp.eq.s32.totalorder %s22, 1
      %p129 = por %p127, %p128
      %p131 = scmp.ne.s32.totalorder %s116, %s130
      %p132 = scmp.eq.s32.totalorder %s22, 0
      %p133 = por %p131, %p132
      %s135 = sadd.s32 %s134, 1
      %p138 = scmp.eq.s32.totalorder %s16, 1
      %p139 = scmp.ne.s32.totalorder %s134, %s136
      %p140 = scmp.eq.s32.totalorder %s16, 0
      %p141 = por %p139, %p140
      %p142 = scmp.ne.s32.totalorder %s134, %s136
      %p143 = scmp.eq.s32.totalorder %s21, 1
      %p144 = por %p142, %p143
      %p145 = scmp.ne.s32.totalorder %s136, %s137
      %p146 = scmp.eq.s32.totalorder %s21, 0
      %p147 = por %p145, %p146
      %p148 = scmp.ne.s32.totalorder %s136, %s137
      %p149 = scmp.eq.s32.totalorder %s22, 1
      %p150 = por %p148, %p149
      %p152 = scmp.ne.s32.totalorder %s137, %s151
      %p153 = scmp.eq.s32.totalorder %s22, 0
      %p154 = por %p152, %p153
      %s156 = sadd.s32 %s155, 1
      %p159 = scmp.eq.s32.totalorder %s16, 1
      %p160 = scmp.ne.s32.totalorder %s155, %s157
      %p161 = scmp.eq.s32.totalorder %s16, 0
      %p162 = por %p160, %p161
      %p163 = scmp.ne.s32.totalorder %s155, %s157
      %p164 = scmp.eq.s32.totalorder %s21, 1
      %p165 = por %p163, %p164
      %p166 = scmp.ne.s32.totalorder %s157, %s158
      %p167 = scmp.eq.s32.totalorder %s21, 0
      %p168 = por %p166, %p167
      %p169 = scmp.ne.s32.totalorder %s157, %s158
      %p170 = scmp.eq.s32.totalorder %s22, 1
      %p171 = por %p169, %p170
      %p173 = scmp.ne.s32.totalorder %s158, %s172
      %p174 = scmp.eq.s32.totalorder %s22, 0
      %p175 = por %p173, %p174
      %s176 = ssub.s32 %s16, %s23
      %p177 = scmp.eq.s32.totalorder %s176, 0
      %s179 = sadd.s32 %s178, 1
      %s180 = scalar_select %p177, %s178, %s179
      %p183 = pneg %p177
      %p184 = scmp.eq.s32.totalorder %s16, 1
      %p185 = por %p183, %p184
      %p186 = scmp.ne.s32.totalorder %s178, %s181
      %p187 = scmp.eq.s32.totalorder %s16, 0
      %p188 = por %p186, %p187
      %p189 = scmp.ne.s32.totalorder %s178, %s181
      %p190 = scmp.eq.s32.totalorder %s21, 1
      %p191 = por %p189, %p190
      %p192 = scmp.ne.s32.totalorder %s181, %s182
      %p193 = scmp.eq.s32.totalorder %s21, 0
      %p194 = por %p192, %p193
      %p195 = scmp.ne.s32.totalorder %s181, %s182
      %p196 = scmp.eq.s32.totalorder %s22, 1
      %p197 = por %p195, %p196
      %p199 = scmp.ne.s32.totalorder %s182, %s198
      %p200 = scmp.eq.s32.totalorder %s22, 0
      %p201 = por %p199, %p200
      %p202 = scmp.le.s32.totalorder 1, %s16
      %p203 = scmp.lt.s32.totalorder %s16, 3
      %p204 = pnand %p202, %p203
      %p205 = pneg %p204
      // Predicated region
      $region9: #{tpu_custom_call.1} parent=5 // pred_check
        _
      $region10: #{tpu_custom_call.1} parent=5 // pred_check_branch
        %207 = sbr.rel (%p204) target = $region12
      $region11: #{tpu_custom_call.1} parent=5 // pred_region
        %s208 = ssub.s32 %s16, 1
        // Predicated region
        $region13: #{tpu_custom_call.1} parent=11 // pred_check
          %p209 = pneg %p63
        $region14: #{tpu_custom_call.1} parent=11 // pred_check_branch
          %211 = sbr.rel (%p209) target = $region16
        $region15: #{tpu_custom_call.1} parent=11 // pred_region
          _
        $region16: #{tpu_custom_call.1} parent=11 // pred_fallthru
          _
        // Predicated region
        $region17: #{tpu_custom_call.1} parent=11 // pred_check
          %p212 = pneg %p84
        $region18: #{tpu_custom_call.1} parent=11 // pred_check_branch
          %214 = sbr.rel (%p212) target = $region20
        $region19: #{tpu_custom_call.1} parent=11 // pred_region
          _
        $region20: #{tpu_custom_call.1} parent=11 // pred_fallthru
          _
        // Predicated region
        $region21: #{tpu_custom_call.1} parent=11 // pred_check
          %p215 = pneg %p105
        $region22: #{tpu_custom_call.1} parent=11 // pred_check_branch
          %217 = sbr.rel (%p215) target = $region24
        $region23: #{tpu_custom_call.1} parent=11 // pred_region
          _
        $region24: #{tpu_custom_call.1} parent=11 // pred_fallthru
          _
        // Predicated region
        $region25: #{tpu_custom_call.1} parent=11 // pred_check
          %p218 = pneg %p126
        $region26: #{tpu_custom_call.1} parent=11 // pred_check_branch
          %220 = sbr.rel (%p218) target = $region28
        $region27: #{tpu_custom_call.1} parent=11 // pred_region
          _
        $region28: #{tpu_custom_call.1} parent=11 // pred_fallthru
          _
        // Predicated region
        $region29: #{tpu_custom_call.1} parent=11 // pred_check
          %p221 = pneg %p147
        $region30: #{tpu_custom_call.1} parent=11 // pred_check_branch
          %223 = sbr.rel (%p221) target = $region32
        $region31: #{tpu_custom_call.1} parent=11 // pred_region
          _
        $region32: #{tpu_custom_call.1} parent=11 // pred_fallthru
          _
        // Predicated region
        $region33: #{tpu_custom_call.1} parent=11 // pred_check
          %p224 = pneg %p168
        $region34: #{tpu_custom_call.1} parent=11 // pred_check_branch
          %226 = sbr.rel (%p224) target = $region36
        $region35: #{tpu_custom_call.1} parent=11 // pred_region
          _
        $region36: #{tpu_custom_call.1} parent=11 // pred_fallthru
          _
      $region12: #{tpu_custom_call.1} parent=5 // pred_fallthru
        _
      %p227 = scmp.lt.s32.totalorder %s16, 2
      // Predicated region
      $region37: #{tpu_custom_call.1} parent=5 // pred_check
        %p228 = pneg %p227
      $region38: #{tpu_custom_call.1} parent=5 // pred_check_branch
        %230 = sbr.rel (%p228) target = $region40
      $region39: #{tpu_custom_call.1} parent=5 // pred_region
        // Predicated region
        $region41: #{tpu_custom_call.1} parent=39 // pred_check
          %p231 = pneg %p36
        $region42: #{tpu_custom_call.1} parent=39 // pred_check_branch
          %233 = sbr.rel (%p231) target = $region44
        $region43: #{tpu_custom_call.1} parent=39 // pred_region
          %p234 = scmp.lt.s32.totalorder %s16, 1
          %s235 = scalar_select %p234, %s16, 1
          %s236 = smul.addr %s235, 2
          %s237 = smul.addr %s236, 4
          %s238 = scalar_lea.vmem %s0, %s237
        $region44: #{tpu_custom_call.1} parent=39 // pred_fallthru
          _
      $region40: #{tpu_custom_call.1} parent=5 // pred_fallthru
        _
      %p239 = scmp.le.s32.totalorder 1, %s16
      %p240 = scmp.lt.s32.totalorder %s16, 3
      %p241 = pnand %p239, %p240
      %p242 = pneg %p241
      // Predicated region
      $region45: #{tpu_custom_call.1} parent=5 // pred_check
        _
      $region46: #{tpu_custom_call.1} parent=5 // pred_check_branch
        %244 = sbr.rel (%p241) target = $region48
      $region47: #{tpu_custom_call.1} parent=5 // pred_region
        %s245 = ssub.s32 %s16, 1
        %p246 = scmp.lt.s32.totalorder %s21, 1
        %s247 = scalar_select %p246, %s21, 1
        %s248 = smul.addr %s247, 2
        %s249 = smul.addr %s248, 4
        %s250 = scalar_lea.vmem %s0, %s249
        %p251 = pneg %p42
        %p252 = pneg %p39
        %p253 = pneg %p63
        %p254 = pneg %p60
        %p255 = pneg %p84
        %p256 = pneg %p81
        %p257 = pneg %p105
        %p258 = pneg %p102
        %p259 = pneg %p126
        %p260 = pneg %p123
        %p261 = pneg %p147
        %p262 = pneg %p144
        %p263 = pneg %p168
        %p264 = pneg %p165
        %p265 = pneg %p194
        %p266 = pneg %p191
        %s267 = sand.u32 %s181, 1
        %s268 = scalar_lea.sflag [#allocation5], %s267
        %s269 = sand.u32 %s181, 1
        %s270 = smul.addr %s269, 8
        %s271 = scalar_lea.vmem [#allocation4], %s270
        %p272 = scmp.lt.s32.totalorder %s21, 1
        %s273 = scalar_select %p272, %s21, 1
        %s274 = smul.addr %s273, 2
        %s275 = smul.addr %s274, 4
        %s276 = scalar_lea.vmem %s0, %s275
        %v277 = vld [vmem:[%s276] sm:$0xff]
        %279 = vst [vmem:[#allocation1] ss:$2 sm:$0xff] %v277
        %v280 = vld.sshfl [vmem:[#allocation1] sm:$0xff pattern:$0x75316420]
        %v281 = vld.sshfl [vmem:[#allocation1 + $0x8] sm:$0xff pattern:$0x75316420]
        %284 = vxpose.xlu0.b32.start [1/16] %v280, 128
        %285 = vxpose.xlu0.b32.cont [2/16] 0.0, 128
        %286 = vxpose.xlu0.b32.cont [3/16] 0.0, 128
        %287 = vxpose.xlu0.b32.cont [4/16] 0.0, 128
        %288 = vxpose.xlu0.b32.cont [5/16] 0.0, 128
        %289 = vxpose.xlu0.b32.cont [6/16] 0.0, 128
        %290 = vxpose.xlu0.b32.cont [7/16] 0.0, 128
        %291 = vxpose.xlu0.b32.cont [8/16] 0.0, 128
        %292 = vxpose.xlu0.b32.cont [9/16] 0.0, 128
        %293 = vxpose.xlu0.b32.cont [10/16] 0.0, 128
        %294 = vxpose.xlu0.b32.cont [11/16] 0.0, 128
        %295 = vxpose.xlu0.b32.cont [12/16] 0.0, 128
        %296 = vxpose.xlu0.b32.cont [13/16] 0.0, 128
        %297 = vxpose.xlu0.b32.cont [14/16] 0.0, 128
        %298 = vxpose.xlu0.b32.cont [15/16] 0.0, 128
        %299 = vxpose.xlu0.b32.end [16/16] 0.0, 128
        %v300 = vpop.trf.xlu0
        %v301 = vpop.trf.xlu0
        %v302 = vpop.trf.xlu0
        %v303 = vpop.trf.xlu0
        %v304 = vpop.trf.xlu0
        %v305 = vpop.trf.xlu0
        %v306 = vpop.trf.xlu0
        %v307 = vpop.trf.xlu0
        %v308 = vpop.trf.xlu0
        %v309 = vpop.trf.xlu0
        %v310 = vpop.trf.xlu0
        %v311 = vpop.trf.xlu0
        %v312 = vpop.trf.xlu0
        %v313 = vpop.trf.xlu0
        %v314 = vpop.trf.xlu0
        %v315 = vpop.trf.xlu0
        %316 = vxpose.xlu0.b32.start [1/16] %v281, 128
        %317 = vxpose.xlu0.b32.cont [2/16] 0.0, 128
        %318 = vxpose.xlu0.b32.cont [3/16] 0.0, 128
        %319 = vxpose.xlu0.b32.cont [4/16] 0.0, 128
        %320 = vxpose.xlu0.b32.cont [5/16] 0.0, 128
        %321 = vxpose.xlu0.b32.cont [6/16] 0.0, 128
        %322 = vxpose.xlu0.b32.cont [7/16] 0.0, 128
        %323 = vxpose.xlu0.b32.cont [8/16] 0.0, 128
        %324 = vxpose.xlu0.b32.cont [9/16] 0.0, 128
        %325 = vxpose.xlu0.b32.cont [10/16] 0.0, 128
        %326 = vxpose.xlu0.b32.cont [11/16] 0.0, 128
        %327 = vxpose.xlu0.b32.cont [12/16] 0.0, 128
        %328 = vxpose.xlu0.b32.cont [13/16] 0.0, 128
        %329 = vxpose.xlu0.b32.cont [14/16] 0.0, 128
        %330 = vxpose.xlu0.b32.cont [15/16] 0.0, 128
        %331 = vxpose.xlu0.b32.end [16/16] 0.0, 128
        %v332 = vpop.trf.xlu0
        %v333 = vpop.trf.xlu0
        %v334 = vpop.trf.xlu0
        %v335 = vpop.trf.xlu0
        %v336 = vpop.trf.xlu0
        %v337 = vpop.trf.xlu0
        %v338 = vpop.trf.xlu0
        %v339 = vpop.trf.xlu0
        %v340 = vpop.trf.xlu0
        %v341 = vpop.trf.xlu0
        %v342 = vpop.trf.xlu0
        %v343 = vpop.trf.xlu0
        %v344 = vpop.trf.xlu0
        %v345 = vpop.trf.xlu0
        %v346 = vpop.trf.xlu0
        %v347 = vpop.trf.xlu0
        %v348 = vld [vmem:[%s1] sm:$0xf]
        %vm349 = vcmask 31744
        %350 = vst.msk [vmem:[#allocation2] sm:$0xff] %vm349, 0.0
        %351 = vst.msk [vmem:[#allocation2 + $0x8] sm:$0xff] %vm349, 0.0
        %vm352 = vcmask 25600
        %353 = vst.msk [vmem:[#allocation2 + $0x10] sm:$0x3] %vm352, 0.0
        %354 = vst.msk [vmem:[#allocation2 + $0x18] sm:$0xff] %vm349, 0.0
        %355 = vst.msk [vmem:[#allocation2 + $0x20] sm:$0xff] %vm349, 0.0
        %356 = vst.msk [vmem:[#allocation2 + $0x28] sm:$0x3] %vm352, 0.0
        %357 = vst.msk [vmem:[#allocation2 + $0x30] sm:$0xff] %vm349, 0.0
        %358 = vst.msk [vmem:[#allocation2 + $0x38] sm:$0xff] %vm349, 0.0
        %359 = vst.msk [vmem:[#allocation2 + $0x40] sm:$0x3] %vm352, 0.0
        %360 = vst.msk [vmem:[#allocation2 + $0x48] sm:$0xff] %vm349, 0.0
        %361 = vst.msk [vmem:[#allocation2 + $0x50] sm:$0xff] %vm349, 0.0
        %362 = vst.msk [vmem:[#allocation2 + $0x58] sm:$0x3] %vm352, 0.0
        %363 = vst.msk [vmem:[#allocation2 + $0x60] sm:$0xff] %vm349, 0.0
        %364 = vst.msk [vmem:[#allocation2 + $0x68] sm:$0xff] %vm349, 0.0
        %365 = vst.msk [vmem:[#allocation2 + $0x70] sm:$0x3] %vm352, 0.0
        %366 = vst.msk [vmem:[#allocation2 + $0x78] sm:$0xff] %vm349, 0.0
        %367 = vst.msk [vmem:[#allocation2 + $0x80] sm:$0xff] %vm349, 0.0
        %368 = vst.msk [vmem:[#allocation2 + $0x88] sm:$0x3] %vm352, 0.0
        %369 = vst.msk [vmem:[#allocation2 + $0x90] sm:$0xff] %vm349, 0.0
        %370 = vst.msk [vmem:[#allocation2 + $0x98] sm:$0xff] %vm349, 0.0
        %371 = vst.msk [vmem:[#allocation2 + $0xa0] sm:$0x3] %vm352, 0.0
        %372 = vst.msk [vmem:[#allocation2 + $0xa8] sm:$0xff] %vm349, 0.0
        %373 = vst.msk [vmem:[#allocation2 + $0xb0] sm:$0xff] %vm349, 0.0
        %374 = vst.msk [vmem:[#allocation2 + $0xb8] sm:$0x3] %vm352, 0.0
        %375 = vst.msk [vmem:[#allocation2 + $0xc0] sm:$0xff] %vm349, 0.0
        %376 = vst.msk [vmem:[#allocation2 + $0xc8] sm:$0xff] %vm349, 0.0
        %377 = vst.msk [vmem:[#allocation2 + $0xd0] sm:$0x3] %vm352, 0.0
        %378 = vst.msk [vmem:[#allocation2 + $0xd8] sm:$0xff] %vm349, 0.0
        %379 = vst.msk [vmem:[#allocation2 + $0xe0] sm:$0xff] %vm349, 0.0
        %380 = vst.msk [vmem:[#allocation2 + $0xe8] sm:$0x3] %vm352, 0.0
        %381 = vst.msk [vmem:[#allocation2 + $0xf0] sm:$0xff] %vm349, 0.0
        %382 = vst.msk [vmem:[#allocation2 + $0xf8] sm:$0xff] %vm349, 0.0
        %383 = vst.msk [vmem:[#allocation2 + $0x100] sm:$0x3] %vm352, 0.0
        %384 = vst.msk [vmem:[#allocation2 + $0x108] sm:$0xff] %vm349, 0.0
        %385 = vst.msk [vmem:[#allocation2 + $0x110] sm:$0xff] %vm349, 0.0
        %386 = vst.msk [vmem:[#allocation2 + $0x118] sm:$0x3] %vm352, 0.0
        %387 = vst.msk [vmem:[#allocation2 + $0x120] sm:$0xff] %vm349, 0.0
        %388 = vst.msk [vmem:[#allocation2 + $0x128] sm:$0xff] %vm349, 0.0
        %389 = vst.msk [vmem:[#allocation2 + $0x130] sm:$0x3] %vm352, 0.0
        %390 = vst.msk [vmem:[#allocation2 + $0x138] sm:$0xff] %vm349, 0.0
        %391 = vst.msk [vmem:[#allocation2 + $0x140] sm:$0xff] %vm349, 0.0
        %392 = vst.msk [vmem:[#allocation2 + $0x148] sm:$0x3] %vm352, 0.0
        %393 = vst.msk [vmem:[#allocation2 + $0x150] sm:$0xff] %vm349, 0.0
        %394 = vst.msk [vmem:[#allocation2 + $0x158] sm:$0xff] %vm349, 0.0
        %395 = vst.msk [vmem:[#allocation2 + $0x160] sm:$0x3] %vm352, 0.0
        %396 = vst.msk [vmem:[#allocation2 + $0x168] sm:$0xff] %vm349, 0.0
        %397 = vst.msk [vmem:[#allocation2 + $0x170] sm:$0xff] %vm349, 0.0
        %398 = vst.msk [vmem:[#allocation2 + $0x178] sm:$0x3] %vm352, 0.0
        %399 = vst.msk [vmem:[#allocation2 + $0x180] sm:$0xff] %vm349, 0.0
        %400 = vst.msk [vmem:[#allocation2 + $0x188] sm:$0xff] %vm349, 0.0
        %401 = vst.msk [vmem:[#allocation2 + $0x190] sm:$0x3] %vm352, 0.0
        %402 = vst.msk [vmem:[#allocation2 + $0x198] sm:$0xff] %vm349, 0.0
        %403 = vst.msk [vmem:[#allocation2 + $0x1a0] sm:$0xff] %vm349, 0.0
        %404 = vst.msk [vmem:[#allocation2 + $0x1a8] sm:$0x3] %vm352, 0.0
        %v405 = vperm.slane %v348, 0
        %v406 = vmul.f32 %v300, %v405
        %v407 = vmul.f32 %v301, %v405
        %v408 = vmul.f32 %v302, %v405
        %v409 = vmul.f32 %v303, %v405
        %v410 = vmul.f32 %v304, %v405
        %v411 = vmul.f32 %v305, %v405
        %v412 = vmul.f32 %v306, %v405
        %v413 = vmul.f32 %v307, %v405
        %v414 = vmul.f32 %v308, %v405
        %v415 = vmul.f32 %v309, %v405
        %v416 = vmul.f32 %v310, %v405
        %v417 = vmul.f32 %v311, %v405
        %v418 = vmul.f32 %v312, %v405
        %v419 = vmul.f32 %v313, %v405
        %v420 = vmul.f32 %v314, %v405
        %v421 = vmul.f32 %v315, %v405
        %v422 = vmul.f32 %v332, %v405
        %v423 = vmul.f32 %v333, %v405
        %v424 = vmul.f32 %v334, %v405
        %v425 = vmul.f32 %v335, %v405
        %v426 = vmul.f32 %v336, %v405
        %v427 = vmul.f32 %v337, %v405
        %v428 = vmul.f32 %v338, %v405
        %v429 = vmul.f32 %v339, %v405
        %v430 = vmul.f32 %v340, %v405
        %v431 = vmul.f32 %v341, %v405
        %v432 = vmul.f32 %v342, %v405
        %v433 = vmul.f32 %v343, %v405
        %v434 = vmul.f32 %v344, %v405
        %v435 = vmul.f32 %v345, %v405
        %v436 = vmul.f32 %v346, %v405
        %v437 = vmul.f32 %v347, %v405
        %v438 = vperm.slane %v348, 1
        %v439 = vadd.f32 %v406, %v438
        %v440 = vadd.f32 %v407, %v438
        %v441 = vadd.f32 %v408, %v438
        %v442 = vadd.f32 %v409, %v438
        %v443 = vadd.f32 %v410, %v438
        %v444 = vadd.f32 %v411, %v438
        %v445 = vadd.f32 %v412, %v438
        %v446 = vadd.f32 %v413, %v438
        %v447 = vadd.f32 %v414, %v438
        %v448 = vadd.f32 %v415, %v438
        %v449 = vadd.f32 %v416, %v438
        %v450 = vadd.f32 %v417, %v438
        %v451 = vadd.f32 %v418, %v438
        %v452 = vadd.f32 %v419, %v438
        %v453 = vadd.f32 %v420, %v438
        %v454 = vadd.f32 %v421, %v438
        %v455 = vadd.f32 %v422, %v438
        %v456 = vadd.f32 %v423, %v438
        %v457 = vadd.f32 %v424, %v438
        %v458 = vadd.f32 %v425, %v438
        %v459 = vadd.f32 %v426, %v438
        %v460 = vadd.f32 %v427, %v438
        %v461 = vadd.f32 %v428, %v438
        %v462 = vadd.f32 %v429, %v438
        %v463 = vadd.f32 %v430, %v438
        %v464 = vadd.f32 %v431, %v438
        %v465 = vadd.f32 %v432, %v438
        %v466 = vadd.f32 %v433, %v438
        %v467 = vadd.f32 %v434, %v438
        %v468 = vadd.f32 %v435, %v438
        %v469 = vadd.f32 %v436, %v438
        %v470 = vadd.f32 %v437, %v438
        %vm471 = vcmp.gt.f32.partialorder %v439, 20.0
        %vm472 = vcmp.gt.f32.partialorder %v440, 20.0
        %vm473 = vcmp.gt.f32.partialorder %v441, 20.0
        %vm474 = vcmp.gt.f32.partialorder %v442, 20.0
        %vm475 = vcmp.gt.f32.partialorder %v443, 20.0
        %vm476 = vcmp.gt.f32.partialorder %v444, 20.0
        %vm477 = vcmp.gt.f32.partialorder %v445, 20.0
        %vm478 = vcmp.gt.f32.partialorder %v446, 20.0
        %vm479 = vcmp.gt.f32.partialorder %v447, 20.0
        %vm480 = vcmp.gt.f32.partialorder %v448, 20.0
        %vm481 = vcmp.gt.f32.partialorder %v449, 20.0
        %vm482 = vcmp.gt.f32.partialorder %v450, 20.0
        %vm483 = vcmp.gt.f32.partialorder %v451, 20.0
        %vm484 = vcmp.gt.f32.partialorder %v452, 20.0
        %vm485 = vcmp.gt.f32.partialorder %v453, 20.0
        %vm486 = vcmp.gt.f32.partialorder %v454, 20.0
        %vm487 = vcmp.gt.f32.partialorder %v455, 20.0
        %vm488 = vcmp.gt.f32.partialorder %v456, 20.0
        %vm489 = vcmp.gt.f32.partialorder %v457, 20.0
        %vm490 = vcmp.gt.f32.partialorder %v458, 20.0
        %vm491 = vcmp.gt.f32.partialorder %v459, 20.0
        %vm492 = vcmp.gt.f32.partialorder %v460, 20.0
        %vm493 = vcmp.gt.f32.partialorder %v461, 20.0
        %vm494 = vcmp.gt.f32.partialorder %v462, 20.0
        %vm495 = vcmp.gt.f32.partialorder %v463, 20.0
        %vm496 = vcmp.gt.f32.partialorder %v464, 20.0
        %vm497 = vcmp.gt.f32.partialorder %v465, 20.0
        %vm498 = vcmp.gt.f32.partialorder %v466, 20.0
        %vm499 = vcmp.gt.f32.partialorder %v467, 20.0
        %vm500 = vcmp.gt.f32.partialorder %v468, 20.0
        %vm501 = vcmp.gt.f32.partialorder %v469, 20.0
        %vm502 = vcmp.gt.f32.partialorder %v470, 20.0
        %v503 = vmin.f32 %v439, 20.0
        %v504 = vmin.f32 %v440, 20.0
        %v505 = vmin.f32 %v441, 20.0
        %v506 = vmin.f32 %v442, 20.0
        %v507 = vmin.f32 %v443, 20.0
        %v508 = vmin.f32 %v444, 20.0
        %v509 = vmin.f32 %v445, 20.0
        %v510 = vmin.f32 %v446, 20.0
        %v511 = vmin.f32 %v447, 20.0
        %v512 = vmin.f32 %v448, 20.0
        %v513 = vmin.f32 %v449, 20.0
        %v514 = vmin.f32 %v450, 20.0
        %v515 = vmin.f32 %v451, 20.0
        %v516 = vmin.f32 %v452, 20.0
        %v517 = vmin.f32 %v453, 20.0
        %v518 = vmin.f32 %v454, 20.0
        %v519 = vmin.f32 %v455, 20.0
        %v520 = vmin.f32 %v456, 20.0
        %v521 = vmin.f32 %v457, 20.0
        %v522 = vmin.f32 %v458, 20.0
        %v523 = vmin.f32 %v459, 20.0
        %v524 = vmin.f32 %v460, 20.0
        %v525 = vmin.f32 %v461, 20.0
        %v526 = vmin.f32 %v462, 20.0
        %v527 = vmin.f32 %v463, 20.0
        %v528 = vmin.f32 %v464, 20.0
        %v529 = vmin.f32 %v465, 20.0
        %v530 = vmin.f32 %v466, 20.0
        %v531 = vmin.f32 %v467, 20.0
        %v532 = vmin.f32 %v468, 20.0
        %v533 = vmin.f32 %v469, 20.0
        %v534 = vmin.f32 %v470, 20.0
        %v535 = vmul.f32 %v503, 1.442695
        %v536 = vpow.pop %v535
        %v537 = vmul.f32 %v504, 1.442695
        %v538 = vpow.pop %v537
        %v539 = vmul.f32 %v505, 1.442695
        %v540 = vpow.pop %v539
        %v541 = vmul.f32 %v506, 1.442695
        %v542 = vpow.pop %v541
        %v543 = vmul.f32 %v507, 1.442695
        %v544 = vpow.pop %v543
        %v545 = vmul.f32 %v508, 1.442695
        %v546 = vpow.pop %v545
        %v547 = vmul.f32 %v509, 1.442695
        %v548 = vpow.pop %v547
        %v549 = vmul.f32 %v510, 1.442695
        %v550 = vpow.pop %v549
        %v551 = vmul.f32 %v511, 1.442695
        %v552 = vpow.pop %v551
        %v553 = vmul.f32 %v512, 1.442695
        %v554 = vpow.pop %v553
        %v555 = vmul.f32 %v513, 1.442695
        %v556 = vpow.pop %v555
        %v557 = vmul.f32 %v514, 1.442695
        %v558 = vpow.pop %v557
        %v559 = vmul.f32 %v515, 1.442695
        %v560 = vpow.pop %v559
        %v561 = vmul.f32 %v516, 1.442695
        %v562 = vpow.pop %v561
        %v563 = vmul.f32 %v517, 1.442695
        %v564 = vpow.pop %v563
        %v565 = vmul.f32 %v518, 1.442695
        %v566 = vpow.pop %v565
        %v567 = vmul.f32 %v519, 1.442695
        %v568 = vpow.pop %v567
        %v569 = vmul.f32 %v520, 1.442695
        %v570 = vpow.pop %v569
        %v571 = vmul.f32 %v521, 1.442695
        %v572 = vpow.pop %v571
        %v573 = vmul.f32 %v522, 1.442695
        %v574 = vpow.pop %v573
        %v575 = vmul.f32 %v523, 1.442695
        %v576 = vpow.pop %v575
        %v577 = vmul.f32 %v524, 1.442695
        %v578 = vpow.pop %v577
        %v579 = vmul.f32 %v525, 1.442695
        %v580 = vpow.pop %v579
        %v581 = vmul.f32 %v526, 1.442695
        %v582 = vpow.pop %v581
        %v583 = vmul.f32 %v527, 1.442695
        %v584 = vpow.pop %v583
        %v585 = vmul.f32 %v528, 1.442695
        %v586 = vpow.pop %v585
        %v587 = vmul.f32 %v529, 1.442695
        %v588 = vpow.pop %v587
        %v589 = vmul.f32 %v530, 1.442695
        %v590 = vpow.pop %v589
        %v591 = vmul.f32 %v531, 1.442695
        %v592 = vpow.pop %v591
        %v593 = vmul.f32 %v532, 1.442695
        %v594 = vpow.pop %v593
        %v595 = vmul.f32 %v533, 1.442695
        %v596 = vpow.pop %v595
        %v597 = vmul.f32 %v534, 1.442695
        %v598 = vpow.pop %v597
        %v599 = vadd.f32 %v536, 1.0
        %v600 = vadd.f32 %v538, 1.0
        %v601 = vadd.f32 %v540, 1.0
        %v602 = vadd.f32 %v542, 1.0
        %v603 = vadd.f32 %v544, 1.0
        %v604 = vadd.f32 %v546, 1.0
        %v605 = vadd.f32 %v548, 1.0
        %v606 = vadd.f32 %v550, 1.0
        %v607 = vadd.f32 %v552, 1.0
        %v608 = vadd.f32 %v554, 1.0
        %v609 = vadd.f32 %v556, 1.0
        %v610 = vadd.f32 %v558, 1.0
        %v611 = vadd.f32 %v560, 1.0
        %v612 = vadd.f32 %v562, 1.0
        %v613 = vadd.f32 %v564, 1.0
        %v614 = vadd.f32 %v566, 1.0
        %v615 = vadd.f32 %v568, 1.0
        %v616 = vadd.f32 %v570, 1.0
        %v617 = vadd.f32 %v572, 1.0
        %v618 = vadd.f32 %v574, 1.0
        %v619 = vadd.f32 %v576, 1.0
        %v620 = vadd.f32 %v578, 1.0
        %v621 = vadd.f32 %v580, 1.0
        %v622 = vadd.f32 %v582, 1.0
        %v623 = vadd.f32 %v584, 1.0
        %v624 = vadd.f32 %v586, 1.0
        %v625 = vadd.f32 %v588, 1.0
        %v626 = vadd.f32 %v590, 1.0
        %v627 = vadd.f32 %v592, 1.0
        %v628 = vadd.f32 %v594, 1.0
        %v629 = vadd.f32 %v596, 1.0
        %v630 = vadd.f32 %v598, 1.0
        %v631 = vlog2.pop %v599
        %v632 = vmul.f32 %v631, 0.6931472
        %v633 = vlog2.pop %v600
        %v634 = vmul.f32 %v633, 0.6931472
        %v635 = vlog2.pop %v601
        %v636 = vmul.f32 %v635, 0.6931472
        %v637 = vlog2.pop %v602
        %v638 = vmul.f32 %v637, 0.6931472
        %v639 = vlog2.pop %v603
        %v640 = vmul.f32 %v639, 0.6931472
        %v641 = vlog2.pop %v604
        %v642 = vmul.f32 %v641, 0.6931472
        %v643 = vlog2.pop %v605
        %v644 = vmul.f32 %v643, 0.6931472
        %v645 = vlog2.pop %v606
        %v646 = vmul.f32 %v645, 0.6931472
        %v647 = vlog2.pop %v607
        %v648 = vmul.f32 %v647, 0.6931472
        %v649 = vlog2.pop %v608
        %v650 = vmul.f32 %v649, 0.6931472
        %v651 = vlog2.pop %v609
        %v652 = vmul.f32 %v651, 0.6931472
        %v653 = vlog2.pop %v610
        %v654 = vmul.f32 %v653, 0.6931472
        %v655 = vlog2.pop %v611
        %v656 = vmul.f32 %v655, 0.6931472
        %v657 = vlog2.pop %v612
        %v658 = vmul.f32 %v657, 0.6931472
        %v659 = vlog2.pop %v613
        %v660 = vmul.f32 %v659, 0.6931472
        %v661 = vlog2.pop %v614
        %v662 = vmul.f32 %v661, 0.6931472
        %v663 = vlog2.pop %v615
        %v664 = vmul.f32 %v663, 0.6931472
        %v665 = vlog2.pop %v616
        %v666 = vmul.f32 %v665, 0.6931472
        %v667 = vlog2.pop %v617
        %v668 = vmul.f32 %v667, 0.6931472
        %v669 = vlog2.pop %v618
        %v670 = vmul.f32 %v669, 0.6931472
        %v671 = vlog2.pop %v619
        %v672 = vmul.f32 %v671, 0.6931472
        %v673 = vlog2.pop %v620
        %v674 = vmul.f32 %v673, 0.6931472
        %v675 = vlog2.pop %v621
        %v676 = vmul.f32 %v675, 0.6931472
        %v677 = vlog2.pop %v622
        %v678 = vmul.f32 %v677, 0.6931472
        %v679 = vlog2.pop %v623
        %v680 = vmul.f32 %v679, 0.6931472
        %v681 = vlog2.pop %v624
        %v682 = vmul.f32 %v681, 0.6931472
        %v683 = vlog2.pop %v625
        %v684 = vmul.f32 %v683, 0.6931472
        %v685 = vlog2.pop %v626
        %v686 = vmul.f32 %v685, 0.6931472
        %v687 = vlog2.pop %v627
        %v688 = vmul.f32 %v687, 0.6931472
        %v689 = vlog2.pop %v628
        %v690 = vmul.f32 %v689, 0.6931472
        %v691 = vlog2.pop %v629
        %v692 = vmul.f32 %v691, 0.6931472
        %v693 = vlog2.pop %v630
        %v694 = vmul.f32 %v693, 0.6931472
        %v695 = vsel %vm471, %v439, %v632
        %v696 = vsel %vm472, %v440, %v634
        %v697 = vsel %vm473, %v441, %v636
        %v698 = vsel %vm474, %v442, %v638
        %v699 = vsel %vm475, %v443, %v640
        %v700 = vsel %vm476, %v444, %v642
        %v701 = vsel %vm477, %v445, %v644
        %v702 = vsel %vm478, %v446, %v646
        %v703 = vsel %vm479, %v447, %v648
        %v704 = vsel %vm480, %v448, %v650
        %v705 = vsel %vm481, %v449, %v652
        %v706 = vsel %vm482, %v450, %v654
        %v707 = vsel %vm483, %v451, %v656
        %v708 = vsel %vm484, %v452, %v658
        %v709 = vsel %vm485, %v453, %v660
        %v710 = vsel %vm486, %v454, %v662
        %v711 = vsel %vm487, %v455, %v664
        %v712 = vsel %vm488, %v456, %v666
        %v713 = vsel %vm489, %v457, %v668
        %v714 = vsel %vm490, %v458, %v670
        %v715 = vsel %vm491, %v459, %v672
        %v716 = vsel %vm492, %v460, %v674
        %v717 = vsel %vm493, %v461, %v676
        %v718 = vsel %vm494, %v462, %v678
        %v719 = vsel %vm495, %v463, %v680
        %v720 = vsel %vm496, %v464, %v682
        %v721 = vsel %vm497, %v465, %v684
        %v722 = vsel %vm498, %v466, %v686
        %v723 = vsel %vm499, %v467, %v688
        %v724 = vsel %vm500, %v468, %v690
        %v725 = vsel %vm501, %v469, %v692
        %v726 = vsel %vm502, %v470, %v694
        %v727 = vtanh.pop %v695
        %v728 = vtanh.pop %v696
        %v729 = vtanh.pop %v697
        %v730 = vtanh.pop %v698
        %v731 = vtanh.pop %v699
        %v732 = vtanh.pop %v700
        %v733 = vtanh.pop %v701
        %v734 = vtanh.pop %v702
        %v735 = vtanh.pop %v703
        %v736 = vtanh.pop %v704
        %v737 = vtanh.pop %v705
        %v738 = vtanh.pop %v706
        %v739 = vtanh.pop %v707
        %v740 = vtanh.pop %v708
        %v741 = vtanh.pop %v709
        %v742 = vtanh.pop %v710
        %v743 = vtanh.pop %v711
        %v744 = vtanh.pop %v712
        %v745 = vtanh.pop %v713
        %v746 = vtanh.pop %v714
        %v747 = vtanh.pop %v715
        %v748 = vtanh.pop %v716
        %v749 = vtanh.pop %v717
        %v750 = vtanh.pop %v718
        %v751 = vtanh.pop %v719
        %v752 = vtanh.pop %v720
        %v753 = vtanh.pop %v721
        %v754 = vtanh.pop %v722
        %v755 = vtanh.pop %v723
        %v756 = vtanh.pop %v724
        %v757 = vtanh.pop %v725
        %v758 = vtanh.pop %v726
        %v759 = vmul.f32 %v439, %v727
        %v760 = vmul.f32 %v440, %v728
        %v761 = vmul.f32 %v441, %v729
        %v762 = vmul.f32 %v442, %v730
        %v763 = vmul.f32 %v443, %v731
        %v764 = vmul.f32 %v444, %v732
        %v765 = vmul.f32 %v445, %v733
        %v766 = vmul.f32 %v446, %v734
        %v767 = vmul.f32 %v447, %v735
        %v768 = vmul.f32 %v448, %v736
        %v769 = vmul.f32 %v449, %v737
        %v770 = vmul.f32 %v450, %v738
        %v771 = vmul.f32 %v451, %v739
        %v772 = vmul.f32 %v452, %v740
        %v773 = vmul.f32 %v453, %v741
        %v774 = vmul.f32 %v454, %v742
        %v775 = vmul.f32 %v455, %v743
        %v776 = vmul.f32 %v456, %v744
        %v777 = vmul.f32 %v457, %v745
        %v778 = vmul.f32 %v458, %v746
        %v779 = vmul.f32 %v459, %v747
        %v780 = vmul.f32 %v460, %v748
        %v781 = vmul.f32 %v461, %v749
        %v782 = vmul.f32 %v462, %v750
        %v783 = vmul.f32 %v463, %v751
        %v784 = vmul.f32 %v464, %v752
        %v785 = vmul.f32 %v465, %v753
        %v786 = vmul.f32 %v466, %v754
        %v787 = vmul.f32 %v467, %v755
        %v788 = vmul.f32 %v468, %v756
        %v789 = vmul.f32 %v469, %v757
        %v790 = vmul.f32 %v470, %v758
        %v791 = vld [vmem:[%s4] sm:$0x1]
        %s792 = scalar_lea.vmem [#allocation2], 24
        %793 = vst.msk [vmem:[%s792 + $0x1] sm:$0xff] %vm349, %v759
        %794 = vst.msk [vmem:[%s792 + $0x9] sm:$0xff] %vm349, %v760
        %795 = vst.msk [vmem:[%s792 + $0x19] sm:$0xff] %vm349, %v761
        %796 = vst.msk [vmem:[%s792 + $0x21] sm:$0xff] %vm349, %v762
        %797 = vst.msk [vmem:[%s792 + $0x31] sm:$0xff] %vm349, %v763
        %798 = vst.msk [vmem:[%s792 + $0x39] sm:$0xff] %vm349, %v764
        %799 = vst.msk [vmem:[%s792 + $0x49] sm:$0xff] %vm349, %v765
        %800 = vst.msk [vmem:[%s792 + $0x51] sm:$0xff] %vm349, %v766
        %801 = vst.msk [vmem:[%s792 + $0x61] sm:$0xff] %vm349, %v767
        %802 = vst.msk [vmem:[%s792 + $0x69] sm:$0xff] %vm349, %v768
        %803 = vst.msk [vmem:[%s792 + $0x79] sm:$0xff] %vm349, %v769
        %804 = vst.msk [vmem:[%s792 + $0x81] sm:$0xff] %vm349, %v770
        %805 = vst.msk [vmem:[%s792 + $0x91] sm:$0xff] %vm349, %v771
        %806 = vst.msk [vmem:[%s792 + $0x99] sm:$0xff] %vm349, %v772
        %807 = vst.msk [vmem:[%s792 + $0xa9] sm:$0xff] %vm349, %v773
        %808 = vst.msk [vmem:[%s792 + $0xb1] sm:$0xff] %vm349, %v774
        %809 = vst.msk [vmem:[%s792 + $0xc1] sm:$0xff] %vm349, %v775
        %810 = vst.msk [vmem:[%s792 + $0xc9] sm:$0xff] %vm349, %v776
        %811 = vst.msk [vmem:[%s792 + $0xd9] sm:$0xff] %vm349, %v777
        %812 = vst.msk [vmem:[%s792 + $0xe1] sm:$0xff] %vm349, %v778
        %813 = vst.msk [vmem:[%s792 + $0xf1] sm:$0xff] %vm349, %v779
        %814 = vst.msk [vmem:[%s792 + $0xf9] sm:$0xff] %vm349, %v780
        %815 = vst.msk [vmem:[%s792 + $0x109] sm:$0xff] %vm349, %v781
        %816 = vst.msk [vmem:[%s792 + $0x111] sm:$0xff] %vm349, %v782
        %817 = vst.msk [vmem:[%s792 + $0x121] sm:$0xff] %vm349, %v783
        %818 = vst.msk [vmem:[%s792 + $0x129] sm:$0xff] %vm349, %v784
        %819 = vst.msk [vmem:[%s792 + $0x139] sm:$0xff] %vm349, %v785
        %820 = vst.msk [vmem:[%s792 + $0x141] sm:$0xff] %vm349, %v786
        %821 = vst.msk [vmem:[%s792 + $0x151] sm:$0xff] %vm349, %v787
        %822 = vst.msk [vmem:[%s792 + $0x159] sm:$0xff] %vm349, %v788
        %823 = vst.msk [vmem:[%s792 + $0x169] sm:$0xff] %vm349, %v789
        %824 = vst.msk [vmem:[%s792 + $0x171] sm:$0xff] %vm349, %v790
        %v825 = vld [vmem:[#allocation2] sm:$0xff]
        %v826 = vld [vmem:[#allocation2 + $0x8] sm:$0xff]
        %v827 = vld [vmem:[#allocation2 + $0x18] sm:$0xff]
        %v828 = vld [vmem:[#allocation2 + $0x20] sm:$0xff]
        %v829 = vld [vmem:[#allocation2 + $0x30] sm:$0xff]
        %v830 = vld [vmem:[#allocation2 + $0x38] sm:$0xff]
        %v831 = vld [vmem:[#allocation2 + $0x48] sm:$0xff]
        %v832 = vld [vmem:[#allocation2 + $0x50] sm:$0xff]
        %v833 = vld [vmem:[#allocation2 + $0x60] sm:$0xff]
        %v834 = vld [vmem:[#allocation2 + $0x68] sm:$0xff]
        %v835 = vld [vmem:[#allocation2 + $0x78] sm:$0xff]
        %v836 = vld [vmem:[#allocation2 + $0x80] sm:$0xff]
        %v837 = vld [vmem:[#allocation2 + $0x90] sm:$0xff]
        %v838 = vld [vmem:[#allocation2 + $0x98] sm:$0xff]
        %v839 = vld [vmem:[#allocation2 + $0xa8] sm:$0xff]
        %v840 = vld [vmem:[#allocation2 + $0xb0] sm:$0xff]
        %v841 = vld [vmem:[#allocation2 + $0xc0] sm:$0xff]
        %v842 = vld [vmem:[#allocation2 + $0xc8] sm:$0xff]
        %v843 = vld [vmem:[#allocation2 + $0xd8] sm:$0xff]
        %v844 = vld [vmem:[#allocation2 + $0xe0] sm:$0xff]
        %v845 = vld [vmem:[#allocation2 + $0xf0] sm:$0xff]
        %v846 = vld [vmem:[#allocation2 + $0xf8] sm:$0xff]
        %v847 = vld [vmem:[#allocation2 + $0x108] sm:$0xff]
        %v848 = vld [vmem:[#allocation2 + $0x110] sm:$0xff]
        %v849 = vld [vmem:[#allocation2 + $0x120] sm:$0xff]
        %v850 = vld [vmem:[#allocation2 + $0x128] sm:$0xff]
        %v851 = vld [vmem:[#allocation2 + $0x138] sm:$0xff]
        %v852 = vld [vmem:[#allocation2 + $0x140] sm:$0xff]
        %v853 = vld [vmem:[#allocation2 + $0x150] sm:$0xff]
        %v854 = vld [vmem:[#allocation2 + $0x158] sm:$0xff]
        %v855 = vld [vmem:[#allocation2 + $0x168] sm:$0xff]
        %v856 = vld [vmem:[#allocation2 + $0x170] sm:$0xff]
        %857 = vst.msk [vmem:[#allocation3] sm:$0xff] %vm349, %v825
        %858 = vst.msk [vmem:[#allocation3 + $0x8] sm:$0xff] %vm349, %v826
        %859 = vst.msk [vmem:[#allocation3 + $0x10] sm:$0xff] %vm349, %v827
        %860 = vst.msk [vmem:[#allocation3 + $0x18] sm:$0xff] %vm349, %v828
        %861 = vst.msk [vmem:[#allocation3 + $0x20] sm:$0xff] %vm349, %v829
        %862 = vst.msk [vmem:[#allocation3 + $0x28] sm:$0xff] %vm349, %v830
        %863 = vst.msk [vmem:[#allocation3 + $0x30] sm:$0xff] %vm349, %v831
        %864 = vst.msk [vmem:[#allocation3 + $0x38] sm:$0xff] %vm349, %v832
        %865 = vst.msk [vmem:[#allocation3 + $0x40] sm:$0xff] %vm349, %v833
        %866 = vst.msk [vmem:[#allocation3 + $0x48] sm:$0xff] %vm349, %v834
        %867 = vst.msk [vmem:[#allocation3 + $0x50] sm:$0xff] %vm349, %v835
        %868 = vst.msk [vmem:[#allocation3 + $0x58] sm:$0xff] %vm349, %v836
        %869 = vst.msk [vmem:[#allocation3 + $0x60] sm:$0xff] %vm349, %v837
        %870 = vst.msk [vmem:[#allocation3 + $0x68] sm:$0xff] %vm349, %v838
        %871 = vst.msk [vmem:[#allocation3 + $0x70] sm:$0xff] %vm349, %v839
        %872 = vst.msk [vmem:[#allocation3 + $0x78] sm:$0xff] %vm349, %v840
        %873 = vst.msk [vmem:[#allocation3 + $0x80] sm:$0xff] %vm349, %v841
        %874 = vst.msk [vmem:[#allocation3 + $0x88] sm:$0xff] %vm349, %v842
        %875 = vst.msk [vmem:[#allocation3 + $0x90] sm:$0xff] %vm349, %v843
        %876 = vst.msk [vmem:[#allocation3 + $0x98] sm:$0xff] %vm349, %v844
        %877 = vst.msk [vmem:[#allocation3 + $0xa0] sm:$0xff] %vm349, %v845
        %878 = vst.msk [vmem:[#allocation3 + $0xa8] sm:$0xff] %vm349, %v846
        %879 = vst.msk [vmem:[#allocation3 + $0xb0] sm:$0xff] %vm349, %v847
        %880 = vst.msk [vmem:[#allocation3 + $0xb8] sm:$0xff] %vm349, %v848
        %881 = vst.msk [vmem:[#allocation3 + $0xc0] sm:$0xff] %vm349, %v849
        %882 = vst.msk [vmem:[#allocation3 + $0xc8] sm:$0xff] %vm349, %v850
        %883 = vst.msk [vmem:[#allocation3 + $0xd0] sm:$0xff] %vm349, %v851
        %884 = vst.msk [vmem:[#allocation3 + $0xd8] sm:$0xff] %vm349, %v852
        %885 = vst.msk [vmem:[#allocation3 + $0xe0] sm:$0xff] %vm349, %v853
        %886 = vst.msk [vmem:[#allocation3 + $0xe8] sm:$0xff] %vm349, %v854
        %887 = vst.msk [vmem:[#allocation3 + $0xf0] sm:$0xff] %vm349, %v855
        %888 = vst.msk [vmem:[#allocation3 + $0xf8] sm:$0xff] %vm349, %v856
        %v889 = vld [vmem:[#allocation2 + $0x1] sm:$0xff]
        %v890 = vld [vmem:[#allocation2 + $0x9] sm:$0xff]
        %v891 = vld [vmem:[#allocation2 + $0x19] sm:$0xff]
        %v892 = vld [vmem:[#allocation2 + $0x21] sm:$0xff]
        %v893 = vld [vmem:[#allocation2 + $0x31] sm:$0xff]
        %v894 = vld [vmem:[#allocation2 + $0x39] sm:$0xff]
        %v895 = vld [vmem:[#allocation2 + $0x49] sm:$0xff]
        %v896 = vld [vmem:[#allocation2 + $0x51] sm:$0xff]
        %v897 = vld [vmem:[#allocation2 + $0x61] sm:$0xff]
        %v898 = vld [vmem:[#allocation2 + $0x69] sm:$0xff]
        %v899 = vld [vmem:[#allocation2 + $0x79] sm:$0xff]
        %v900 = vld [vmem:[#allocation2 + $0x81] sm:$0xff]
        %v901 = vld [vmem:[#allocation2 + $0x91] sm:$0xff]
        %v902 = vld [vmem:[#allocation2 + $0x99] sm:$0xff]
        %v903 = vld [vmem:[#allocation2 + $0xa9] sm:$0xff]
        %v904 = vld [vmem:[#allocation2 + $0xb1] sm:$0xff]
        %v905 = vld [vmem:[#allocation2 + $0xc1] sm:$0xff]
        %v906 = vld [vmem:[#allocation2 + $0xc9] sm:$0xff]
        %v907 = vld [vmem:[#allocation2 + $0xd9] sm:$0xff]
        %v908 = vld [vmem:[#allocation2 + $0xe1] sm:$0xff]
        %v909 = vld [vmem:[#allocation2 + $0xf1] sm:$0xff]
        %v910 = vld [vmem:[#allocation2 + $0xf9] sm:$0xff]
        %v911 = vld [vmem:[#allocation2 + $0x109] sm:$0xff]
        %v912 = vld [vmem:[#allocation2 + $0x111] sm:$0xff]
        %v913 = vld [vmem:[#allocation2 + $0x121] sm:$0xff]
        %v914 = vld [vmem:[#allocation2 + $0x129] sm:$0xff]
        %v915 = vld [vmem:[#allocation2 + $0x139] sm:$0xff]
        %v916 = vld [vmem:[#allocation2 + $0x141] sm:$0xff]
        %v917 = vld [vmem:[#allocation2 + $0x151] sm:$0xff]
        %v918 = vld [vmem:[#allocation2 + $0x159] sm:$0xff]
        %v919 = vld [vmem:[#allocation2 + $0x169] sm:$0xff]
        %v920 = vld [vmem:[#allocation2 + $0x171] sm:$0xff]
        %953 = vrot.lane.b32.xlu0 %v889, 4
        %v954 = vpop.permute.xlu0 %953
        %955 = vrot.lane.b32.xlu0 %v890, 4
        %v956 = vpop.permute.xlu0 %955
        %957 = vrot.lane.b32.xlu0 %v891, 4
        %v958 = vpop.permute.xlu0 %957
        %959 = vrot.lane.b32.xlu0 %v892, 4
        %v960 = vpop.permute.xlu0 %959
        %961 = vrot.lane.b32.xlu0 %v893, 4
        %v962 = vpop.permute.xlu0 %961
        %963 = vrot.lane.b32.xlu0 %v894, 4
        %v964 = vpop.permute.xlu0 %963
        %965 = vrot.lane.b32.xlu0 %v895, 4
        %v966 = vpop.permute.xlu0 %965
        %967 = vrot.lane.b32.xlu0 %v896, 4
        %v968 = vpop.permute.xlu0 %967
        %969 = vrot.lane.b32.xlu0 %v897, 4
        %v970 = vpop.permute.xlu0 %969
        %971 = vrot.lane.b32.xlu0 %v898, 4
        %v972 = vpop.permute.xlu0 %971
        %973 = vrot.lane.b32.xlu0 %v899, 4
        %v974 = vpop.permute.xlu0 %973
        %975 = vrot.lane.b32.xlu0 %v900, 4
        %v976 = vpop.permute.xlu0 %975
        %977 = vrot.lane.b32.xlu0 %v901, 4
        %v978 = vpop.permute.xlu0 %977
        %979 = vrot.lane.b32.xlu0 %v902, 4
        %v980 = vpop.permute.xlu0 %979
        %981 = vrot.lane.b32.xlu0 %v903, 4
        %v982 = vpop.permute.xlu0 %981
        %983 = vrot.lane.b32.xlu0 %v904, 4
        %v984 = vpop.permute.xlu0 %983
        %985 = vrot.lane.b32.xlu0 %v905, 4
        %v986 = vpop.permute.xlu0 %985
        %987 = vrot.lane.b32.xlu0 %v906, 4
        %v988 = vpop.permute.xlu0 %987
        %989 = vrot.lane.b32.xlu0 %v907, 4
        %v990 = vpop.permute.xlu0 %989
        %991 = vrot.lane.b32.xlu0 %v908, 4
        %v992 = vpop.permute.xlu0 %991
        %993 = vrot.lane.b32.xlu0 %v909, 4
        %v994 = vpop.permute.xlu0 %993
        %995 = vrot.lane.b32.xlu0 %v910, 4
        %v996 = vpop.permute.xlu0 %995
        %997 = vrot.lane.b32.xlu0 %v911, 4
        %v998 = vpop.permute.xlu0 %997
        %999 = vrot.lane.b32.xlu0 %v912, 4
        %v1000 = vpop.permute.xlu0 %999
        %1001 = vrot.lane.b32.xlu0 %v913, 4
        %v1002 = vpop.permute.xlu0 %1001
        %1003 = vrot.lane.b32.xlu0 %v914, 4
        %v1004 = vpop.permute.xlu0 %1003
        %1005 = vrot.lane.b32.xlu0 %v915, 4
        %v1006 = vpop.permute.xlu0 %1005
        %1007 = vrot.lane.b32.xlu0 %v916, 4
        %v1008 = vpop.permute.xlu0 %1007
        %1009 = vrot.lane.b32.xlu0 %v917, 4
        %v1010 = vpop.permute.xlu0 %1009
        %1011 = vrot.lane.b32.xlu0 %v918, 4
        %v1012 = vpop.permute.xlu0 %1011
        %1013 = vrot.lane.b32.xlu0 %v919, 4
        %v1014 = vpop.permute.xlu0 %1013
        %1015 = vrot.lane.b32.xlu0 %v920, 4
        %v1016 = vpop.permute.xlu0 %1015
        %vm1049 = vcmask 64544
        %1050 = vst.msk [vmem:[#allocation3] sm:$0xff] %vm1049, %v954
        %1051 = vst.msk [vmem:[#allocation3 + $0x8] sm:$0xff] %vm1049, %v956
        %1052 = vst.msk [vmem:[#allocation3 + $0x10] sm:$0xff] %vm1049, %v958
        %1053 = vst.msk [vmem:[#allocation3 + $0x18] sm:$0xff] %vm1049, %v960
        %1054 = vst.msk [vmem:[#allocation3 + $0x20] sm:$0xff] %vm1049, %v962
        %1055 = vst.msk [vmem:[#allocation3 + $0x28] sm:$0xff] %vm1049, %v964
        %1056 = vst.msk [vmem:[#allocation3 + $0x30] sm:$0xff] %vm1049, %v966
        %1057 = vst.msk [vmem:[#allocation3 + $0x38] sm:$0xff] %vm1049, %v968
        %1058 = vst.msk [vmem:[#allocation3 + $0x40] sm:$0xff] %vm1049, %v970
        %1059 = vst.msk [vmem:[#allocation3 + $0x48] sm:$0xff] %vm1049, %v972
        %1060 = vst.msk [vmem:[#allocation3 + $0x50] sm:$0xff] %vm1049, %v974
        %1061 = vst.msk [vmem:[#allocation3 + $0x58] sm:$0xff] %vm1049, %v976
        %1062 = vst.msk [vmem:[#allocation3 + $0x60] sm:$0xff] %vm1049, %v978
        %1063 = vst.msk [vmem:[#allocation3 + $0x68] sm:$0xff] %vm1049, %v980
        %1064 = vst.msk [vmem:[#allocation3 + $0x70] sm:$0xff] %vm1049, %v982
        %1065 = vst.msk [vmem:[#allocation3 + $0x78] sm:$0xff] %vm1049, %v984
        %1066 = vst.msk [vmem:[#allocation3 + $0x80] sm:$0xff] %vm1049, %v986
        %1067 = vst.msk [vmem:[#allocation3 + $0x88] sm:$0xff] %vm1049, %v988
        %1068 = vst.msk [vmem:[#allocation3 + $0x90] sm:$0xff] %vm1049, %v990
        %1069 = vst.msk [vmem:[#allocation3 + $0x98] sm:$0xff] %vm1049, %v992
        %1070 = vst.msk [vmem:[#allocation3 + $0xa0] sm:$0xff] %vm1049, %v994
        %1071 = vst.msk [vmem:[#allocation3 + $0xa8] sm:$0xff] %vm1049, %v996
        %1072 = vst.msk [vmem:[#allocation3 + $0xb0] sm:$0xff] %vm1049, %v998
        %1073 = vst.msk [vmem:[#allocation3 + $0xb8] sm:$0xff] %vm1049, %v1000
        %1074 = vst.msk [vmem:[#allocation3 + $0xc0] sm:$0xff] %vm1049, %v1002
        %1075 = vst.msk [vmem:[#allocation3 + $0xc8] sm:$0xff] %vm1049, %v1004
        %1076 = vst.msk [vmem:[#allocation3 + $0xd0] sm:$0xff] %vm1049, %v1006
        %1077 = vst.msk [vmem:[#allocation3 + $0xd8] sm:$0xff] %vm1049, %v1008
        %1078 = vst.msk [vmem:[#allocation3 + $0xe0] sm:$0xff] %vm1049, %v1010
        %1079 = vst.msk [vmem:[#allocation3 + $0xe8] sm:$0xff] %vm1049, %v1012
        %1080 = vst.msk [vmem:[#allocation3 + $0xf0] sm:$0xff] %vm1049, %v1014
        %1081 = vst.msk [vmem:[#allocation3 + $0xf8] sm:$0xff] %vm1049, %v1016
        %v1082 = vld [vmem:[#allocation2 + $0x2] sm:$0xff]
        %v1083 = vld [vmem:[#allocation2 + $0xa] sm:$0xff]
        %v1084 = vld [vmem:[#allocation2 + $0x1a] sm:$0xff]
        %v1085 = vld [vmem:[#allocation2 + $0x22] sm:$0xff]
        %v1086 = vld [vmem:[#allocation2 + $0x32] sm:$0xff]
        %v1087 = vld [vmem:[#allocation2 + $0x3a] sm:$0xff]
        %v1088 = vld [vmem:[#allocation2 + $0x4a] sm:$0xff]
        %v1089 = vld [vmem:[#allocation2 + $0x52] sm:$0xff]
        %v1090 = vld [vmem:[#allocation2 + $0x62] sm:$0xff]
        %v1091 = vld [vmem:[#allocation2 + $0x6a] sm:$0xff]
        %v1092 = vld [vmem:[#allocation2 + $0x7a] sm:$0xff]
        %v1093 = vld [vmem:[#allocation2 + $0x82] sm:$0xff]
        %v1094 = vld [vmem:[#allocation2 + $0x92] sm:$0xff]
        %v1095 = vld [vmem:[#allocation2 + $0x9a] sm:$0xff]
        %v1096 = vld [vmem:[#allocation2 + $0xaa] sm:$0xff]
        %v1097 = vld [vmem:[#allocation2 + $0xb2] sm:$0xff]
        %v1098 = vld [vmem:[#allocation2 + $0xc2] sm:$0xff]
        %v1099 = vld [vmem:[#allocation2 + $0xca] sm:$0xff]
        %v1100 = vld [vmem:[#allocation2 + $0xda] sm:$0xff]
        %v1101 = vld [vmem:[#allocation2 + $0xe2] sm:$0xff]
        %v1102 = vld [vmem:[#allocation2 + $0xf2] sm:$0xff]
        %v1103 = vld [vmem:[#allocation2 + $0xfa] sm:$0xff]
        %v1104 = vld [vmem:[#allocation2 + $0x10a] sm:$0xff]
        %v1105 = vld [vmem:[#allocation2 + $0x112] sm:$0xff]
        %v1106 = vld [vmem:[#allocation2 + $0x122] sm:$0xff]
        %v1107 = vld [vmem:[#allocation2 + $0x12a] sm:$0xff]
        %v1108 = vld [vmem:[#allocation2 + $0x13a] sm:$0xff]
        %v1109 = vld [vmem:[#allocation2 + $0x142] sm:$0xff]
        %v1110 = vld [vmem:[#allocation2 + $0x152] sm:$0xff]
        %v1111 = vld [vmem:[#allocation2 + $0x15a] sm:$0xff]
        %v1112 = vld [vmem:[#allocation2 + $0x16a] sm:$0xff]
        %v1113 = vld [vmem:[#allocation2 + $0x172] sm:$0xff]
        %1146 = vrot.lane.b32.xlu0 %v1082, 8
        %v1147 = vpop.permute.xlu0 %1146
        %1148 = vrot.lane.b32.xlu0 %v1083, 8
        %v1149 = vpop.permute.xlu0 %1148
        %1150 = vrot.lane.b32.xlu0 %v1084, 8
        %v1151 = vpop.permute.xlu0 %1150
        %1152 = vrot.lane.b32.xlu0 %v1085, 8
        %v1153 = vpop.permute.xlu0 %1152
        %1154 = vrot.lane.b32.xlu0 %v1086, 8
        %v1155 = vpop.permute.xlu0 %1154
        %1156 = vrot.lane.b32.xlu0 %v1087, 8
        %v1157 = vpop.permute.xlu0 %1156
        %1158 = vrot.lane.b32.xlu0 %v1088, 8
        %v1159 = vpop.permute.xlu0 %1158
        %1160 = vrot.lane.b32.xlu0 %v1089, 8
        %v1161 = vpop.permute.xlu0 %1160
        %1162 = vrot.lane.b32.xlu0 %v1090, 8
        %v1163 = vpop.permute.xlu0 %1162
        %1164 = vrot.lane.b32.xlu0 %v1091, 8
        %v1165 = vpop.permute.xlu0 %1164
        %1166 = vrot.lane.b32.xlu0 %v1092, 8
        %v1167 = vpop.permute.xlu0 %1166
        %1168 = vrot.lane.b32.xlu0 %v1093, 8
        %v1169 = vpop.permute.xlu0 %1168
        %1170 = vrot.lane.b32.xlu0 %v1094, 8
        %v1171 = vpop.permute.xlu0 %1170
        %1172 = vrot.lane.b32.xlu0 %v1095, 8
        %v1173 = vpop.permute.xlu0 %1172
        %1174 = vrot.lane.b32.xlu0 %v1096, 8
        %v1175 = vpop.permute.xlu0 %1174
        %1176 = vrot.lane.b32.xlu0 %v1097, 8
        %v1177 = vpop.permute.xlu0 %1176
        %1178 = vrot.lane.b32.xlu0 %v1098, 8
        %v1179 = vpop.permute.xlu0 %1178
        %1180 = vrot.lane.b32.xlu0 %v1099, 8
        %v1181 = vpop.permute.xlu0 %1180
        %1182 = vrot.lane.b32.xlu0 %v1100, 8
        %v1183 = vpop.permute.xlu0 %1182
        %1184 = vrot.lane.b32.xlu0 %v1101, 8
        %v1185 = vpop.permute.xlu0 %1184
        %1186 = vrot.lane.b32.xlu0 %v1102, 8
        %v1187 = vpop.permute.xlu0 %1186
        %1188 = vrot.lane.b32.xlu0 %v1103, 8
        %v1189 = vpop.permute.xlu0 %1188
        %1190 = vrot.lane.b32.xlu0 %v1104, 8
        %v1191 = vpop.permute.xlu0 %1190
        %1192 = vrot.lane.b32.xlu0 %v1105, 8
        %v1193 = vpop.permute.xlu0 %1192
        %1194 = vrot.lane.b32.xlu0 %v1106, 8
        %v1195 = vpop.permute.xlu0 %1194
        %1196 = vrot.lane.b32.xlu0 %v1107, 8
        %v1197 = vpop.permute.xlu0 %1196
        %1198 = vrot.lane.b32.xlu0 %v1108, 8
        %v1199 = vpop.permute.xlu0 %1198
        %1200 = vrot.lane.b32.xlu0 %v1109, 8
        %v1201 = vpop.permute.xlu0 %1200
        %1202 = vrot.lane.b32.xlu0 %v1110, 8
        %v1203 = vpop.permute.xlu0 %1202
        %1204 = vrot.lane.b32.xlu0 %v1111, 8
        %v1205 = vpop.permute.xlu0 %1204
        %1206 = vrot.lane.b32.xlu0 %v1112, 8
        %v1207 = vpop.permute.xlu0 %1206
        %1208 = vrot.lane.b32.xlu0 %v1113, 8
        %v1209 = vpop.permute.xlu0 %1208
        %vm1242 = vcmask 97344
        %1243 = vst.msk [vmem:[#allocation3] sm:$0xff] %vm1242, %v1147
        %1244 = vst.msk [vmem:[#allocation3 + $0x8] sm:$0xff] %vm1242, %v1149
        %1245 = vst.msk [vmem:[#allocation3 + $0x10] sm:$0xff] %vm1242, %v1151
        %1246 = vst.msk [vmem:[#allocation3 + $0x18] sm:$0xff] %vm1242, %v1153
        %1247 = vst.msk [vmem:[#allocation3 + $0x20] sm:$0xff] %vm1242, %v1155
        %1248 = vst.msk [vmem:[#allocation3 + $0x28] sm:$0xff] %vm1242, %v1157
        %1249 = vst.msk [vmem:[#allocation3 + $0x30] sm:$0xff] %vm1242, %v1159
        %1250 = vst.msk [vmem:[#allocation3 + $0x38] sm:$0xff] %vm1242, %v1161
        %1251 = vst.msk [vmem:[#allocation3 + $0x40] sm:$0xff] %vm1242, %v1163
        %1252 = vst.msk [vmem:[#allocation3 + $0x48] sm:$0xff] %vm1242, %v1165
        %1253 = vst.msk [vmem:[#allocation3 + $0x50] sm:$0xff] %vm1242, %v1167
        %1254 = vst.msk [vmem:[#allocation3 + $0x58] sm:$0xff] %vm1242, %v1169
        %1255 = vst.msk [vmem:[#allocation3 + $0x60] sm:$0xff] %vm1242, %v1171
        %1256 = vst.msk [vmem:[#allocation3 + $0x68] sm:$0xff] %vm1242, %v1173
        %1257 = vst.msk [vmem:[#allocation3 + $0x70] sm:$0xff] %vm1242, %v1175
        %1258 = vst.msk [vmem:[#allocation3 + $0x78] sm:$0xff] %vm1242, %v1177
        %1259 = vst.msk [vmem:[#allocation3 + $0x80] sm:$0xff] %vm1242, %v1179
        %1260 = vst.msk [vmem:[#allocation3 + $0x88] sm:$0xff] %vm1242, %v1181
        %1261 = vst.msk [vmem:[#allocation3 + $0x90] sm:$0xff] %vm1242, %v1183
        %1262 = vst.msk [vmem:[#allocation3 + $0x98] sm:$0xff] %vm1242, %v1185
        %1263 = vst.msk [vmem:[#allocation3 + $0xa0] sm:$0xff] %vm1242, %v1187
        %1264 = vst.msk [vmem:[#allocation3 + $0xa8] sm:$0xff] %vm1242, %v1189
        %1265 = vst.msk [vmem:[#allocation3 + $0xb0] sm:$0xff] %vm1242, %v1191
        %1266 = vst.msk [vmem:[#allocation3 + $0xb8] sm:$0xff] %vm1242, %v1193
        %1267 = vst.msk [vmem:[#allocation3 + $0xc0] sm:$0xff] %vm1242, %v1195
        %1268 = vst.msk [vmem:[#allocation3 + $0xc8] sm:$0xff] %vm1242, %v1197
        %1269 = vst.msk [vmem:[#allocation3 + $0xd0] sm:$0xff] %vm1242, %v1199
        %1270 = vst.msk [vmem:[#allocation3 + $0xd8] sm:$0xff] %vm1242, %v1201
        %1271 = vst.msk [vmem:[#allocation3 + $0xe0] sm:$0xff] %vm1242, %v1203
        %1272 = vst.msk [vmem:[#allocation3 + $0xe8] sm:$0xff] %vm1242, %v1205
        %1273 = vst.msk [vmem:[#allocation3 + $0xf0] sm:$0xff] %vm1242, %v1207
        %1274 = vst.msk [vmem:[#allocation3 + $0xf8] sm:$0xff] %vm1242, %v1209
        %v1275 = vld [vmem:[%s792] sm:$0xff]
        %v1276 = vld [vmem:[%s792 + $0x8] sm:$0xff]
        %v1277 = vld [vmem:[%s792 + $0x18] sm:$0xff]
        %v1278 = vld [vmem:[%s792 + $0x20] sm:$0xff]
        %v1279 = vld [vmem:[%s792 + $0x30] sm:$0xff]
        %v1280 = vld [vmem:[%s792 + $0x38] sm:$0xff]
        %v1281 = vld [vmem:[%s792 + $0x48] sm:$0xff]
        %v1282 = vld [vmem:[%s792 + $0x50] sm:$0xff]
        %v1283 = vld [vmem:[%s792 + $0x60] sm:$0xff]
        %v1284 = vld [vmem:[%s792 + $0x68] sm:$0xff]
        %v1285 = vld [vmem:[%s792 + $0x78] sm:$0xff]
        %v1286 = vld [vmem:[%s792 + $0x80] sm:$0xff]
        %v1287 = vld [vmem:[%s792 + $0x90] sm:$0xff]
        %v1288 = vld [vmem:[%s792 + $0x98] sm:$0xff]
        %v1289 = vld [vmem:[%s792 + $0xa8] sm:$0xff]
        %v1290 = vld [vmem:[%s792 + $0xb0] sm:$0xff]
        %v1291 = vld [vmem:[%s792 + $0xc0] sm:$0xff]
        %v1292 = vld [vmem:[%s792 + $0xc8] sm:$0xff]
        %v1293 = vld [vmem:[%s792 + $0xd8] sm:$0xff]
        %v1294 = vld [vmem:[%s792 + $0xe0] sm:$0xff]
        %v1295 = vld [vmem:[%s792 + $0xf0] sm:$0xff]
        %v1296 = vld [vmem:[%s792 + $0xf8] sm:$0xff]
        %v1297 = vld [vmem:[%s792 + $0x108] sm:$0xff]
        %v1298 = vld [vmem:[%s792 + $0x110] sm:$0xff]
        %v1299 = vld [vmem:[%s792 + $0x120] sm:$0xff]
        %v1300 = vld [vmem:[%s792 + $0x128] sm:$0xff]
        %v1301 = vld [vmem:[%s792 + $0x138] sm:$0xff]
        %v1302 = vld [vmem:[%s792 + $0x140] sm:$0xff]
        %v1303 = vld [vmem:[%s792 + $0x150] sm:$0xff]
        %v1304 = vld [vmem:[%s792 + $0x158] sm:$0xff]
        %v1305 = vld [vmem:[%s792 + $0x168] sm:$0xff]
        %v1306 = vld [vmem:[%s792 + $0x170] sm:$0xff]
        %1339 = vrot.lane.b32.xlu0 %v1275, 12
        %v1340 = vpop.permute.xlu0 %1339
        %1341 = vrot.lane.b32.xlu0 %v1276, 12
        %v1342 = vpop.permute.xlu0 %1341
        %1343 = vrot.lane.b32.xlu0 %v1277, 12
        %v1344 = vpop.permute.xlu0 %1343
        %1345 = vrot.lane.b32.xlu0 %v1278, 12
        %v1346 = vpop.permute.xlu0 %1345
        %1347 = vrot.lane.b32.xlu0 %v1279, 12
        %v1348 = vpop.permute.xlu0 %1347
        %1349 = vrot.lane.b32.xlu0 %v1280, 12
        %v1350 = vpop.permute.xlu0 %1349
        %1351 = vrot.lane.b32.xlu0 %v1281, 12
        %v1352 = vpop.permute.xlu0 %1351
        %1353 = vrot.lane.b32.xlu0 %v1282, 12
        %v1354 = vpop.permute.xlu0 %1353
        %1355 = vrot.lane.b32.xlu0 %v1283, 12
        %v1356 = vpop.permute.xlu0 %1355
        %1357 = vrot.lane.b32.xlu0 %v1284, 12
        %v1358 = vpop.permute.xlu0 %1357
        %1359 = vrot.lane.b32.xlu0 %v1285, 12
        %v1360 = vpop.permute.xlu0 %1359
        %1361 = vrot.lane.b32.xlu0 %v1286, 12
        %v1362 = vpop.permute.xlu0 %1361
        %1363 = vrot.lane.b32.xlu0 %v1287, 12
        %v1364 = vpop.permute.xlu0 %1363
        %1365 = vrot.lane.b32.xlu0 %v1288, 12
        %v1366 = vpop.permute.xlu0 %1365
        %1367 = vrot.lane.b32.xlu0 %v1289, 12
        %v1368 = vpop.permute.xlu0 %1367
        %1369 = vrot.lane.b32.xlu0 %v1290, 12
        %v1370 = vpop.permute.xlu0 %1369
        %1371 = vrot.lane.b32.xlu0 %v1291, 12
        %v1372 = vpop.permute.xlu0 %1371
        %1373 = vrot.lane.b32.xlu0 %v1292, 12
        %v1374 = vpop.permute.xlu0 %1373
        %1375 = vrot.lane.b32.xlu0 %v1293, 12
        %v1376 = vpop.permute.xlu0 %1375
        %1377 = vrot.lane.b32.xlu0 %v1294, 12
        %v1378 = vpop.permute.xlu0 %1377
        %1379 = vrot.lane.b32.xlu0 %v1295, 12
        %v1380 = vpop.permute.xlu0 %1379
        %1381 = vrot.lane.b32.xlu0 %v1296, 12
        %v1382 = vpop.permute.xlu0 %1381
        %1383 = vrot.lane.b32.xlu0 %v1297, 12
        %v1384 = vpop.permute.xlu0 %1383
        %1385 = vrot.lane.b32.xlu0 %v1298, 12
        %v1386 = vpop.permute.xlu0 %1385
        %1387 = vrot.lane.b32.xlu0 %v1299, 12
        %v1388 = vpop.permute.xlu0 %1387
        %1389 = vrot.lane.b32.xlu0 %v1300, 12
        %v1390 = vpop.permute.xlu0 %1389
        %1391 = vrot.lane.b32.xlu0 %v1301, 12
        %v1392 = vpop.permute.xlu0 %1391
        %1393 = vrot.lane.b32.xlu0 %v1302, 12
        %v1394 = vpop.permute.xlu0 %1393
        %1395 = vrot.lane.b32.xlu0 %v1303, 12
        %v1396 = vpop.permute.xlu0 %1395
        %1397 = vrot.lane.b32.xlu0 %v1304, 12
        %v1398 = vpop.permute.xlu0 %1397
        %1399 = vrot.lane.b32.xlu0 %v1305, 12
        %v1400 = vpop.permute.xlu0 %1399
        %1401 = vrot.lane.b32.xlu0 %v1306, 12
        %v1402 = vpop.permute.xlu0 %1401
        %vm1435 = vcmask 130144
        %1436 = vst.msk [vmem:[#allocation3] sm:$0xff] %vm1435, %v1340
        %1437 = vst.msk [vmem:[#allocation3 + $0x8] sm:$0xff] %vm1435, %v1342
        %1438 = vst.msk [vmem:[#allocation3 + $0x10] sm:$0xff] %vm1435, %v1344
        %1439 = vst.msk [vmem:[#allocation3 + $0x18] sm:$0xff] %vm1435, %v1346
        %1440 = vst.msk [vmem:[#allocation3 + $0x20] sm:$0xff] %vm1435, %v1348
        %1441 = vst.msk [vmem:[#allocation3 + $0x28] sm:$0xff] %vm1435, %v1350
        %1442 = vst.msk [vmem:[#allocation3 + $0x30] sm:$0xff] %vm1435, %v1352
        %1443 = vst.msk [vmem:[#allocation3 + $0x38] sm:$0xff] %vm1435, %v1354
        %1444 = vst.msk [vmem:[#allocation3 + $0x40] sm:$0xff] %vm1435, %v1356
        %1445 = vst.msk [vmem:[#allocation3 + $0x48] sm:$0xff] %vm1435, %v1358
        %1446 = vst.msk [vmem:[#allocation3 + $0x50] sm:$0xff] %vm1435, %v1360
        %1447 = vst.msk [vmem:[#allocation3 + $0x58] sm:$0xff] %vm1435, %v1362
        %1448 = vst.msk [vmem:[#allocation3 + $0x60] sm:$0xff] %vm1435, %v1364
        %1449 = vst.msk [vmem:[#allocation3 + $0x68] sm:$0xff] %vm1435, %v1366
        %1450 = vst.msk [vmem:[#allocation3 + $0x70] sm:$0xff] %vm1435, %v1368
        %1451 = vst.msk [vmem:[#allocation3 + $0x78] sm:$0xff] %vm1435, %v1370
        %1452 = vst.msk [vmem:[#allocation3 + $0x80] sm:$0xff] %vm1435, %v1372
        %1453 = vst.msk [vmem:[#allocation3 + $0x88] sm:$0xff] %vm1435, %v1374
        %1454 = vst.msk [vmem:[#allocation3 + $0x90] sm:$0xff] %vm1435, %v1376
        %1455 = vst.msk [vmem:[#allocation3 + $0x98] sm:$0xff] %vm1435, %v1378
        %1456 = vst.msk [vmem:[#allocation3 + $0xa0] sm:$0xff] %vm1435, %v1380
        %1457 = vst.msk [vmem:[#allocation3 + $0xa8] sm:$0xff] %vm1435, %v1382
        %1458 = vst.msk [vmem:[#allocation3 + $0xb0] sm:$0xff] %vm1435, %v1384
        %1459 = vst.msk [vmem:[#allocation3 + $0xb8] sm:$0xff] %vm1435, %v1386
        %1460 = vst.msk [vmem:[#allocation3 + $0xc0] sm:$0xff] %vm1435, %v1388
        %1461 = vst.msk [vmem:[#allocation3 + $0xc8] sm:$0xff] %vm1435, %v1390
        %1462 = vst.msk [vmem:[#allocation3 + $0xd0] sm:$0xff] %vm1435, %v1392
        %1463 = vst.msk [vmem:[#allocation3 + $0xd8] sm:$0xff] %vm1435, %v1394
        %1464 = vst.msk [vmem:[#allocation3 + $0xe0] sm:$0xff] %vm1435, %v1396
        %1465 = vst.msk [vmem:[#allocation3 + $0xe8] sm:$0xff] %vm1435, %v1398
        %1466 = vst.msk [vmem:[#allocation3 + $0xf0] sm:$0xff] %vm1435, %v1400
        %1467 = vst.msk [vmem:[#allocation3 + $0xf8] sm:$0xff] %vm1435, %v1402
        %v1468 = vld [vmem:[%s792 + $0x1] sm:$0xff]
        %v1469 = vld [vmem:[%s792 + $0x9] sm:$0xff]
        %v1470 = vld [vmem:[%s792 + $0x19] sm:$0xff]
        %v1471 = vld [vmem:[%s792 + $0x21] sm:$0xff]
        %v1472 = vld [vmem:[%s792 + $0x31] sm:$0xff]
        %v1473 = vld [vmem:[%s792 + $0x39] sm:$0xff]
        %v1474 = vld [vmem:[%s792 + $0x49] sm:$0xff]
        %v1475 = vld [vmem:[%s792 + $0x51] sm:$0xff]
        %v1476 = vld [vmem:[%s792 + $0x61] sm:$0xff]
        %v1477 = vld [vmem:[%s792 + $0x69] sm:$0xff]
        %v1478 = vld [vmem:[%s792 + $0x79] sm:$0xff]
        %v1479 = vld [vmem:[%s792 + $0x81] sm:$0xff]
        %v1480 = vld [vmem:[%s792 + $0x91] sm:$0xff]
        %v1481 = vld [vmem:[%s792 + $0x99] sm:$0xff]
        %v1482 = vld [vmem:[%s792 + $0xa9] sm:$0xff]
        %v1483 = vld [vmem:[%s792 + $0xb1] sm:$0xff]
        %v1484 = vld [vmem:[%s792 + $0xc1] sm:$0xff]
        %v1485 = vld [vmem:[%s792 + $0xc9] sm:$0xff]
        %v1486 = vld [vmem:[%s792 + $0xd9] sm:$0xff]
        %v1487 = vld [vmem:[%s792 + $0xe1] sm:$0xff]
        %v1488 = vld [vmem:[%s792 + $0xf1] sm:$0xff]
        %v1489 = vld [vmem:[%s792 + $0xf9] sm:$0xff]
        %v1490 = vld [vmem:[%s792 + $0x109] sm:$0xff]
        %v1491 = vld [vmem:[%s792 + $0x111] sm:$0xff]
        %v1492 = vld [vmem:[%s792 + $0x121] sm:$0xff]
        %v1493 = vld [vmem:[%s792 + $0x129] sm:$0xff]
        %v1494 = vld [vmem:[%s792 + $0x139] sm:$0xff]
        %v1495 = vld [vmem:[%s792 + $0x141] sm:$0xff]
        %v1496 = vld [vmem:[%s792 + $0x151] sm:$0xff]
        %v1497 = vld [vmem:[%s792 + $0x159] sm:$0xff]
        %v1498 = vld [vmem:[%s792 + $0x169] sm:$0xff]
        %v1499 = vld [vmem:[%s792 + $0x171] sm:$0xff]
        %1532 = vrot.lane.b32.xlu0 %v1468, 16
        %v1533 = vpop.permute.xlu0 %1532
        %1534 = vrot.lane.b32.xlu0 %v1469, 16
        %v1535 = vpop.permute.xlu0 %1534
        %1536 = vrot.lane.b32.xlu0 %v1470, 16
        %v1537 = vpop.permute.xlu0 %1536
        %1538 = vrot.lane.b32.xlu0 %v1471, 16
        %v1539 = vpop.permute.xlu0 %1538
        %1540 = vrot.lane.b32.xlu0 %v1472, 16
        %v1541 = vpop.permute.xlu0 %1540
        %1542 = vrot.lane.b32.xlu0 %v1473, 16
        %v1543 = vpop.permute.xlu0 %1542
        %1544 = vrot.lane.b32.xlu0 %v1474, 16
        %v1545 = vpop.permute.xlu0 %1544
        %1546 = vrot.lane.b32.xlu0 %v1475, 16
        %v1547 = vpop.permute.xlu0 %1546
        %1548 = vrot.lane.b32.xlu0 %v1476, 16
        %v1549 = vpop.permute.xlu0 %1548
        %1550 = vrot.lane.b32.xlu0 %v1477, 16
        %v1551 = vpop.permute.xlu0 %1550
        %1552 = vrot.lane.b32.xlu0 %v1478, 16
        %v1553 = vpop.permute.xlu0 %1552
        %1554 = vrot.lane.b32.xlu0 %v1479, 16
        %v1555 = vpop.permute.xlu0 %1554
        %1556 = vrot.lane.b32.xlu0 %v1480, 16
        %v1557 = vpop.permute.xlu0 %1556
        %1558 = vrot.lane.b32.xlu0 %v1481, 16
        %v1559 = vpop.permute.xlu0 %1558
        %1560 = vrot.lane.b32.xlu0 %v1482, 16
        %v1561 = vpop.permute.xlu0 %1560
        %1562 = vrot.lane.b32.xlu0 %v1483, 16
        %v1563 = vpop.permute.xlu0 %1562
        %1564 = vrot.lane.b32.xlu0 %v1484, 16
        %v1565 = vpop.permute.xlu0 %1564
        %1566 = vrot.lane.b32.xlu0 %v1485, 16
        %v1567 = vpop.permute.xlu0 %1566
        %1568 = vrot.lane.b32.xlu0 %v1486, 16
        %v1569 = vpop.permute.xlu0 %1568
        %1570 = vrot.lane.b32.xlu0 %v1487, 16
        %v1571 = vpop.permute.xlu0 %1570
        %1572 = vrot.lane.b32.xlu0 %v1488, 16
        %v1573 = vpop.permute.xlu0 %1572
        %1574 = vrot.lane.b32.xlu0 %v1489, 16
        %v1575 = vpop.permute.xlu0 %1574
        %1576 = vrot.lane.b32.xlu0 %v1490, 16
        %v1577 = vpop.permute.xlu0 %1576
        %1578 = vrot.lane.b32.xlu0 %v1491, 16
        %v1579 = vpop.permute.xlu0 %1578
        %1580 = vrot.lane.b32.xlu0 %v1492, 16
        %v1581 = vpop.permute.xlu0 %1580
        %1582 = vrot.lane.b32.xlu0 %v1493, 16
        %v1583 = vpop.permute.xlu0 %1582
        %1584 = vrot.lane.b32.xlu0 %v1494, 16
        %v1585 = vpop.permute.xlu0 %1584
        %1586 = vrot.lane.b32.xlu0 %v1495, 16
        %v1587 = vpop.permute.xlu0 %1586
        %1588 = vrot.lane.b32.xlu0 %v1496, 16
        %v1589 = vpop.permute.xlu0 %1588
        %1590 = vrot.lane.b32.xlu0 %v1497, 16
        %v1591 = vpop.permute.xlu0 %1590
        %1592 = vrot.lane.b32.xlu0 %v1498, 16
        %v1593 = vpop.permute.xlu0 %1592
        %1594 = vrot.lane.b32.xlu0 %v1499, 16
        %v1595 = vpop.permute.xlu0 %1594
        %vm1628 = vcmask 162944
        %1629 = vst.msk [vmem:[#allocation3] sm:$0xff] %vm1628, %v1533
        %1630 = vst.msk [vmem:[#allocation3 + $0x8] sm:$0xff] %vm1628, %v1535
        %1631 = vst.msk [vmem:[#allocation3 + $0x10] sm:$0xff] %vm1628, %v1537
        %1632 = vst.msk [vmem:[#allocation3 + $0x18] sm:$0xff] %vm1628, %v1539
        %1633 = vst.msk [vmem:[#allocation3 + $0x20] sm:$0xff] %vm1628, %v1541
        %1634 = vst.msk [vmem:[#allocation3 + $0x28] sm:$0xff] %vm1628, %v1543
        %1635 = vst.msk [vmem:[#allocation3 + $0x30] sm:$0xff] %vm1628, %v1545
        %1636 = vst.msk [vmem:[#allocation3 + $0x38] sm:$0xff] %vm1628, %v1547
        %1637 = vst.msk [vmem:[#allocation3 + $0x40] sm:$0xff] %vm1628, %v1549
        %1638 = vst.msk [vmem:[#allocation3 + $0x48] sm:$0xff] %vm1628, %v1551
        %1639 = vst.msk [vmem:[#allocation3 + $0x50] sm:$0xff] %vm1628, %v1553
        %1640 = vst.msk [vmem:[#allocation3 + $0x58] sm:$0xff] %vm1628, %v1555
        %1641 = vst.msk [vmem:[#allocation3 + $0x60] sm:$0xff] %vm1628, %v1557
        %1642 = vst.msk [vmem:[#allocation3 + $0x68] sm:$0xff] %vm1628, %v1559
        %1643 = vst.msk [vmem:[#allocation3 + $0x70] sm:$0xff] %vm1628, %v1561
        %1644 = vst.msk [vmem:[#allocation3 + $0x78] sm:$0xff] %vm1628, %v1563
        %1645 = vst.msk [vmem:[#allocation3 + $0x80] sm:$0xff] %vm1628, %v1565
        %1646 = vst.msk [vmem:[#allocation3 + $0x88] sm:$0xff] %vm1628, %v1567
        %1647 = vst.msk [vmem:[#allocation3 + $0x90] sm:$0xff] %vm1628, %v1569
        %1648 = vst.msk [vmem:[#allocation3 + $0x98] sm:$0xff] %vm1628, %v1571
        %1649 = vst.msk [vmem:[#allocation3 + $0xa0] sm:$0xff] %vm1628, %v1573
        %1650 = vst.msk [vmem:[#allocation3 + $0xa8] sm:$0xff] %vm1628, %v1575
        %1651 = vst.msk [vmem:[#allocation3 + $0xb0] sm:$0xff] %vm1628, %v1577
        %1652 = vst.msk [vmem:[#allocation3 + $0xb8] sm:$0xff] %vm1628, %v1579
        %1653 = vst.msk [vmem:[#allocation3 + $0xc0] sm:$0xff] %vm1628, %v1581
        %1654 = vst.msk [vmem:[#allocation3 + $0xc8] sm:$0xff] %vm1628, %v1583
        %1655 = vst.msk [vmem:[#allocation3 + $0xd0] sm:$0xff] %vm1628, %v1585
        %1656 = vst.msk [vmem:[#allocation3 + $0xd8] sm:$0xff] %vm1628, %v1587
        %1657 = vst.msk [vmem:[#allocation3 + $0xe0] sm:$0xff] %vm1628, %v1589
        %1658 = vst.msk [vmem:[#allocation3 + $0xe8] sm:$0xff] %vm1628, %v1591
        %1659 = vst.msk [vmem:[#allocation3 + $0xf0] sm:$0xff] %vm1628, %v1593
        %1660 = vst.msk [vmem:[#allocation3 + $0xf8] sm:$0xff] %vm1628, %v1595
        %v1661 = vld [vmem:[%s792 + $0x2] sm:$0xff]
        %v1662 = vld [vmem:[%s792 + $0xa] sm:$0xff]
        %v1663 = vld [vmem:[%s792 + $0x1a] sm:$0xff]
        %v1664 = vld [vmem:[%s792 + $0x22] sm:$0xff]
        %v1665 = vld [vmem:[%s792 + $0x32] sm:$0xff]
        %v1666 = vld [vmem:[%s792 + $0x3a] sm:$0xff]
        %v1667 = vld [vmem:[%s792 + $0x4a] sm:$0xff]
        %v1668 = vld [vmem:[%s792 + $0x52] sm:$0xff]
        %v1669 = vld [vmem:[%s792 + $0x62] sm:$0xff]
        %v1670 = vld [vmem:[%s792 + $0x6a] sm:$0xff]
        %v1671 = vld [vmem:[%s792 + $0x7a] sm:$0xff]
        %v1672 = vld [vmem:[%s792 + $0x82] sm:$0xff]
        %v1673 = vld [vmem:[%s792 + $0x92] sm:$0xff]
        %v1674 = vld [vmem:[%s792 + $0x9a] sm:$0xff]
        %v1675 = vld [vmem:[%s792 + $0xaa] sm:$0xff]
        %v1676 = vld [vmem:[%s792 + $0xb2] sm:$0xff]
        %v1677 = vld [vmem:[%s792 + $0xc2] sm:$0xff]
        %v1678 = vld [vmem:[%s792 + $0xca] sm:$0xff]
        %v1679 = vld [vmem:[%s792 + $0xda] sm:$0xff]
        %v1680 = vld [vmem:[%s792 + $0xe2] sm:$0xff]
        %v1681 = vld [vmem:[%s792 + $0xf2] sm:$0xff]
        %v1682 = vld [vmem:[%s792 + $0xfa] sm:$0xff]
        %v1683 = vld [vmem:[%s792 + $0x10a] sm:$0xff]
        %v1684 = vld [vmem:[%s792 + $0x112] sm:$0xff]
        %v1685 = vld [vmem:[%s792 + $0x122] sm:$0xff]
        %v1686 = vld [vmem:[%s792 + $0x12a] sm:$0xff]
        %v1687 = vld [vmem:[%s792 + $0x13a] sm:$0xff]
        %v1688 = vld [vmem:[%s792 + $0x142] sm:$0xff]
        %v1689 = vld [vmem:[%s792 + $0x152] sm:$0xff]
        %v1690 = vld [vmem:[%s792 + $0x15a] sm:$0xff]
        %v1691 = vld [vmem:[%s792 + $0x16a] sm:$0xff]
        %v1692 = vld [vmem:[%s792 + $0x172] sm:$0xff]
        %1725 = vrot.lane.b32.xlu0 %v1661, 20
        %v1726 = vpop.permute.xlu0 %1725
        %1727 = vrot.lane.b32.xlu0 %v1662, 20
        %v1728 = vpop.permute.xlu0 %1727
        %1729 = vrot.lane.b32.xlu0 %v1663, 20
        %v1730 = vpop.permute.xlu0 %1729
        %1731 = vrot.lane.b32.xlu0 %v1664, 20
        %v1732 = vpop.permute.xlu0 %1731
        %1733 = vrot.lane.b32.xlu0 %v1665, 20
        %v1734 = vpop.permute.xlu0 %1733
        %1735 = vrot.lane.b32.xlu0 %v1666, 20
        %v1736 = vpop.permute.xlu0 %1735
        %1737 = vrot.lane.b32.xlu0 %v1667, 20
        %v1738 = vpop.permute.xlu0 %1737
        %1739 = vrot.lane.b32.xlu0 %v1668, 20
        %v1740 = vpop.permute.xlu0 %1739
        %1741 = vrot.lane.b32.xlu0 %v1669, 20
        %v1742 = vpop.permute.xlu0 %1741
        %1743 = vrot.lane.b32.xlu0 %v1670, 20
        %v1744 = vpop.permute.xlu0 %1743
        %1745 = vrot.lane.b32.xlu0 %v1671, 20
        %v1746 = vpop.permute.xlu0 %1745
        %1747 = vrot.lane.b32.xlu0 %v1672, 20
        %v1748 = vpop.permute.xlu0 %1747
        %1749 = vrot.lane.b32.xlu0 %v1673, 20
        %v1750 = vpop.permute.xlu0 %1749
        %1751 = vrot.lane.b32.xlu0 %v1674, 20
        %v1752 = vpop.permute.xlu0 %1751
        %1753 = vrot.lane.b32.xlu0 %v1675, 20
        %v1754 = vpop.permute.xlu0 %1753
        %1755 = vrot.lane.b32.xlu0 %v1676, 20
        %v1756 = vpop.permute.xlu0 %1755
        %1757 = vrot.lane.b32.xlu0 %v1677, 20
        %v1758 = vpop.permute.xlu0 %1757
        %1759 = vrot.lane.b32.xlu0 %v1678, 20
        %v1760 = vpop.permute.xlu0 %1759
        %1761 = vrot.lane.b32.xlu0 %v1679, 20
        %v1762 = vpop.permute.xlu0 %1761
        %1763 = vrot.lane.b32.xlu0 %v1680, 20
        %v1764 = vpop.permute.xlu0 %1763
        %1765 = vrot.lane.b32.xlu0 %v1681, 20
        %v1766 = vpop.permute.xlu0 %1765
        %1767 = vrot.lane.b32.xlu0 %v1682, 20
        %v1768 = vpop.permute.xlu0 %1767
        %1769 = vrot.lane.b32.xlu0 %v1683, 20
        %v1770 = vpop.permute.xlu0 %1769
        %1771 = vrot.lane.b32.xlu0 %v1684, 20
        %v1772 = vpop.permute.xlu0 %1771
        %1773 = vrot.lane.b32.xlu0 %v1685, 20
        %v1774 = vpop.permute.xlu0 %1773
        %1775 = vrot.lane.b32.xlu0 %v1686, 20
        %v1776 = vpop.permute.xlu0 %1775
        %1777 = vrot.lane.b32.xlu0 %v1687, 20
        %v1778 = vpop.permute.xlu0 %1777
        %1779 = vrot.lane.b32.xlu0 %v1688, 20
        %v1780 = vpop.permute.xlu0 %1779
        %1781 = vrot.lane.b32.xlu0 %v1689, 20
        %v1782 = vpop.permute.xlu0 %1781
        %1783 = vrot.lane.b32.xlu0 %v1690, 20
        %v1784 = vpop.permute.xlu0 %1783
        %1785 = vrot.lane.b32.xlu0 %v1691, 20
        %v1786 = vpop.permute.xlu0 %1785
        %1787 = vrot.lane.b32.xlu0 %v1692, 20
        %v1788 = vpop.permute.xlu0 %1787
        %vm1821 = vcmask 195744
        %1822 = vst.msk [vmem:[#allocation3] sm:$0xff] %vm1821, %v1726
        %1823 = vst.msk [vmem:[#allocation3 + $0x8] sm:$0xff] %vm1821, %v1728
        %1824 = vst.msk [vmem:[#allocation3 + $0x10] sm:$0xff] %vm1821, %v1730
        %1825 = vst.msk [vmem:[#allocation3 + $0x18] sm:$0xff] %vm1821, %v1732
        %1826 = vst.msk [vmem:[#allocation3 + $0x20] sm:$0xff] %vm1821, %v1734
        %1827 = vst.msk [vmem:[#allocation3 + $0x28] sm:$0xff] %vm1821, %v1736
        %1828 = vst.msk [vmem:[#allocation3 + $0x30] sm:$0xff] %vm1821, %v1738
        %1829 = vst.msk [vmem:[#allocation3 + $0x38] sm:$0xff] %vm1821, %v1740
        %1830 = vst.msk [vmem:[#allocation3 + $0x40] sm:$0xff] %vm1821, %v1742
        %1831 = vst.msk [vmem:[#allocation3 + $0x48] sm:$0xff] %vm1821, %v1744
        %1832 = vst.msk [vmem:[#allocation3 + $0x50] sm:$0xff] %vm1821, %v1746
        %1833 = vst.msk [vmem:[#allocation3 + $0x58] sm:$0xff] %vm1821, %v1748
        %1834 = vst.msk [vmem:[#allocation3 + $0x60] sm:$0xff] %vm1821, %v1750
        %1835 = vst.msk [vmem:[#allocation3 + $0x68] sm:$0xff] %vm1821, %v1752
        %1836 = vst.msk [vmem:[#allocation3 + $0x70] sm:$0xff] %vm1821, %v1754
        %1837 = vst.msk [vmem:[#allocation3 + $0x78] sm:$0xff] %vm1821, %v1756
        %1838 = vst.msk [vmem:[#allocation3 + $0x80] sm:$0xff] %vm1821, %v1758
        %1839 = vst.msk [vmem:[#allocation3 + $0x88] sm:$0xff] %vm1821, %v1760
        %1840 = vst.msk [vmem:[#allocation3 + $0x90] sm:$0xff] %vm1821, %v1762
        %1841 = vst.msk [vmem:[#allocation3 + $0x98] sm:$0xff] %vm1821, %v1764
        %1842 = vst.msk [vmem:[#allocation3 + $0xa0] sm:$0xff] %vm1821, %v1766
        %1843 = vst.msk [vmem:[#allocation3 + $0xa8] sm:$0xff] %vm1821, %v1768
        %1844 = vst.msk [vmem:[#allocation3 + $0xb0] sm:$0xff] %vm1821, %v1770
        %1845 = vst.msk [vmem:[#allocation3 + $0xb8] sm:$0xff] %vm1821, %v1772
        %1846 = vst.msk [vmem:[#allocation3 + $0xc0] sm:$0xff] %vm1821, %v1774
        %1847 = vst.msk [vmem:[#allocation3 + $0xc8] sm:$0xff] %vm1821, %v1776
        %1848 = vst.msk [vmem:[#allocation3 + $0xd0] sm:$0xff] %vm1821, %v1778
        %1849 = vst.msk [vmem:[#allocation3 + $0xd8] sm:$0xff] %vm1821, %v1780
        %1850 = vst.msk [vmem:[#allocation3 + $0xe0] sm:$0xff] %vm1821, %v1782
        %1851 = vst.msk [vmem:[#allocation3 + $0xe8] sm:$0xff] %vm1821, %v1784
        %1852 = vst.msk [vmem:[#allocation3 + $0xf0] sm:$0xff] %vm1821, %v1786
        %1853 = vst.msk [vmem:[#allocation3 + $0xf8] sm:$0xff] %vm1821, %v1788
        %s1854 = scalar_lea.vmem [#allocation2], 48
        %v1855 = vld [vmem:[%s1854] sm:$0xff]
        %v1856 = vld [vmem:[%s1854 + $0x8] sm:$0xff]
        %v1857 = vld [vmem:[%s1854 + $0x18] sm:$0xff]
        %v1858 = vld [vmem:[%s1854 + $0x20] sm:$0xff]
        %v1859 = vld [vmem:[%s1854 + $0x30] sm:$0xff]
        %v1860 = vld [vmem:[%s1854 + $0x38] sm:$0xff]
        %v1861 = vld [vmem:[%s1854 + $0x48] sm:$0xff]
        %v1862 = vld [vmem:[%s1854 + $0x50] sm:$0xff]
        %v1863 = vld [vmem:[%s1854 + $0x60] sm:$0xff]
        %v1864 = vld [vmem:[%s1854 + $0x68] sm:$0xff]
        %v1865 = vld [vmem:[%s1854 + $0x78] sm:$0xff]
        %v1866 = vld [vmem:[%s1854 + $0x80] sm:$0xff]
        %v1867 = vld [vmem:[%s1854 + $0x90] sm:$0xff]
        %v1868 = vld [vmem:[%s1854 + $0x98] sm:$0xff]
        %v1869 = vld [vmem:[%s1854 + $0xa8] sm:$0xff]
        %v1870 = vld [vmem:[%s1854 + $0xb0] sm:$0xff]
        %v1871 = vld [vmem:[%s1854 + $0xc0] sm:$0xff]
        %v1872 = vld [vmem:[%s1854 + $0xc8] sm:$0xff]
        %v1873 = vld [vmem:[%s1854 + $0xd8] sm:$0xff]
        %v1874 = vld [vmem:[%s1854 + $0xe0] sm:$0xff]
        %v1875 = vld [vmem:[%s1854 + $0xf0] sm:$0xff]
        %v1876 = vld [vmem:[%s1854 + $0xf8] sm:$0xff]
        %v1877 = vld [vmem:[%s1854 + $0x108] sm:$0xff]
        %v1878 = vld [vmem:[%s1854 + $0x110] sm:$0xff]
        %v1879 = vld [vmem:[%s1854 + $0x120] sm:$0xff]
        %v1880 = vld [vmem:[%s1854 + $0x128] sm:$0xff]
        %v1881 = vld [vmem:[%s1854 + $0x138] sm:$0xff]
        %v1882 = vld [vmem:[%s1854 + $0x140] sm:$0xff]
        %v1883 = vld [vmem:[%s1854 + $0x150] sm:$0xff]
        %v1884 = vld [vmem:[%s1854 + $0x158] sm:$0xff]
        %v1885 = vld [vmem:[%s1854 + $0x168] sm:$0xff]
        %v1886 = vld [vmem:[%s1854 + $0x170] sm:$0xff]
        %1919 = vrot.lane.b32.xlu0 %v1855, 24
        %v1920 = vpop.permute.xlu0 %1919
        %1921 = vrot.lane.b32.xlu0 %v1856, 24
        %v1922 = vpop.permute.xlu0 %1921
        %1923 = vrot.lane.b32.xlu0 %v1857, 24
        %v1924 = vpop.permute.xlu0 %1923
        %1925 = vrot.lane.b32.xlu0 %v1858, 24
        %v1926 = vpop.permute.xlu0 %1925
        %1927 = vrot.lane.b32.xlu0 %v1859, 24
        %v1928 = vpop.permute.xlu0 %1927
        %1929 = vrot.lane.b32.xlu0 %v1860, 24
        %v1930 = vpop.permute.xlu0 %1929
        %1931 = vrot.lane.b32.xlu0 %v1861, 24
        %v1932 = vpop.permute.xlu0 %1931
        %1933 = vrot.lane.b32.xlu0 %v1862, 24
        %v1934 = vpop.permute.xlu0 %1933
        %1935 = vrot.lane.b32.xlu0 %v1863, 24
        %v1936 = vpop.permute.xlu0 %1935
        %1937 = vrot.lane.b32.xlu0 %v1864, 24
        %v1938 = vpop.permute.xlu0 %1937
        %1939 = vrot.lane.b32.xlu0 %v1865, 24
        %v1940 = vpop.permute.xlu0 %1939
        %1941 = vrot.lane.b32.xlu0 %v1866, 24
        %v1942 = vpop.permute.xlu0 %1941
        %1943 = vrot.lane.b32.xlu0 %v1867, 24
        %v1944 = vpop.permute.xlu0 %1943
        %1945 = vrot.lane.b32.xlu0 %v1868, 24
        %v1946 = vpop.permute.xlu0 %1945
        %1947 = vrot.lane.b32.xlu0 %v1869, 24
        %v1948 = vpop.permute.xlu0 %1947
        %1949 = vrot.lane.b32.xlu0 %v1870, 24
        %v1950 = vpop.permute.xlu0 %1949
        %1951 = vrot.lane.b32.xlu0 %v1871, 24
        %v1952 = vpop.permute.xlu0 %1951
        %1953 = vrot.lane.b32.xlu0 %v1872, 24
        %v1954 = vpop.permute.xlu0 %1953
        %1955 = vrot.lane.b32.xlu0 %v1873, 24
        %v1956 = vpop.permute.xlu0 %1955
        %1957 = vrot.lane.b32.xlu0 %v1874, 24
        %v1958 = vpop.permute.xlu0 %1957
        %1959 = vrot.lane.b32.xlu0 %v1875, 24
        %v1960 = vpop.permute.xlu0 %1959
        %1961 = vrot.lane.b32.xlu0 %v1876, 24
        %v1962 = vpop.permute.xlu0 %1961
        %1963 = vrot.lane.b32.xlu0 %v1877, 24
        %v1964 = vpop.permute.xlu0 %1963
        %1965 = vrot.lane.b32.xlu0 %v1878, 24
        %v1966 = vpop.permute.xlu0 %1965
        %1967 = vrot.lane.b32.xlu0 %v1879, 24
        %v1968 = vpop.permute.xlu0 %1967
        %1969 = vrot.lane.b32.xlu0 %v1880, 24
        %v1970 = vpop.permute.xlu0 %1969
        %1971 = vrot.lane.b32.xlu0 %v1881, 24
        %v1972 = vpop.permute.xlu0 %1971
        %1973 = vrot.lane.b32.xlu0 %v1882, 24
        %v1974 = vpop.permute.xlu0 %1973
        %1975 = vrot.lane.b32.xlu0 %v1883, 24
        %v1976 = vpop.permute.xlu0 %1975
        %1977 = vrot.lane.b32.xlu0 %v1884, 24
        %v1978 = vpop.permute.xlu0 %1977
        %1979 = vrot.lane.b32.xlu0 %v1885, 24
        %v1980 = vpop.permute.xlu0 %1979
        %1981 = vrot.lane.b32.xlu0 %v1886, 24
        %v1982 = vpop.permute.xlu0 %1981
        %vm2015 = vcmask 228544
        %2016 = vst.msk [vmem:[#allocation3] sm:$0xff] %vm2015, %v1920
        %2017 = vst.msk [vmem:[#allocation3 + $0x8] sm:$0xff] %vm2015, %v1922
        %2018 = vst.msk [vmem:[#allocation3 + $0x10] sm:$0xff] %vm2015, %v1924
        %2019 = vst.msk [vmem:[#allocation3 + $0x18] sm:$0xff] %vm2015, %v1926
        %2020 = vst.msk [vmem:[#allocation3 + $0x20] sm:$0xff] %vm2015, %v1928
        %2021 = vst.msk [vmem:[#allocation3 + $0x28] sm:$0xff] %vm2015, %v1930
        %2022 = vst.msk [vmem:[#allocation3 + $0x30] sm:$0xff] %vm2015, %v1932
        %2023 = vst.msk [vmem:[#allocation3 + $0x38] sm:$0xff] %vm2015, %v1934
        %2024 = vst.msk [vmem:[#allocation3 + $0x40] sm:$0xff] %vm2015, %v1936
        %2025 = vst.msk [vmem:[#allocation3 + $0x48] sm:$0xff] %vm2015, %v1938
        %2026 = vst.msk [vmem:[#allocation3 + $0x50] sm:$0xff] %vm2015, %v1940
        %2027 = vst.msk [vmem:[#allocation3 + $0x58] sm:$0xff] %vm2015, %v1942
        %2028 = vst.msk [vmem:[#allocation3 + $0x60] sm:$0xff] %vm2015, %v1944
        %2029 = vst.msk [vmem:[#allocation3 + $0x68] sm:$0xff] %vm2015, %v1946
        %2030 = vst.msk [vmem:[#allocation3 + $0x70] sm:$0xff] %vm2015, %v1948
        %2031 = vst.msk [vmem:[#allocation3 + $0x78] sm:$0xff] %vm2015, %v1950
        %2032 = vst.msk [vmem:[#allocation3 + $0x80] sm:$0xff] %vm2015, %v1952
        %2033 = vst.msk [vmem:[#allocation3 + $0x88] sm:$0xff] %vm2015, %v1954
        %2034 = vst.msk [vmem:[#allocation3 + $0x90] sm:$0xff] %vm2015, %v1956
        %2035 = vst.msk [vmem:[#allocation3 + $0x98] sm:$0xff] %vm2015, %v1958
        %2036 = vst.msk [vmem:[#allocation3 + $0xa0] sm:$0xff] %vm2015, %v1960
        %2037 = vst.msk [vmem:[#allocation3 + $0xa8] sm:$0xff] %vm2015, %v1962
        %2038 = vst.msk [vmem:[#allocation3 + $0xb0] sm:$0xff] %vm2015, %v1964
        %2039 = vst.msk [vmem:[#allocation3 + $0xb8] sm:$0xff] %vm2015, %v1966
        %2040 = vst.msk [vmem:[#allocation3 + $0xc0] sm:$0xff] %vm2015, %v1968
        %2041 = vst.msk [vmem:[#allocation3 + $0xc8] sm:$0xff] %vm2015, %v1970
        %2042 = vst.msk [vmem:[#allocation3 + $0xd0] sm:$0xff] %vm2015, %v1972
        %2043 = vst.msk [vmem:[#allocation3 + $0xd8] sm:$0xff] %vm2015, %v1974
        %2044 = vst.msk [vmem:[#allocation3 + $0xe0] sm:$0xff] %vm2015, %v1976
        %2045 = vst.msk [vmem:[#allocation3 + $0xe8] sm:$0xff] %vm2015, %v1978
        %2046 = vst.msk [vmem:[#allocation3 + $0xf0] sm:$0xff] %vm2015, %v1980
        %2047 = vst.msk [vmem:[#allocation3 + $0xf8] sm:$0xff] %vm2015, %v1982
        %v2048 = vld [vmem:[%s1854 + $0x1] sm:$0xff]
        %v2049 = vld [vmem:[%s1854 + $0x9] sm:$0xff]
        %v2050 = vld [vmem:[%s1854 + $0x19] sm:$0xff]
        %v2051 = vld [vmem:[%s1854 + $0x21] sm:$0xff]
        %v2052 = vld [vmem:[%s1854 + $0x31] sm:$0xff]
        %v2053 = vld [vmem:[%s1854 + $0x39] sm:$0xff]
        %v2054 = vld [vmem:[%s1854 + $0x49] sm:$0xff]
        %v2055 = vld [vmem:[%s1854 + $0x51] sm:$0xff]
        %v2056 = vld [vmem:[%s1854 + $0x61] sm:$0xff]
        %v2057 = vld [vmem:[%s1854 + $0x69] sm:$0xff]
        %v2058 = vld [vmem:[%s1854 + $0x79] sm:$0xff]
        %v2059 = vld [vmem:[%s1854 + $0x81] sm:$0xff]
        %v2060 = vld [vmem:[%s1854 + $0x91] sm:$0xff]
        %v2061 = vld [vmem:[%s1854 + $0x99] sm:$0xff]
        %v2062 = vld [vmem:[%s1854 + $0xa9] sm:$0xff]
        %v2063 = vld [vmem:[%s1854 + $0xb1] sm:$0xff]
        %v2064 = vld [vmem:[%s1854 + $0xc1] sm:$0xff]
        %v2065 = vld [vmem:[%s1854 + $0xc9] sm:$0xff]
        %v2066 = vld [vmem:[%s1854 + $0xd9] sm:$0xff]
        %v2067 = vld [vmem:[%s1854 + $0xe1] sm:$0xff]
        %v2068 = vld [vmem:[%s1854 + $0xf1] sm:$0xff]
        %v2069 = vld [vmem:[%s1854 + $0xf9] sm:$0xff]
        %v2070 = vld [vmem:[%s1854 + $0x109] sm:$0xff]
        %v2071 = vld [vmem:[%s1854 + $0x111] sm:$0xff]
        %v2072 = vld [vmem:[%s1854 + $0x121] sm:$0xff]
        %v2073 = vld [vmem:[%s1854 + $0x129] sm:$0xff]
        %v2074 = vld [vmem:[%s1854 + $0x139] sm:$0xff]
        %v2075 = vld [vmem:[%s1854 + $0x141] sm:$0xff]
        %v2076 = vld [vmem:[%s1854 + $0x151] sm:$0xff]
        %v2077 = vld [vmem:[%s1854 + $0x159] sm:$0xff]
        %v2078 = vld [vmem:[%s1854 + $0x169] sm:$0xff]
        %v2079 = vld [vmem:[%s1854 + $0x171] sm:$0xff]
        %2112 = vrot.lane.b32.xlu0 %v2048, 28
        %v2113 = vpop.permute.xlu0 %2112
        %2114 = vrot.lane.b32.xlu0 %v2049, 28
        %v2115 = vpop.permute.xlu0 %2114
        %2116 = vrot.lane.b32.xlu0 %v2050, 28
        %v2117 = vpop.permute.xlu0 %2116
        %2118 = vrot.lane.b32.xlu0 %v2051, 28
        %v2119 = vpop.permute.xlu0 %2118
        %2120 = vrot.lane.b32.xlu0 %v2052, 28
        %v2121 = vpop.permute.xlu0 %2120
        %2122 = vrot.lane.b32.xlu0 %v2053, 28
        %v2123 = vpop.permute.xlu0 %2122
        %2124 = vrot.lane.b32.xlu0 %v2054, 28
        %v2125 = vpop.permute.xlu0 %2124
        %2126 = vrot.lane.b32.xlu0 %v2055, 28
        %v2127 = vpop.permute.xlu0 %2126
        %2128 = vrot.lane.b32.xlu0 %v2056, 28
        %v2129 = vpop.permute.xlu0 %2128
        %2130 = vrot.lane.b32.xlu0 %v2057, 28
        %v2131 = vpop.permute.xlu0 %2130
        %2132 = vrot.lane.b32.xlu0 %v2058, 28
        %v2133 = vpop.permute.xlu0 %2132
        %2134 = vrot.lane.b32.xlu0 %v2059, 28
        %v2135 = vpop.permute.xlu0 %2134
        %2136 = vrot.lane.b32.xlu0 %v2060, 28
        %v2137 = vpop.permute.xlu0 %2136
        %2138 = vrot.lane.b32.xlu0 %v2061, 28
        %v2139 = vpop.permute.xlu0 %2138
        %2140 = vrot.lane.b32.xlu0 %v2062, 28
        %v2141 = vpop.permute.xlu0 %2140
        %2142 = vrot.lane.b32.xlu0 %v2063, 28
        %v2143 = vpop.permute.xlu0 %2142
        %2144 = vrot.lane.b32.xlu0 %v2064, 28
        %v2145 = vpop.permute.xlu0 %2144
        %2146 = vrot.lane.b32.xlu0 %v2065, 28
        %v2147 = vpop.permute.xlu0 %2146
        %2148 = vrot.lane.b32.xlu0 %v2066, 28
        %v2149 = vpop.permute.xlu0 %2148
        %2150 = vrot.lane.b32.xlu0 %v2067, 28
        %v2151 = vpop.permute.xlu0 %2150
        %2152 = vrot.lane.b32.xlu0 %v2068, 28
        %v2153 = vpop.permute.xlu0 %2152
        %2154 = vrot.lane.b32.xlu0 %v2069, 28
        %v2155 = vpop.permute.xlu0 %2154
        %2156 = vrot.lane.b32.xlu0 %v2070, 28
        %v2157 = vpop.permute.xlu0 %2156
        %2158 = vrot.lane.b32.xlu0 %v2071, 28
        %v2159 = vpop.permute.xlu0 %2158
        %2160 = vrot.lane.b32.xlu0 %v2072, 28
        %v2161 = vpop.permute.xlu0 %2160
        %2162 = vrot.lane.b32.xlu0 %v2073, 28
        %v2163 = vpop.permute.xlu0 %2162
        %2164 = vrot.lane.b32.xlu0 %v2074, 28
        %v2165 = vpop.permute.xlu0 %2164
        %2166 = vrot.lane.b32.xlu0 %v2075, 28
        %v2167 = vpop.permute.xlu0 %2166
        %2168 = vrot.lane.b32.xlu0 %v2076, 28
        %v2169 = vpop.permute.xlu0 %2168
        %2170 = vrot.lane.b32.xlu0 %v2077, 28
        %v2171 = vpop.permute.xlu0 %2170
        %2172 = vrot.lane.b32.xlu0 %v2078, 28
        %v2173 = vpop.permute.xlu0 %2172
        %2174 = vrot.lane.b32.xlu0 %v2079, 28
        %v2175 = vpop.permute.xlu0 %2174
        %vm2208 = vcmask 261344
        %2209 = vst.msk [vmem:[#allocation3] sm:$0xff] %vm2208, %v2113
        %2210 = vst.msk [vmem:[#allocation3 + $0x8] sm:$0xff] %vm2208, %v2115
        %2211 = vst.msk [vmem:[#allocation3 + $0x10] sm:$0xff] %vm2208, %v2117
        %2212 = vst.msk [vmem:[#allocation3 + $0x18] sm:$0xff] %vm2208, %v2119
        %2213 = vst.msk [vmem:[#allocation3 + $0x20] sm:$0xff] %vm2208, %v2121
        %2214 = vst.msk [vmem:[#allocation3 + $0x28] sm:$0xff] %vm2208, %v2123
        %2215 = vst.msk [vmem:[#allocation3 + $0x30] sm:$0xff] %vm2208, %v2125
        %2216 = vst.msk [vmem:[#allocation3 + $0x38] sm:$0xff] %vm2208, %v2127
        %2217 = vst.msk [vmem:[#allocation3 + $0x40] sm:$0xff] %vm2208, %v2129
        %2218 = vst.msk [vmem:[#allocation3 + $0x48] sm:$0xff] %vm2208, %v2131
        %2219 = vst.msk [vmem:[#allocation3 + $0x50] sm:$0xff] %vm2208, %v2133
        %2220 = vst.msk [vmem:[#allocation3 + $0x58] sm:$0xff] %vm2208, %v2135
        %2221 = vst.msk [vmem:[#allocation3 + $0x60] sm:$0xff] %vm2208, %v2137
        %2222 = vst.msk [vmem:[#allocation3 + $0x68] sm:$0xff] %vm2208, %v2139
        %2223 = vst.msk [vmem:[#allocation3 + $0x70] sm:$0xff] %vm2208, %v2141
        %2224 = vst.msk [vmem:[#allocation3 + $0x78] sm:$0xff] %vm2208, %v2143
        %2225 = vst.msk [vmem:[#allocation3 + $0x80] sm:$0xff] %vm2208, %v2145
        %2226 = vst.msk [vmem:[#allocation3 + $0x88] sm:$0xff] %vm2208, %v2147
        %2227 = vst.msk [vmem:[#allocation3 + $0x90] sm:$0xff] %vm2208, %v2149
        %2228 = vst.msk [vmem:[#allocation3 + $0x98] sm:$0xff] %vm2208, %v2151
        %2229 = vst.msk [vmem:[#allocation3 + $0xa0] sm:$0xff] %vm2208, %v2153
        %2230 = vst.msk [vmem:[#allocation3 + $0xa8] sm:$0xff] %vm2208, %v2155
        %2231 = vst.msk [vmem:[#allocation3 + $0xb0] sm:$0xff] %vm2208, %v2157
        %2232 = vst.msk [vmem:[#allocation3 + $0xb8] sm:$0xff] %vm2208, %v2159
        %2233 = vst.msk [vmem:[#allocation3 + $0xc0] sm:$0xff] %vm2208, %v2161
        %2234 = vst.msk [vmem:[#allocation3 + $0xc8] sm:$0xff] %vm2208, %v2163
        %2235 = vst.msk [vmem:[#allocation3 + $0xd0] sm:$0xff] %vm2208, %v2165
        %2236 = vst.msk [vmem:[#allocation3 + $0xd8] sm:$0xff] %vm2208, %v2167
        %2237 = vst.msk [vmem:[#allocation3 + $0xe0] sm:$0xff] %vm2208, %v2169
        %2238 = vst.msk [vmem:[#allocation3 + $0xe8] sm:$0xff] %vm2208, %v2171
        %2239 = vst.msk [vmem:[#allocation3 + $0xf0] sm:$0xff] %vm2208, %v2173
        %2240 = vst.msk [vmem:[#allocation3 + $0xf8] sm:$0xff] %vm2208, %v2175
        %v2241 = vld [vmem:[%s1854 + $0x2] sm:$0xff]
        %v2242 = vld [vmem:[%s1854 + $0xa] sm:$0xff]
        %v2243 = vld [vmem:[%s1854 + $0x1a] sm:$0xff]
        %v2244 = vld [vmem:[%s1854 + $0x22] sm:$0xff]
        %v2245 = vld [vmem:[%s1854 + $0x32] sm:$0xff]
        %v2246 = vld [vmem:[%s1854 + $0x3a] sm:$0xff]
        %v2247 = vld [vmem:[%s1854 + $0x4a] sm:$0xff]
        %v2248 = vld [vmem:[%s1854 + $0x52] sm:$0xff]
        %v2249 = vld [vmem:[%s1854 + $0x62] sm:$0xff]
        %v2250 = vld [vmem:[%s1854 + $0x6a] sm:$0xff]
        %v2251 = vld [vmem:[%s1854 + $0x7a] sm:$0xff]
        %v2252 = vld [vmem:[%s1854 + $0x82] sm:$0xff]
        %v2253 = vld [vmem:[%s1854 + $0x92] sm:$0xff]
        %v2254 = vld [vmem:[%s1854 + $0x9a] sm:$0xff]
        %v2255 = vld [vmem:[%s1854 + $0xaa] sm:$0xff]
        %v2256 = vld [vmem:[%s1854 + $0xb2] sm:$0xff]
        %v2257 = vld [vmem:[%s1854 + $0xc2] sm:$0xff]
        %v2258 = vld [vmem:[%s1854 + $0xca] sm:$0xff]
        %v2259 = vld [vmem:[%s1854 + $0xda] sm:$0xff]
        %v2260 = vld [vmem:[%s1854 + $0xe2] sm:$0xff]
        %v2261 = vld [vmem:[%s1854 + $0xf2] sm:$0xff]
        %v2262 = vld [vmem:[%s1854 + $0xfa] sm:$0xff]
        %v2263 = vld [vmem:[%s1854 + $0x10a] sm:$0xff]
        %v2264 = vld [vmem:[%s1854 + $0x112] sm:$0xff]
        %v2265 = vld [vmem:[%s1854 + $0x122] sm:$0xff]
        %v2266 = vld [vmem:[%s1854 + $0x12a] sm:$0xff]
        %v2267 = vld [vmem:[%s1854 + $0x13a] sm:$0xff]
        %v2268 = vld [vmem:[%s1854 + $0x142] sm:$0xff]
        %v2269 = vld [vmem:[%s1854 + $0x152] sm:$0xff]
        %v2270 = vld [vmem:[%s1854 + $0x15a] sm:$0xff]
        %v2271 = vld [vmem:[%s1854 + $0x16a] sm:$0xff]
        %v2272 = vld [vmem:[%s1854 + $0x172] sm:$0xff]
        %2305 = vrot.lane.b32.xlu0 %v2241, 32
        %v2306 = vpop.permute.xlu0 %2305
        %2307 = vrot.lane.b32.xlu0 %v2242, 32
        %v2308 = vpop.permute.xlu0 %2307
        %2309 = vrot.lane.b32.xlu0 %v2243, 32
        %v2310 = vpop.permute.xlu0 %2309
        %2311 = vrot.lane.b32.xlu0 %v2244, 32
        %v2312 = vpop.permute.xlu0 %2311
        %2313 = vrot.lane.b32.xlu0 %v2245, 32
        %v2314 = vpop.permute.xlu0 %2313
        %2315 = vrot.lane.b32.xlu0 %v2246, 32
        %v2316 = vpop.permute.xlu0 %2315
        %2317 = vrot.lane.b32.xlu0 %v2247, 32
        %v2318 = vpop.permute.xlu0 %2317
        %2319 = vrot.lane.b32.xlu0 %v2248, 32
        %v2320 = vpop.permute.xlu0 %2319
        %2321 = vrot.lane.b32.xlu0 %v2249, 32
        %v2322 = vpop.permute.xlu0 %2321
        %2323 = vrot.lane.b32.xlu0 %v2250, 32
        %v2324 = vpop.permute.xlu0 %2323
        %2325 = vrot.lane.b32.xlu0 %v2251, 32
        %v2326 = vpop.permute.xlu0 %2325
        %2327 = vrot.lane.b32.xlu0 %v2252, 32
        %v2328 = vpop.permute.xlu0 %2327
        %2329 = vrot.lane.b32.xlu0 %v2253, 32
        %v2330 = vpop.permute.xlu0 %2329
        %2331 = vrot.lane.b32.xlu0 %v2254, 32
        %v2332 = vpop.permute.xlu0 %2331
        %2333 = vrot.lane.b32.xlu0 %v2255, 32
        %v2334 = vpop.permute.xlu0 %2333
        %2335 = vrot.lane.b32.xlu0 %v2256, 32
        %v2336 = vpop.permute.xlu0 %2335
        %2337 = vrot.lane.b32.xlu0 %v2257, 32
        %v2338 = vpop.permute.xlu0 %2337
        %2339 = vrot.lane.b32.xlu0 %v2258, 32
        %v2340 = vpop.permute.xlu0 %2339
        %2341 = vrot.lane.b32.xlu0 %v2259, 32
        %v2342 = vpop.permute.xlu0 %2341
        %2343 = vrot.lane.b32.xlu0 %v2260, 32
        %v2344 = vpop.permute.xlu0 %2343
        %2345 = vrot.lane.b32.xlu0 %v2261, 32
        %v2346 = vpop.permute.xlu0 %2345
        %2347 = vrot.lane.b32.xlu0 %v2262, 32
        %v2348 = vpop.permute.xlu0 %2347
        %2349 = vrot.lane.b32.xlu0 %v2263, 32
        %v2350 = vpop.permute.xlu0 %2349
        %2351 = vrot.lane.b32.xlu0 %v2264, 32
        %v2352 = vpop.permute.xlu0 %2351
        %2353 = vrot.lane.b32.xlu0 %v2265, 32
        %v2354 = vpop.permute.xlu0 %2353
        %2355 = vrot.lane.b32.xlu0 %v2266, 32
        %v2356 = vpop.permute.xlu0 %2355
        %2357 = vrot.lane.b32.xlu0 %v2267, 32
        %v2358 = vpop.permute.xlu0 %2357
        %2359 = vrot.lane.b32.xlu0 %v2268, 32
        %v2360 = vpop.permute.xlu0 %2359
        %2361 = vrot.lane.b32.xlu0 %v2269, 32
        %v2362 = vpop.permute.xlu0 %2361
        %2363 = vrot.lane.b32.xlu0 %v2270, 32
        %v2364 = vpop.permute.xlu0 %2363
        %2365 = vrot.lane.b32.xlu0 %v2271, 32
        %v2366 = vpop.permute.xlu0 %2365
        %2367 = vrot.lane.b32.xlu0 %v2272, 32
        %v2368 = vpop.permute.xlu0 %2367
        %vm2401 = vcmask 294144
        %2402 = vst.msk [vmem:[#allocation3] sm:$0xff] %vm2401, %v2306
        %2403 = vst.msk [vmem:[#allocation3 + $0x8] sm:$0xff] %vm2401, %v2308
        %2404 = vst.msk [vmem:[#allocation3 + $0x10] sm:$0xff] %vm2401, %v2310
        %2405 = vst.msk [vmem:[#allocation3 + $0x18] sm:$0xff] %vm2401, %v2312
        %2406 = vst.msk [vmem:[#allocation3 + $0x20] sm:$0xff] %vm2401, %v2314
        %2407 = vst.msk [vmem:[#allocation3 + $0x28] sm:$0xff] %vm2401, %v2316
        %2408 = vst.msk [vmem:[#allocation3 + $0x30] sm:$0xff] %vm2401, %v2318
        %2409 = vst.msk [vmem:[#allocation3 + $0x38] sm:$0xff] %vm2401, %v2320
        %2410 = vst.msk [vmem:[#allocation3 + $0x40] sm:$0xff] %vm2401, %v2322
        %2411 = vst.msk [vmem:[#allocation3 + $0x48] sm:$0xff] %vm2401, %v2324
        %2412 = vst.msk [vmem:[#allocation3 + $0x50] sm:$0xff] %vm2401, %v2326
        %2413 = vst.msk [vmem:[#allocation3 + $0x58] sm:$0xff] %vm2401, %v2328
        %2414 = vst.msk [vmem:[#allocation3 + $0x60] sm:$0xff] %vm2401, %v2330
        %2415 = vst.msk [vmem:[#allocation3 + $0x68] sm:$0xff] %vm2401, %v2332
        %2416 = vst.msk [vmem:[#allocation3 + $0x70] sm:$0xff] %vm2401, %v2334
        %2417 = vst.msk [vmem:[#allocation3 + $0x78] sm:$0xff] %vm2401, %v2336
        %2418 = vst.msk [vmem:[#allocation3 + $0x80] sm:$0xff] %vm2401, %v2338
        %2419 = vst.msk [vmem:[#allocation3 + $0x88] sm:$0xff] %vm2401, %v2340
        %2420 = vst.msk [vmem:[#allocation3 + $0x90] sm:$0xff] %vm2401, %v2342
        %2421 = vst.msk [vmem:[#allocation3 + $0x98] sm:$0xff] %vm2401, %v2344
        %2422 = vst.msk [vmem:[#allocation3 + $0xa0] sm:$0xff] %vm2401, %v2346
        %2423 = vst.msk [vmem:[#allocation3 + $0xa8] sm:$0xff] %vm2401, %v2348
        %2424 = vst.msk [vmem:[#allocation3 + $0xb0] sm:$0xff] %vm2401, %v2350
        %2425 = vst.msk [vmem:[#allocation3 + $0xb8] sm:$0xff] %vm2401, %v2352
        %2426 = vst.msk [vmem:[#allocation3 + $0xc0] sm:$0xff] %vm2401, %v2354
        %2427 = vst.msk [vmem:[#allocation3 + $0xc8] sm:$0xff] %vm2401, %v2356
        %2428 = vst.msk [vmem:[#allocation3 + $0xd0] sm:$0xff] %vm2401, %v2358
        %2429 = vst.msk [vmem:[#allocation3 + $0xd8] sm:$0xff] %vm2401, %v2360
        %2430 = vst.msk [vmem:[#allocation3 + $0xe0] sm:$0xff] %vm2401, %v2362
        %2431 = vst.msk [vmem:[#allocation3 + $0xe8] sm:$0xff] %vm2401, %v2364
        %2432 = vst.msk [vmem:[#allocation3 + $0xf0] sm:$0xff] %vm2401, %v2366
        %2433 = vst.msk [vmem:[#allocation3 + $0xf8] sm:$0xff] %vm2401, %v2368
        %v2434 = vld [vmem:[#allocation3] sm:$0xff]
        %v2435 = vld [vmem:[#allocation3 + $0x8] sm:$0xff]
        %v2436 = vld [vmem:[#allocation3 + $0x10] sm:$0xff]
        %v2437 = vld [vmem:[#allocation3 + $0x18] sm:$0xff]
        %v2438 = vld [vmem:[#allocation3 + $0x20] sm:$0xff]
        %v2439 = vld [vmem:[#allocation3 + $0x28] sm:$0xff]
        %v2440 = vld [vmem:[#allocation3 + $0x30] sm:$0xff]
        %v2441 = vld [vmem:[#allocation3 + $0x38] sm:$0xff]
        %v2442 = vld [vmem:[#allocation3 + $0x40] sm:$0xff]
        %v2443 = vld [vmem:[#allocation3 + $0x48] sm:$0xff]
        %v2444 = vld [vmem:[#allocation3 + $0x50] sm:$0xff]
        %v2445 = vld [vmem:[#allocation3 + $0x58] sm:$0xff]
        %v2446 = vld [vmem:[#allocation3 + $0x60] sm:$0xff]
        %v2447 = vld [vmem:[#allocation3 + $0x68] sm:$0xff]
        %v2448 = vld [vmem:[#allocation3 + $0x70] sm:$0xff]
        %v2449 = vld [vmem:[#allocation3 + $0x78] sm:$0xff]
        %v2450 = vld [vmem:[#allocation3 + $0x80] sm:$0xff]
        %v2451 = vld [vmem:[#allocation3 + $0x88] sm:$0xff]
        %v2452 = vld [vmem:[#allocation3 + $0x90] sm:$0xff]
        %v2453 = vld [vmem:[#allocation3 + $0x98] sm:$0xff]
        %v2454 = vld [vmem:[#allocation3 + $0xa0] sm:$0xff]
        %v2455 = vld [vmem:[#allocation3 + $0xa8] sm:$0xff]
        %v2456 = vld [vmem:[#allocation3 + $0xb0] sm:$0xff]
        %v2457 = vld [vmem:[#allocation3 + $0xb8] sm:$0xff]
        %v2458 = vld [vmem:[#allocation3 + $0xc0] sm:$0xff]
        %v2459 = vld [vmem:[#allocation3 + $0xc8] sm:$0xff]
        %v2460 = vld [vmem:[#allocation3 + $0xd0] sm:$0xff]
        %v2461 = vld [vmem:[#allocation3 + $0xd8] sm:$0xff]
        %v2462 = vld [vmem:[#allocation3 + $0xe0] sm:$0xff]
        %v2463 = vld [vmem:[#allocation3 + $0xe8] sm:$0xff]
        %v2464 = vld [vmem:[#allocation3 + $0xf0] sm:$0xff]
        %v2465 = vld [vmem:[#allocation3 + $0xf8] sm:$0xff]
        %v2466 = vld [vmem:[%s2] sm:$0xff]
        %v2467 = vld [vmem:[%s2 + $0x8] sm:$0xff]
        %v2468 = vld [vmem:[%s2 + $0x10] sm:$0xff]
        %v2469 = vld [vmem:[%s2 + $0x18] sm:$0xff]
        %v2470 = vld [vmem:[%s2 + $0x20] sm:$0xf]
        %v2471 = vperm.slane %v791, 0
        %vm2472 = vcmask 293888
        %v2474 = vsel %vm2472, %v2434, 0
        %v2477 = vsel %vm2472, %v2435, 0
        %v2480 = vsel %vm2472, %v2436, 0
        %v2483 = vsel %vm2472, %v2437, 0
        %v2486 = vsel %vm2472, %v2438, 0
        %v2489 = vsel %vm2472, %v2439, 0
        %v2492 = vsel %vm2472, %v2440, 0
        %v2495 = vsel %vm2472, %v2441, 0
        %v2498 = vsel %vm2472, %v2442, 0
        %v2501 = vsel %vm2472, %v2443, 0
        %v2504 = vsel %vm2472, %v2444, 0
        %v2507 = vsel %vm2472, %v2445, 0
        %v2510 = vsel %vm2472, %v2446, 0
        %v2513 = vsel %vm2472, %v2447, 0
        %v2516 = vsel %vm2472, %v2448, 0
        %v2519 = vsel %vm2472, %v2449, 0
        %v2522 = vsel %vm2472, %v2450, 0
        %v2525 = vsel %vm2472, %v2451, 0
        %v2528 = vsel %vm2472, %v2452, 0
        %v2531 = vsel %vm2472, %v2453, 0
        %v2534 = vsel %vm2472, %v2454, 0
        %v2537 = vsel %vm2472, %v2455, 0
        %v2540 = vsel %vm2472, %v2456, 0
        %v2543 = vsel %vm2472, %v2457, 0
        %v2546 = vsel %vm2472, %v2458, 0
        %v2549 = vsel %vm2472, %v2459, 0
        %v2552 = vsel %vm2472, %v2460, 0
        %v2555 = vsel %vm2472, %v2461, 0
        %v2558 = vsel %vm2472, %v2462, 0
        %v2561 = vsel %vm2472, %v2463, 0
        %v2564 = vsel %vm2472, %v2464, 0
        %v2567 = vsel %vm2472, %v2465, 0
        %vm2569 = vcmask 1043456
        %v2571 = vsel %vm2569, %v2470, 0
        %2573 = vmatpush.msra.mxu0 0.0
        %2574 = vmatpush.msra.mxu0 0.0
        %2575 = vmatpush.msra.mxu0 0.0
        %2576 = vmatpush.msra.mxu0 0.0
        %2577 = vmatpush.msra.mxu0 0.0
        %2578 = vmatpush.msra.mxu0 0.0
        %2579 = vmatpush.msra.mxu0 0.0
        %2580 = vmatpush.msra.mxu0 0.0
        %2581 = vmatpush.msra.mxu0 0.0
        %2582 = vmatpush.msra.mxu0 0.0
        %2583 = vmatpush.msra.mxu0 0.0
        %2584 = vmatpush.msra.mxu0 %v2571
        %2585 = vmatpush.msra.mxu0 %v2469
        %2586 = vmatpush.msra.mxu0 %v2468
        %2587 = vmatpush.msra.mxu0 %v2467
        %2588 = vmatpush.msra.mxu0 %v2466
        %2589 = vmatmul.f32.gmra.mxu0 %v2474
        %v2590 = vpop.f32.mrf.mxu0
        %v2591 = vadd.f32 %v2471, %v2590
        %2592 = vmatmul.f32.gmra.mxu0 %v2477
        %v2593 = vpop.f32.mrf.mxu0
        %v2594 = vadd.f32 %v2471, %v2593
        %2595 = vmatmul.f32.gmra.mxu0 %v2480
        %v2596 = vpop.f32.mrf.mxu0
        %v2597 = vadd.f32 %v2471, %v2596
        %2598 = vmatmul.f32.gmra.mxu0 %v2483
        %v2599 = vpop.f32.mrf.mxu0
        %v2600 = vadd.f32 %v2471, %v2599
        %2601 = vmatmul.f32.gmra.mxu0 %v2486
        %v2602 = vpop.f32.mrf.mxu0
        %v2603 = vadd.f32 %v2471, %v2602
        %2604 = vmatmul.f32.gmra.mxu0 %v2489
        %v2605 = vpop.f32.mrf.mxu0
        %v2606 = vadd.f32 %v2471, %v2605
        %2607 = vmatmul.f32.gmra.mxu0 %v2492
        %v2608 = vpop.f32.mrf.mxu0
        %v2609 = vadd.f32 %v2471, %v2608
        %2610 = vmatmul.f32.gmra.mxu0 %v2495
        %v2611 = vpop.f32.mrf.mxu0
        %v2612 = vadd.f32 %v2471, %v2611
        %2613 = vmatmul.f32.gmra.mxu0 %v2498
        %v2614 = vpop.f32.mrf.mxu0
        %v2615 = vadd.f32 %v2471, %v2614
        %2616 = vmatmul.f32.gmra.mxu0 %v2501
        %v2617 = vpop.f32.mrf.mxu0
        %v2618 = vadd.f32 %v2471, %v2617
        %2619 = vmatmul.f32.gmra.mxu0 %v2504
        %v2620 = vpop.f32.mrf.mxu0
        %v2621 = vadd.f32 %v2471, %v2620
        %2622 = vmatmul.f32.gmra.mxu0 %v2507
        %v2623 = vpop.f32.mrf.mxu0
        %v2624 = vadd.f32 %v2471, %v2623
        %2625 = vmatmul.f32.gmra.mxu0 %v2510
        %v2626 = vpop.f32.mrf.mxu0
        %v2627 = vadd.f32 %v2471, %v2626
        %2628 = vmatmul.f32.gmra.mxu0 %v2513
        %v2629 = vpop.f32.mrf.mxu0
        %v2630 = vadd.f32 %v2471, %v2629
        %2631 = vmatmul.f32.gmra.mxu0 %v2516
        %v2632 = vpop.f32.mrf.mxu0
        %v2633 = vadd.f32 %v2471, %v2632
        %2634 = vmatmul.f32.gmra.mxu0 %v2519
        %v2635 = vpop.f32.mrf.mxu0
        %v2636 = vadd.f32 %v2471, %v2635
        %2637 = vmatmul.f32.gmra.mxu0 %v2522
        %v2638 = vpop.f32.mrf.mxu0
        %v2639 = vadd.f32 %v2471, %v2638
        %2640 = vmatmul.f32.gmra.mxu0 %v2525
        %v2641 = vpop.f32.mrf.mxu0
        %v2642 = vadd.f32 %v2471, %v2641
        %2643 = vmatmul.f32.gmra.mxu0 %v2528
        %v2644 = vpop.f32.mrf.mxu0
        %v2645 = vadd.f32 %v2471, %v2644
        %2646 = vmatmul.f32.gmra.mxu0 %v2531
        %v2647 = vpop.f32.mrf.mxu0
        %v2648 = vadd.f32 %v2471, %v2647
        %2649 = vmatmul.f32.gmra.mxu0 %v2534
        %v2650 = vpop.f32.mrf.mxu0
        %v2651 = vadd.f32 %v2471, %v2650
        %2652 = vmatmul.f32.gmra.mxu0 %v2537
        %v2653 = vpop.f32.mrf.mxu0
        %v2654 = vadd.f32 %v2471, %v2653
        %2655 = vmatmul.f32.gmra.mxu0 %v2540
        %v2656 = vpop.f32.mrf.mxu0
        %v2657 = vadd.f32 %v2471, %v2656
        %2658 = vmatmul.f32.gmra.mxu0 %v2543
        %v2659 = vpop.f32.mrf.mxu0
        %v2660 = vadd.f32 %v2471, %v2659
        %2661 = vmatmul.f32.gmra.mxu0 %v2546
        %v2662 = vpop.f32.mrf.mxu0
        %v2663 = vadd.f32 %v2471, %v2662
        %2664 = vmatmul.f32.gmra.mxu0 %v2549
        %v2665 = vpop.f32.mrf.mxu0
        %v2666 = vadd.f32 %v2471, %v2665
        %2667 = vmatmul.f32.gmra.mxu0 %v2552
        %v2668 = vpop.f32.mrf.mxu0
        %v2669 = vadd.f32 %v2471, %v2668
        %2670 = vmatmul.f32.gmra.mxu0 %v2555
        %v2671 = vpop.f32.mrf.mxu0
        %v2672 = vadd.f32 %v2471, %v2671
        %2673 = vmatmul.f32.gmra.mxu0 %v2558
        %v2674 = vpop.f32.mrf.mxu0
        %v2675 = vadd.f32 %v2471, %v2674
        %2676 = vmatmul.f32.gmra.mxu0 %v2561
        %v2677 = vpop.f32.mrf.mxu0
        %v2678 = vadd.f32 %v2471, %v2677
        %2679 = vmatmul.f32.gmra.mxu0 %v2564
        %v2680 = vpop.f32.mrf.mxu0
        %v2681 = vadd.f32 %v2471, %v2680
        %2682 = vmatmul.f32.gmra.mxu0 %v2567
        %v2683 = vpop.f32.mrf.mxu0
        %v2684 = vadd.f32 %v2471, %v2683
        %2685 = vdwg.mxu0
        %v2686 = vperm.slane %v348, 2
        %v2687 = vmul.f32 %v2591, %v2686
        %v2688 = vmul.f32 %v2594, %v2686
        %v2689 = vmul.f32 %v2597, %v2686
        %v2690 = vmul.f32 %v2600, %v2686
        %v2691 = vmul.f32 %v2603, %v2686
        %v2692 = vmul.f32 %v2606, %v2686
        %v2693 = vmul.f32 %v2609, %v2686
        %v2694 = vmul.f32 %v2612, %v2686
        %v2695 = vmul.f32 %v2615, %v2686
        %v2696 = vmul.f32 %v2618, %v2686
        %v2697 = vmul.f32 %v2621, %v2686
        %v2698 = vmul.f32 %v2624, %v2686
        %v2699 = vmul.f32 %v2627, %v2686
        %v2700 = vmul.f32 %v2630, %v2686
        %v2701 = vmul.f32 %v2633, %v2686
        %v2702 = vmul.f32 %v2636, %v2686
        %v2703 = vmul.f32 %v2639, %v2686
        %v2704 = vmul.f32 %v2642, %v2686
        %v2705 = vmul.f32 %v2645, %v2686
        %v2706 = vmul.f32 %v2648, %v2686
        %v2707 = vmul.f32 %v2651, %v2686
        %v2708 = vmul.f32 %v2654, %v2686
        %v2709 = vmul.f32 %v2657, %v2686
        %v2710 = vmul.f32 %v2660, %v2686
        %v2711 = vmul.f32 %v2663, %v2686
        %v2712 = vmul.f32 %v2666, %v2686
        %v2713 = vmul.f32 %v2669, %v2686
        %v2714 = vmul.f32 %v2672, %v2686
        %v2715 = vmul.f32 %v2675, %v2686
        %v2716 = vmul.f32 %v2678, %v2686
        %v2717 = vmul.f32 %v2681, %v2686
        %v2718 = vmul.f32 %v2684, %v2686
        %v2719 = vperm.slane %v348, 3
        %v2720 = vadd.f32 %v2687, %v2719
        %v2721 = vadd.f32 %v2688, %v2719
        %v2722 = vadd.f32 %v2689, %v2719
        %v2723 = vadd.f32 %v2690, %v2719
        %v2724 = vadd.f32 %v2691, %v2719
        %v2725 = vadd.f32 %v2692, %v2719
        %v2726 = vadd.f32 %v2693, %v2719
        %v2727 = vadd.f32 %v2694, %v2719
        %v2728 = vadd.f32 %v2695, %v2719
        %v2729 = vadd.f32 %v2696, %v2719
        %v2730 = vadd.f32 %v2697, %v2719
        %v2731 = vadd.f32 %v2698, %v2719
        %v2732 = vadd.f32 %v2699, %v2719
        %v2733 = vadd.f32 %v2700, %v2719
        %v2734 = vadd.f32 %v2701, %v2719
        %v2735 = vadd.f32 %v2702, %v2719
        %v2736 = vadd.f32 %v2703, %v2719
        %v2737 = vadd.f32 %v2704, %v2719
        %v2738 = vadd.f32 %v2705, %v2719
        %v2739 = vadd.f32 %v2706, %v2719
        %v2740 = vadd.f32 %v2707, %v2719
        %v2741 = vadd.f32 %v2708, %v2719
        %v2742 = vadd.f32 %v2709, %v2719
        %v2743 = vadd.f32 %v2710, %v2719
        %v2744 = vadd.f32 %v2711, %v2719
        %v2745 = vadd.f32 %v2712, %v2719
        %v2746 = vadd.f32 %v2713, %v2719
        %v2747 = vadd.f32 %v2714, %v2719
        %v2748 = vadd.f32 %v2715, %v2719
        %v2749 = vadd.f32 %v2716, %v2719
        %v2750 = vadd.f32 %v2717, %v2719
        %v2751 = vadd.f32 %v2718, %v2719
        %vm2752 = vcmp.gt.f32.partialorder %v2720, 20.0
        %vm2753 = vcmp.gt.f32.partialorder %v2721, 20.0
        %vm2754 = vcmp.gt.f32.partialorder %v2722, 20.0
        %vm2755 = vcmp.gt.f32.partialorder %v2723, 20.0
        %vm2756 = vcmp.gt.f32.partialorder %v2724, 20.0
        %vm2757 = vcmp.gt.f32.partialorder %v2725, 20.0
        %vm2758 = vcmp.gt.f32.partialorder %v2726, 20.0
        %vm2759 = vcmp.gt.f32.partialorder %v2727, 20.0
        %vm2760 = vcmp.gt.f32.partialorder %v2728, 20.0
        %vm2761 = vcmp.gt.f32.partialorder %v2729, 20.0
        %vm2762 = vcmp.gt.f32.partialorder %v2730, 20.0
        %vm2763 = vcmp.gt.f32.partialorder %v2731, 20.0
        %vm2764 = vcmp.gt.f32.partialorder %v2732, 20.0
        %vm2765 = vcmp.gt.f32.partialorder %v2733, 20.0
        %vm2766 = vcmp.gt.f32.partialorder %v2734, 20.0
        %vm2767 = vcmp.gt.f32.partialorder %v2735, 20.0
        %vm2768 = vcmp.gt.f32.partialorder %v2736, 20.0
        %vm2769 = vcmp.gt.f32.partialorder %v2737, 20.0
        %vm2770 = vcmp.gt.f32.partialorder %v2738, 20.0
        %vm2771 = vcmp.gt.f32.partialorder %v2739, 20.0
        %vm2772 = vcmp.gt.f32.partialorder %v2740, 20.0
        %vm2773 = vcmp.gt.f32.partialorder %v2741, 20.0
        %vm2774 = vcmp.gt.f32.partialorder %v2742, 20.0
        %vm2775 = vcmp.gt.f32.partialorder %v2743, 20.0
        %vm2776 = vcmp.gt.f32.partialorder %v2744, 20.0
        %vm2777 = vcmp.gt.f32.partialorder %v2745, 20.0
        %vm2778 = vcmp.gt.f32.partialorder %v2746, 20.0
        %vm2779 = vcmp.gt.f32.partialorder %v2747, 20.0
        %vm2780 = vcmp.gt.f32.partialorder %v2748, 20.0
        %vm2781 = vcmp.gt.f32.partialorder %v2749, 20.0
        %vm2782 = vcmp.gt.f32.partialorder %v2750, 20.0
        %vm2783 = vcmp.gt.f32.partialorder %v2751, 20.0
        %v2784 = vmin.f32 %v2720, 20.0
        %v2785 = vmin.f32 %v2721, 20.0
        %v2786 = vmin.f32 %v2722, 20.0
        %v2787 = vmin.f32 %v2723, 20.0
        %v2788 = vmin.f32 %v2724, 20.0
        %v2789 = vmin.f32 %v2725, 20.0
        %v2790 = vmin.f32 %v2726, 20.0
        %v2791 = vmin.f32 %v2727, 20.0
        %v2792 = vmin.f32 %v2728, 20.0
        %v2793 = vmin.f32 %v2729, 20.0
        %v2794 = vmin.f32 %v2730, 20.0
        %v2795 = vmin.f32 %v2731, 20.0
        %v2796 = vmin.f32 %v2732, 20.0
        %v2797 = vmin.f32 %v2733, 20.0
        %v2798 = vmin.f32 %v2734, 20.0
        %v2799 = vmin.f32 %v2735, 20.0
        %v2800 = vmin.f32 %v2736, 20.0
        %v2801 = vmin.f32 %v2737, 20.0
        %v2802 = vmin.f32 %v2738, 20.0
        %v2803 = vmin.f32 %v2739, 20.0
        %v2804 = vmin.f32 %v2740, 20.0
        %v2805 = vmin.f32 %v2741, 20.0
        %v2806 = vmin.f32 %v2742, 20.0
        %v2807 = vmin.f32 %v2743, 20.0
        %v2808 = vmin.f32 %v2744, 20.0
        %v2809 = vmin.f32 %v2745, 20.0
        %v2810 = vmin.f32 %v2746, 20.0
        %v2811 = vmin.f32 %v2747, 20.0
        %v2812 = vmin.f32 %v2748, 20.0
        %v2813 = vmin.f32 %v2749, 20.0
        %v2814 = vmin.f32 %v2750, 20.0
        %v2815 = vmin.f32 %v2751, 20.0
        %v2816 = vmul.f32 %v2784, 1.442695
        %v2817 = vpow.pop %v2816
        %v2818 = vmul.f32 %v2785, 1.442695
        %v2819 = vpow.pop %v2818
        %v2820 = vmul.f32 %v2786, 1.442695
        %v2821 = vpow.pop %v2820
        %v2822 = vmul.f32 %v2787, 1.442695
        %v2823 = vpow.pop %v2822
        %v2824 = vmul.f32 %v2788, 1.442695
        %v2825 = vpow.pop %v2824
        %v2826 = vmul.f32 %v2789, 1.442695
        %v2827 = vpow.pop %v2826
        %v2828 = vmul.f32 %v2790, 1.442695
        %v2829 = vpow.pop %v2828
        %v2830 = vmul.f32 %v2791, 1.442695
        %v2831 = vpow.pop %v2830
        %v2832 = vmul.f32 %v2792, 1.442695
        %v2833 = vpow.pop %v2832
        %v2834 = vmul.f32 %v2793, 1.442695
        %v2835 = vpow.pop %v2834
        %v2836 = vmul.f32 %v2794, 1.442695
        %v2837 = vpow.pop %v2836
        %v2838 = vmul.f32 %v2795, 1.442695
        %v2839 = vpow.pop %v2838
        %v2840 = vmul.f32 %v2796, 1.442695
        %v2841 = vpow.pop %v2840
        %v2842 = vmul.f32 %v2797, 1.442695
        %v2843 = vpow.pop %v2842
        %v2844 = vmul.f32 %v2798, 1.442695
        %v2845 = vpow.pop %v2844
        %v2846 = vmul.f32 %v2799, 1.442695
        %v2847 = vpow.pop %v2846
        %v2848 = vmul.f32 %v2800, 1.442695
        %v2849 = vpow.pop %v2848
        %v2850 = vmul.f32 %v2801, 1.442695
        %v2851 = vpow.pop %v2850
        %v2852 = vmul.f32 %v2802, 1.442695
        %v2853 = vpow.pop %v2852
        %v2854 = vmul.f32 %v2803, 1.442695
        %v2855 = vpow.pop %v2854
        %v2856 = vmul.f32 %v2804, 1.442695
        %v2857 = vpow.pop %v2856
        %v2858 = vmul.f32 %v2805, 1.442695
        %v2859 = vpow.pop %v2858
        %v2860 = vmul.f32 %v2806, 1.442695
        %v2861 = vpow.pop %v2860
        %v2862 = vmul.f32 %v2807, 1.442695
        %v2863 = vpow.pop %v2862
        %v2864 = vmul.f32 %v2808, 1.442695
        %v2865 = vpow.pop %v2864
        %v2866 = vmul.f32 %v2809, 1.442695
        %v2867 = vpow.pop %v2866
        %v2868 = vmul.f32 %v2810, 1.442695
        %v2869 = vpow.pop %v2868
        %v2870 = vmul.f32 %v2811, 1.442695
        %v2871 = vpow.pop %v2870
        %v2872 = vmul.f32 %v2812, 1.442695
        %v2873 = vpow.pop %v2872
        %v2874 = vmul.f32 %v2813, 1.442695
        %v2875 = vpow.pop %v2874
        %v2876 = vmul.f32 %v2814, 1.442695
        %v2877 = vpow.pop %v2876
        %v2878 = vmul.f32 %v2815, 1.442695
        %v2879 = vpow.pop %v2878
        %v2880 = vadd.f32 %v2817, 1.0
        %v2881 = vadd.f32 %v2819, 1.0
        %v2882 = vadd.f32 %v2821, 1.0
        %v2883 = vadd.f32 %v2823, 1.0
        %v2884 = vadd.f32 %v2825, 1.0
        %v2885 = vadd.f32 %v2827, 1.0
        %v2886 = vadd.f32 %v2829, 1.0
        %v2887 = vadd.f32 %v2831, 1.0
        %v2888 = vadd.f32 %v2833, 1.0
        %v2889 = vadd.f32 %v2835, 1.0
        %v2890 = vadd.f32 %v2837, 1.0
        %v2891 = vadd.f32 %v2839, 1.0
        %v2892 = vadd.f32 %v2841, 1.0
        %v2893 = vadd.f32 %v2843, 1.0
        %v2894 = vadd.f32 %v2845, 1.0
        %v2895 = vadd.f32 %v2847, 1.0
        %v2896 = vadd.f32 %v2849, 1.0
        %v2897 = vadd.f32 %v2851, 1.0
        %v2898 = vadd.f32 %v2853, 1.0
        %v2899 = vadd.f32 %v2855, 1.0
        %v2900 = vadd.f32 %v2857, 1.0
        %v2901 = vadd.f32 %v2859, 1.0
        %v2902 = vadd.f32 %v2861, 1.0
        %v2903 = vadd.f32 %v2863, 1.0
        %v2904 = vadd.f32 %v2865, 1.0
        %v2905 = vadd.f32 %v2867, 1.0
        %v2906 = vadd.f32 %v2869, 1.0
        %v2907 = vadd.f32 %v2871, 1.0
        %v2908 = vadd.f32 %v2873, 1.0
        %v2909 = vadd.f32 %v2875, 1.0
        %v2910 = vadd.f32 %v2877, 1.0
        %v2911 = vadd.f32 %v2879, 1.0
        %v2912 = vlog2.pop %v2880
        %v2913 = vmul.f32 %v2912, 0.6931472
        %v2914 = vlog2.pop %v2881
        %v2915 = vmul.f32 %v2914, 0.6931472
        %v2916 = vlog2.pop %v2882
        %v2917 = vmul.f32 %v2916, 0.6931472
        %v2918 = vlog2.pop %v2883
        %v2919 = vmul.f32 %v2918, 0.6931472
        %v2920 = vlog2.pop %v2884
        %v2921 = vmul.f32 %v2920, 0.6931472
        %v2922 = vlog2.pop %v2885
        %v2923 = vmul.f32 %v2922, 0.6931472
        %v2924 = vlog2.pop %v2886
        %v2925 = vmul.f32 %v2924, 0.6931472
        %v2926 = vlog2.pop %v2887
        %v2927 = vmul.f32 %v2926, 0.6931472
        %v2928 = vlog2.pop %v2888
        %v2929 = vmul.f32 %v2928, 0.6931472
        %v2930 = vlog2.pop %v2889
        %v2931 = vmul.f32 %v2930, 0.6931472
        %v2932 = vlog2.pop %v2890
        %v2933 = vmul.f32 %v2932, 0.6931472
        %v2934 = vlog2.pop %v2891
        %v2935 = vmul.f32 %v2934, 0.6931472
        %v2936 = vlog2.pop %v2892
        %v2937 = vmul.f32 %v2936, 0.6931472
        %v2938 = vlog2.pop %v2893
        %v2939 = vmul.f32 %v2938, 0.6931472
        %v2940 = vlog2.pop %v2894
        %v2941 = vmul.f32 %v2940, 0.6931472
        %v2942 = vlog2.pop %v2895
        %v2943 = vmul.f32 %v2942, 0.6931472
        %v2944 = vlog2.pop %v2896
        %v2945 = vmul.f32 %v2944, 0.6931472
        %v2946 = vlog2.pop %v2897
        %v2947 = vmul.f32 %v2946, 0.6931472
        %v2948 = vlog2.pop %v2898
        %v2949 = vmul.f32 %v2948, 0.6931472
        %v2950 = vlog2.pop %v2899
        %v2951 = vmul.f32 %v2950, 0.6931472
        %v2952 = vlog2.pop %v2900
        %v2953 = vmul.f32 %v2952, 0.6931472
        %v2954 = vlog2.pop %v2901
        %v2955 = vmul.f32 %v2954, 0.6931472
        %v2956 = vlog2.pop %v2902
        %v2957 = vmul.f32 %v2956, 0.6931472
        %v2958 = vlog2.pop %v2903
        %v2959 = vmul.f32 %v2958, 0.6931472
        %v2960 = vlog2.pop %v2904
        %v2961 = vmul.f32 %v2960, 0.6931472
        %v2962 = vlog2.pop %v2905
        %v2963 = vmul.f32 %v2962, 0.6931472
        %v2964 = vlog2.pop %v2906
        %v2965 = vmul.f32 %v2964, 0.6931472
        %v2966 = vlog2.pop %v2907
        %v2967 = vmul.f32 %v2966, 0.6931472
        %v2968 = vlog2.pop %v2908
        %v2969 = vmul.f32 %v2968, 0.6931472
        %v2970 = vlog2.pop %v2909
        %v2971 = vmul.f32 %v2970, 0.6931472
        %v2972 = vlog2.pop %v2910
        %v2973 = vmul.f32 %v2972, 0.6931472
        %v2974 = vlog2.pop %v2911
        %v2975 = vmul.f32 %v2974, 0.6931472
        %v2976 = vsel %vm2752, %v2720, %v2913
        %v2977 = vsel %vm2753, %v2721, %v2915
        %v2978 = vsel %vm2754, %v2722, %v2917
        %v2979 = vsel %vm2755, %v2723, %v2919
        %v2980 = vsel %vm2756, %v2724, %v2921
        %v2981 = vsel %vm2757, %v2725, %v2923
        %v2982 = vsel %vm2758, %v2726, %v2925
        %v2983 = vsel %vm2759, %v2727, %v2927
        %v2984 = vsel %vm2760, %v2728, %v2929
        %v2985 = vsel %vm2761, %v2729, %v2931
        %v2986 = vsel %vm2762, %v2730, %v2933
        %v2987 = vsel %vm2763, %v2731, %v2935
        %v2988 = vsel %vm2764, %v2732, %v2937
        %v2989 = vsel %vm2765, %v2733, %v2939
        %v2990 = vsel %vm2766, %v2734, %v2941
        %v2991 = vsel %vm2767, %v2735, %v2943
        %v2992 = vsel %vm2768, %v2736, %v2945
        %v2993 = vsel %vm2769, %v2737, %v2947
        %v2994 = vsel %vm2770, %v2738, %v2949
        %v2995 = vsel %vm2771, %v2739, %v2951
        %v2996 = vsel %vm2772, %v2740, %v2953
        %v2997 = vsel %vm2773, %v2741, %v2955
        %v2998 = vsel %vm2774, %v2742, %v2957
        %v2999 = vsel %vm2775, %v2743, %v2959
        %v3000 = vsel %vm2776, %v2744, %v2961
        %v3001 = vsel %vm2777, %v2745, %v2963
        %v3002 = vsel %vm2778, %v2746, %v2965
        %v3003 = vsel %vm2779, %v2747, %v2967
        %v3004 = vsel %vm2780, %v2748, %v2969
        %v3005 = vsel %vm2781, %v2749, %v2971
        %v3006 = vsel %vm2782, %v2750, %v2973
        %v3007 = vsel %vm2783, %v2751, %v2975
        %v3008 = vtanh.pop %v2976
        %v3009 = vtanh.pop %v2977
        %v3010 = vtanh.pop %v2978
        %v3011 = vtanh.pop %v2979
        %v3012 = vtanh.pop %v2980
        %v3013 = vtanh.pop %v2981
        %v3014 = vtanh.pop %v2982
        %v3015 = vtanh.pop %v2983
        %v3016 = vtanh.pop %v2984
        %v3017 = vtanh.pop %v2985
        %v3018 = vtanh.pop %v2986
        %v3019 = vtanh.pop %v2987
        %v3020 = vtanh.pop %v2988
        %v3021 = vtanh.pop %v2989
        %v3022 = vtanh.pop %v2990
        %v3023 = vtanh.pop %v2991
        %v3024 = vtanh.pop %v2992
        %v3025 = vtanh.pop %v2993
        %v3026 = vtanh.pop %v2994
        %v3027 = vtanh.pop %v2995
        %v3028 = vtanh.pop %v2996
        %v3029 = vtanh.pop %v2997
        %v3030 = vtanh.pop %v2998
        %v3031 = vtanh.pop %v2999
        %v3032 = vtanh.pop %v3000
        %v3033 = vtanh.pop %v3001
        %v3034 = vtanh.pop %v3002
        %v3035 = vtanh.pop %v3003
        %v3036 = vtanh.pop %v3004
        %v3037 = vtanh.pop %v3005
        %v3038 = vtanh.pop %v3006
        %v3039 = vtanh.pop %v3007
        %v3040 = vmul.f32 %v2720, %v3008
        %v3041 = vmul.f32 %v2721, %v3009
        %v3042 = vmul.f32 %v2722, %v3010
        %v3043 = vmul.f32 %v2723, %v3011
        %v3044 = vmul.f32 %v2724, %v3012
        %v3045 = vmul.f32 %v2725, %v3013
        %v3046 = vmul.f32 %v2726, %v3014
        %v3047 = vmul.f32 %v2727, %v3015
        %v3048 = vmul.f32 %v2728, %v3016
        %v3049 = vmul.f32 %v2729, %v3017
        %v3050 = vmul.f32 %v2730, %v3018
        %v3051 = vmul.f32 %v2731, %v3019
        %v3052 = vmul.f32 %v2732, %v3020
        %v3053 = vmul.f32 %v2733, %v3021
        %v3054 = vmul.f32 %v2734, %v3022
        %v3055 = vmul.f32 %v2735, %v3023
        %v3056 = vmul.f32 %v2736, %v3024
        %v3057 = vmul.f32 %v2737, %v3025
        %v3058 = vmul.f32 %v2738, %v3026
        %v3059 = vmul.f32 %v2739, %v3027
        %v3060 = vmul.f32 %v2740, %v3028
        %v3061 = vmul.f32 %v2741, %v3029
        %v3062 = vmul.f32 %v2742, %v3030
        %v3063 = vmul.f32 %v2743, %v3031
        %v3064 = vmul.f32 %v2744, %v3032
        %v3065 = vmul.f32 %v2745, %v3033
        %v3066 = vmul.f32 %v2746, %v3034
        %v3067 = vmul.f32 %v2747, %v3035
        %v3068 = vmul.f32 %v2748, %v3036
        %v3069 = vmul.f32 %v2749, %v3037
        %v3070 = vmul.f32 %v2750, %v3038
        %v3071 = vmul.f32 %v2751, %v3039
        %v3072 = vld [vmem:[%s4 + $0x1] sm:$0x1]
        %3073 = vst.msk [vmem:[%s792 + $0x1] sm:$0xff] %vm349, %v3040
        %3074 = vst.msk [vmem:[%s792 + $0x9] sm:$0xff] %vm349, %v3041
        %3075 = vst.msk [vmem:[%s792 + $0x19] sm:$0xff] %vm349, %v3042
        %3076 = vst.msk [vmem:[%s792 + $0x21] sm:$0xff] %vm349, %v3043
        %3077 = vst.msk [vmem:[%s792 + $0x31] sm:$0xff] %vm349, %v3044
        %3078 = vst.msk [vmem:[%s792 + $0x39] sm:$0xff] %vm349, %v3045
        %3079 = vst.msk [vmem:[%s792 + $0x49] sm:$0xff] %vm349, %v3046
        %3080 = vst.msk [vmem:[%s792 + $0x51] sm:$0xff] %vm349, %v3047
        %3081 = vst.msk [vmem:[%s792 + $0x61] sm:$0xff] %vm349, %v3048
        %3082 = vst.msk [vmem:[%s792 + $0x69] sm:$0xff] %vm349, %v3049
        %3083 = vst.msk [vmem:[%s792 + $0x79] sm:$0xff] %vm349, %v3050
        %3084 = vst.msk [vmem:[%s792 + $0x81] sm:$0xff] %vm349, %v3051
        %3085 = vst.msk [vmem:[%s792 + $0x91] sm:$0xff] %vm349, %v3052
        %3086 = vst.msk [vmem:[%s792 + $0x99] sm:$0xff] %vm349, %v3053
        %3087 = vst.msk [vmem:[%s792 + $0xa9] sm:$0xff] %vm349, %v3054
        %3088 = vst.msk [vmem:[%s792 + $0xb1] sm:$0xff] %vm349, %v3055
        %3089 = vst.msk [vmem:[%s792 + $0xc1] sm:$0xff] %vm349, %v3056
        %3090 = vst.msk [vmem:[%s792 + $0xc9] sm:$0xff] %vm349, %v3057
        %3091 = vst.msk [vmem:[%s792 + $0xd9] sm:$0xff] %vm349, %v3058
        %3092 = vst.msk [vmem:[%s792 + $0xe1] sm:$0xff] %vm349, %v3059
        %3093 = vst.msk [vmem:[%s792 + $0xf1] sm:$0xff] %vm349, %v3060
        %3094 = vst.msk [vmem:[%s792 + $0xf9] sm:$0xff] %vm349, %v3061
        %3095 = vst.msk [vmem:[%s792 + $0x109] sm:$0xff] %vm349, %v3062
        %3096 = vst.msk [vmem:[%s792 + $0x111] sm:$0xff] %vm349, %v3063
        %3097 = vst.msk [vmem:[%s792 + $0x121] sm:$0xff] %vm349, %v3064
        %3098 = vst.msk [vmem:[%s792 + $0x129] sm:$0xff] %vm349, %v3065
        %3099 = vst.msk [vmem:[%s792 + $0x139] sm:$0xff] %vm349, %v3066
        %3100 = vst.msk [vmem:[%s792 + $0x141] sm:$0xff] %vm349, %v3067
        %3101 = vst.msk [vmem:[%s792 + $0x151] sm:$0xff] %vm349, %v3068
        %3102 = vst.msk [vmem:[%s792 + $0x159] sm:$0xff] %vm349, %v3069
        %3103 = vst.msk [vmem:[%s792 + $0x169] sm:$0xff] %vm349, %v3070
        %3104 = vst.msk [vmem:[%s792 + $0x171] sm:$0xff] %vm349, %v3071
        %v3105 = vld [vmem:[#allocation2] sm:$0xff]
        %v3106 = vld [vmem:[#allocation2 + $0x8] sm:$0xff]
        %v3107 = vld [vmem:[#allocation2 + $0x18] sm:$0xff]
        %v3108 = vld [vmem:[#allocation2 + $0x20] sm:$0xff]
        %v3109 = vld [vmem:[#allocation2 + $0x30] sm:$0xff]
        %v3110 = vld [vmem:[#allocation2 + $0x38] sm:$0xff]
        %v3111 = vld [vmem:[#allocation2 + $0x48] sm:$0xff]
        %v3112 = vld [vmem:[#allocation2 + $0x50] sm:$0xff]
        %v3113 = vld [vmem:[#allocation2 + $0x60] sm:$0xff]
        %v3114 = vld [vmem:[#allocation2 + $0x68] sm:$0xff]
        %v3115 = vld [vmem:[#allocation2 + $0x78] sm:$0xff]
        %v3116 = vld [vmem:[#allocation2 + $0x80] sm:$0xff]
        %v3117 = vld [vmem:[#allocation2 + $0x90] sm:$0xff]
        %v3118 = vld [vmem:[#allocation2 + $0x98] sm:$0xff]
        %v3119 = vld [vmem:[#allocation2 + $0xa8] sm:$0xff]
        %v3120 = vld [vmem:[#allocation2 + $0xb0] sm:$0xff]
        %v3121 = vld [vmem:[#allocation2 + $0xc0] sm:$0xff]
        %v3122 = vld [vmem:[#allocation2 + $0xc8] sm:$0xff]
        %v3123 = vld [vmem:[#allocation2 + $0xd8] sm:$0xff]
        %v3124 = vld [vmem:[#allocation2 + $0xe0] sm:$0xff]
        %v3125 = vld [vmem:[#allocation2 + $0xf0] sm:$0xff]
        %v3126 = vld [vmem:[#allocation2 + $0xf8] sm:$0xff]
        %v3127 = vld [vmem:[#allocation2 + $0x108] sm:$0xff]
        %v3128 = vld [vmem:[#allocation2 + $0x110] sm:$0xff]
        %v3129 = vld [vmem:[#allocation2 + $0x120] sm:$0xff]
        %v3130 = vld [vmem:[#allocation2 + $0x128] sm:$0xff]
        %v3131 = vld [vmem:[#allocation2 + $0x138] sm:$0xff]
        %v3132 = vld [vmem:[#allocation2 + $0x140] sm:$0xff]
        %v3133 = vld [vmem:[#allocation2 + $0x150] sm:$0xff]
        %v3134 = vld [vmem:[#allocation2 + $0x158] sm:$0xff]
        %v3135 = vld [vmem:[#allocation2 + $0x168] sm:$0xff]
        %v3136 = vld [vmem:[#allocation2 + $0x170] sm:$0xff]
        %3137 = vst.msk [vmem:[#allocation3] sm:$0xff] %vm349, %v3105
        %3138 = vst.msk [vmem:[#allocation3 + $0x8] sm:$0xff] %vm349, %v3106
        %3139 = vst.msk [vmem:[#allocation3 + $0x10] sm:$0xff] %vm349, %v3107
        %3140 = vst.msk [vmem:[#allocation3 + $0x18] sm:$0xff] %vm349, %v3108
        %3141 = vst.msk [vmem:[#allocation3 + $0x20] sm:$0xff] %vm349, %v3109
        %3142 = vst.msk [vmem:[#allocation3 + $0x28] sm:$0xff] %vm349, %v3110
        %3143 = vst.msk [vmem:[#allocation3 + $0x30] sm:$0xff] %vm349, %v3111
        %3144 = vst.msk [vmem:[#allocation3 + $0x38] sm:$0xff] %vm349, %v3112
        %3145 = vst.msk [vmem:[#allocation3 + $0x40] sm:$0xff] %vm349, %v3113
        %3146 = vst.msk [vmem:[#allocation3 + $0x48] sm:$0xff] %vm349, %v3114
        %3147 = vst.msk [vmem:[#allocation3 + $0x50] sm:$0xff] %vm349, %v3115
        %3148 = vst.msk [vmem:[#allocation3 + $0x58] sm:$0xff] %vm349, %v3116
        %3149 = vst.msk [vmem:[#allocation3 + $0x60] sm:$0xff] %vm349, %v3117
        %3150 = vst.msk [vmem:[#allocation3 + $0x68] sm:$0xff] %vm349, %v3118
        %3151 = vst.msk [vmem:[#allocation3 + $0x70] sm:$0xff] %vm349, %v3119
        %3152 = vst.msk [vmem:[#allocation3 + $0x78] sm:$0xff] %vm349, %v3120
        %3153 = vst.msk [vmem:[#allocation3 + $0x80] sm:$0xff] %vm349, %v3121
        %3154 = vst.msk [vmem:[#allocation3 + $0x88] sm:$0xff] %vm349, %v3122
        %3155 = vst.msk [vmem:[#allocation3 + $0x90] sm:$0xff] %vm349, %v3123
        %3156 = vst.msk [vmem:[#allocation3 + $0x98] sm:$0xff] %vm349, %v3124
        %3157 = vst.msk [vmem:[#allocation3 + $0xa0] sm:$0xff] %vm349, %v3125
        %3158 = vst.msk [vmem:[#allocation3 + $0xa8] sm:$0xff] %vm349, %v3126
        %3159 = vst.msk [vmem:[#allocation3 + $0xb0] sm:$0xff] %vm349, %v3127
        %3160 = vst.msk [vmem:[#allocation3 + $0xb8] sm:$0xff] %vm349, %v3128
        %3161 = vst.msk [vmem:[#allocation3 + $0xc0] sm:$0xff] %vm349, %v3129
        %3162 = vst.msk [vmem:[#allocation3 + $0xc8] sm:$0xff] %vm349, %v3130
        %3163 = vst.msk [vmem:[#allocation3 + $0xd0] sm:$0xff] %vm349, %v3131
        %3164 = vst.msk [vmem:[#allocation3 + $0xd8] sm:$0xff] %vm349, %v3132
        %3165 = vst.msk [vmem:[#allocation3 + $0xe0] sm:$0xff] %vm349, %v3133
        %3166 = vst.msk [vmem:[#allocation3 + $0xe8] sm:$0xff] %vm349, %v3134
        %3167 = vst.msk [vmem:[#allocation3 + $0xf0] sm:$0xff] %vm349, %v3135
        %3168 = vst.msk [vmem:[#allocation3 + $0xf8] sm:$0xff] %vm349, %v3136
        %v3169 = vld [vmem:[#allocation2 + $0x1] sm:$0xff]
        %v3170 = vld [vmem:[#allocation2 + $0x9] sm:$0xff]
        %v3171 = vld [vmem:[#allocation2 + $0x19] sm:$0xff]
        %v3172 = vld [vmem:[#allocation2 + $0x21] sm:$0xff]
        %v3173 = vld [vmem:[#allocation2 + $0x31] sm:$0xff]
        %v3174 = vld [vmem:[#allocation2 + $0x39] sm:$0xff]
        %v3175 = vld [vmem:[#allocation2 + $0x49] sm:$0xff]
        %v3176 = vld [vmem:[#allocation2 + $0x51] sm:$0xff]
        %v3177 = vld [vmem:[#allocation2 + $0x61] sm:$0xff]
        %v3178 = vld [vmem:[#allocation2 + $0x69] sm:$0xff]
        %v3179 = vld [vmem:[#allocation2 + $0x79] sm:$0xff]
        %v3180 = vld [vmem:[#allocation2 + $0x81] sm:$0xff]
        %v3181 = vld [vmem:[#allocation2 + $0x91] sm:$0xff]
        %v3182 = vld [vmem:[#allocation2 + $0x99] sm:$0xff]
        %v3183 = vld [vmem:[#allocation2 + $0xa9] sm:$0xff]
        %v3184 = vld [vmem:[#allocation2 + $0xb1] sm:$0xff]
        %v3185 = vld [vmem:[#allocation2 + $0xc1] sm:$0xff]
        %v3186 = vld [vmem:[#allocation2 + $0xc9] sm:$0xff]
        %v3187 = vld [vmem:[#allocation2 + $0xd9] sm:$0xff]
        %v3188 = vld [vmem:[#allocation2 + $0xe1] sm:$0xff]
        %v3189 = vld [vmem:[#allocation2 + $0xf1] sm:$0xff]
        %v3190 = vld [vmem:[#allocation2 + $0xf9] sm:$0xff]
        %v3191 = vld [vmem:[#allocation2 + $0x109] sm:$0xff]
        %v3192 = vld [vmem:[#allocation2 + $0x111] sm:$0xff]
        %v3193 = vld [vmem:[#allocation2 + $0x121] sm:$0xff]
        %v3194 = vld [vmem:[#allocation2 + $0x129] sm:$0xff]
        %v3195 = vld [vmem:[#allocation2 + $0x139] sm:$0xff]
        %v3196 = vld [vmem:[#allocation2 + $0x141] sm:$0xff]
        %v3197 = vld [vmem:[#allocation2 + $0x151] sm:$0xff]
        %v3198 = vld [vmem:[#allocation2 + $0x159] sm:$0xff]
        %v3199 = vld [vmem:[#allocation2 + $0x169] sm:$0xff]
        %v3200 = vld [vmem:[#allocation2 + $0x171] sm:$0xff]
        %3233 = vrot.lane.b32.xlu0 %v3169, 4
        %v3234 = vpop.permute.xlu0 %3233
        %3235 = vrot.lane.b32.xlu0 %v3170, 4
        %v3236 = vpop.permute.xlu0 %3235
        %3237 = vrot.lane.b32.xlu0 %v3171, 4
        %v3238 = vpop.permute.xlu0 %3237
        %3239 = vrot.lane.b32.xlu0 %v3172, 4
        %v3240 = vpop.permute.xlu0 %3239
        %3241 = vrot.lane.b32.xlu0 %v3173, 4
        %v3242 = vpop.permute.xlu0 %3241
        %3243 = vrot.lane.b32.xlu0 %v3174, 4
        %v3244 = vpop.permute.xlu0 %3243
        %3245 = vrot.lane.b32.xlu0 %v3175, 4
        %v3246 = vpop.permute.xlu0 %3245
        %3247 = vrot.lane.b32.xlu0 %v3176, 4
        %v3248 = vpop.permute.xlu0 %3247
        %3249 = vrot.lane.b32.xlu0 %v3177, 4
        %v3250 = vpop.permute.xlu0 %3249
        %3251 = vrot.lane.b32.xlu0 %v3178, 4
        %v3252 = vpop.permute.xlu0 %3251
        %3253 = vrot.lane.b32.xlu0 %v3179, 4
        %v3254 = vpop.permute.xlu0 %3253
        %3255 = vrot.lane.b32.xlu0 %v3180, 4
        %v3256 = vpop.permute.xlu0 %3255
        %3257 = vrot.lane.b32.xlu0 %v3181, 4
        %v3258 = vpop.permute.xlu0 %3257
        %3259 = vrot.lane.b32.xlu0 %v3182, 4
        %v3260 = vpop.permute.xlu0 %3259
        %3261 = vrot.lane.b32.xlu0 %v3183, 4
        %v3262 = vpop.permute.xlu0 %3261
        %3263 = vrot.lane.b32.xlu0 %v3184, 4
        %v3264 = vpop.permute.xlu0 %3263
        %3265 = vrot.lane.b32.xlu0 %v3185, 4
        %v3266 = vpop.permute.xlu0 %3265
        %3267 = vrot.lane.b32.xlu0 %v3186, 4
        %v3268 = vpop.permute.xlu0 %3267
        %3269 = vrot.lane.b32.xlu0 %v3187, 4
        %v3270 = vpop.permute.xlu0 %3269
        %3271 = vrot.lane.b32.xlu0 %v3188, 4
        %v3272 = vpop.permute.xlu0 %3271
        %3273 = vrot.lane.b32.xlu0 %v3189, 4
        %v3274 = vpop.permute.xlu0 %3273
        %3275 = vrot.lane.b32.xlu0 %v3190, 4
        %v3276 = vpop.permute.xlu0 %3275
        %3277 = vrot.lane.b32.xlu0 %v3191, 4
        %v3278 = vpop.permute.xlu0 %3277
        %3279 = vrot.lane.b32.xlu0 %v3192, 4
        %v3280 = vpop.permute.xlu0 %3279
        %3281 = vrot.lane.b32.xlu0 %v3193, 4
        %v3282 = vpop.permute.xlu0 %3281
        %3283 = vrot.lane.b32.xlu0 %v3194, 4
        %v3284 = vpop.permute.xlu0 %3283
        %3285 = vrot.lane.b32.xlu0 %v3195, 4
        %v3286 = vpop.permute.xlu0 %3285
        %3287 = vrot.lane.b32.xlu0 %v3196, 4
        %v3288 = vpop.permute.xlu0 %3287
        %3289 = vrot.lane.b32.xlu0 %v3197, 4
        %v3290 = vpop.permute.xlu0 %3289
        %3291 = vrot.lane.b32.xlu0 %v3198, 4
        %v3292 = vpop.permute.xlu0 %3291
        %3293 = vrot.lane.b32.xlu0 %v3199, 4
        %v3294 = vpop.permute.xlu0 %3293
        %3295 = vrot.lane.b32.xlu0 %v3200, 4
        %v3296 = vpop.permute.xlu0 %3295
        %3329 = vst.msk [vmem:[#allocation3] sm:$0xff] %vm1049, %v3234
        %3330 = vst.msk [vmem:[#allocation3 + $0x8] sm:$0xff] %vm1049, %v3236
        %3331 = vst.msk [vmem:[#allocation3 + $0x10] sm:$0xff] %vm1049, %v3238
        %3332 = vst.msk [vmem:[#allocation3 + $0x18] sm:$0xff] %vm1049, %v3240
        %3333 = vst.msk [vmem:[#allocation3 + $0x20] sm:$0xff] %vm1049, %v3242
        %3334 = vst.msk [vmem:[#allocation3 + $0x28] sm:$0xff] %vm1049, %v3244
        %3335 = vst.msk [vmem:[#allocation3 + $0x30] sm:$0xff] %vm1049, %v3246
        %3336 = vst.msk [vmem:[#allocation3 + $0x38] sm:$0xff] %vm1049, %v3248
        %3337 = vst.msk [vmem:[#allocation3 + $0x40] sm:$0xff] %vm1049, %v3250
        %3338 = vst.msk [vmem:[#allocation3 + $0x48] sm:$0xff] %vm1049, %v3252
        %3339 = vst.msk [vmem:[#allocation3 + $0x50] sm:$0xff] %vm1049, %v3254
        %3340 = vst.msk [vmem:[#allocation3 + $0x58] sm:$0xff] %vm1049, %v3256
        %3341 = vst.msk [vmem:[#allocation3 + $0x60] sm:$0xff] %vm1049, %v3258
        %3342 = vst.msk [vmem:[#allocation3 + $0x68] sm:$0xff] %vm1049, %v3260
        %3343 = vst.msk [vmem:[#allocation3 + $0x70] sm:$0xff] %vm1049, %v3262
        %3344 = vst.msk [vmem:[#allocation3 + $0x78] sm:$0xff] %vm1049, %v3264
        %3345 = vst.msk [vmem:[#allocation3 + $0x80] sm:$0xff] %vm1049, %v3266
        %3346 = vst.msk [vmem:[#allocation3 + $0x88] sm:$0xff] %vm1049, %v3268
        %3347 = vst.msk [vmem:[#allocation3 + $0x90] sm:$0xff] %vm1049, %v3270
        %3348 = vst.msk [vmem:[#allocation3 + $0x98] sm:$0xff] %vm1049, %v3272
        %3349 = vst.msk [vmem:[#allocation3 + $0xa0] sm:$0xff] %vm1049, %v3274
        %3350 = vst.msk [vmem:[#allocation3 + $0xa8] sm:$0xff] %vm1049, %v3276
        %3351 = vst.msk [vmem:[#allocation3 + $0xb0] sm:$0xff] %vm1049, %v3278
        %3352 = vst.msk [vmem:[#allocation3 + $0xb8] sm:$0xff] %vm1049, %v3280
        %3353 = vst.msk [vmem:[#allocation3 + $0xc0] sm:$0xff] %vm1049, %v3282
        %3354 = vst.msk [vmem:[#allocation3 + $0xc8] sm:$0xff] %vm1049, %v3284
        %3355 = vst.msk [vmem:[#allocation3 + $0xd0] sm:$0xff] %vm1049, %v3286
        %3356 = vst.msk [vmem:[#allocation3 + $0xd8] sm:$0xff] %vm1049, %v3288
        %3357 = vst.msk [vmem:[#allocation3 + $0xe0] sm:$0xff] %vm1049, %v3290
        %3358 = vst.msk [vmem:[#allocation3 + $0xe8] sm:$0xff] %vm1049, %v3292
        %3359 = vst.msk [vmem:[#allocation3 + $0xf0] sm:$0xff] %vm1049, %v3294
        %3360 = vst.msk [vmem:[#allocation3 + $0xf8] sm:$0xff] %vm1049, %v3296
        %v3361 = vld [vmem:[#allocation2 + $0x2] sm:$0xff]
        %v3362 = vld [vmem:[#allocation2 + $0xa] sm:$0xff]
        %v3363 = vld [vmem:[#allocation2 + $0x1a] sm:$0xff]
        %v3364 = vld [vmem:[#allocation2 + $0x22] sm:$0xff]
        %v3365 = vld [vmem:[#allocation2 + $0x32] sm:$0xff]
        %v3366 = vld [vmem:[#allocation2 + $0x3a] sm:$0xff]
        %v3367 = vld [vmem:[#allocation2 + $0x4a] sm:$0xff]
        %v3368 = vld [vmem:[#allocation2 + $0x52] sm:$0xff]
        %v3369 = vld [vmem:[#allocation2 + $0x62] sm:$0xff]
        %v3370 = vld [vmem:[#allocation2 + $0x6a] sm:$0xff]
        %v3371 = vld [vmem:[#allocation2 + $0x7a] sm:$0xff]
        %v3372 = vld [vmem:[#allocation2 + $0x82] sm:$0xff]
        %v3373 = vld [vmem:[#allocation2 + $0x92] sm:$0xff]
        %v3374 = vld [vmem:[#allocation2 + $0x9a] sm:$0xff]
        %v3375 = vld [vmem:[#allocation2 + $0xaa] sm:$0xff]
        %v3376 = vld [vmem:[#allocation2 + $0xb2] sm:$0xff]
        %v3377 = vld [vmem:[#allocation2 + $0xc2] sm:$0xff]
        %v3378 = vld [vmem:[#allocation2 + $0xca] sm:$0xff]
        %v3379 = vld [vmem:[#allocation2 + $0xda] sm:$0xff]
        %v3380 = vld [vmem:[#allocation2 + $0xe2] sm:$0xff]
        %v3381 = vld [vmem:[#allocation2 + $0xf2] sm:$0xff]
        %v3382 = vld [vmem:[#allocation2 + $0xfa] sm:$0xff]
        %v3383 = vld [vmem:[#allocation2 + $0x10a] sm:$0xff]
        %v3384 = vld [vmem:[#allocation2 + $0x112] sm:$0xff]
        %v3385 = vld [vmem:[#allocation2 + $0x122] sm:$0xff]
        %v3386 = vld [vmem:[#allocation2 + $0x12a] sm:$0xff]
        %v3387 = vld [vmem:[#allocation2 + $0x13a] sm:$0xff]
        %v3388 = vld [vmem:[#allocation2 + $0x142] sm:$0xff]
        %v3389 = vld [vmem:[#allocation2 + $0x152] sm:$0xff]
        %v3390 = vld [vmem:[#allocation2 + $0x15a] sm:$0xff]
        %v3391 = vld [vmem:[#allocation2 + $0x16a] sm:$0xff]
        %v3392 = vld [vmem:[#allocation2 + $0x172] sm:$0xff]
        %3425 = vrot.lane.b32.xlu0 %v3361, 8
        %v3426 = vpop.permute.xlu0 %3425
        %3427 = vrot.lane.b32.xlu0 %v3362, 8
        %v3428 = vpop.permute.xlu0 %3427
        %3429 = vrot.lane.b32.xlu0 %v3363, 8
        %v3430 = vpop.permute.xlu0 %3429
        %3431 = vrot.lane.b32.xlu0 %v3364, 8
        %v3432 = vpop.permute.xlu0 %3431
        %3433 = vrot.lane.b32.xlu0 %v3365, 8
        %v3434 = vpop.permute.xlu0 %3433
        %3435 = vrot.lane.b32.xlu0 %v3366, 8
        %v3436 = vpop.permute.xlu0 %3435
        %3437 = vrot.lane.b32.xlu0 %v3367, 8
        %v3438 = vpop.permute.xlu0 %3437
        %3439 = vrot.lane.b32.xlu0 %v3368, 8
        %v3440 = vpop.permute.xlu0 %3439
        %3441 = vrot.lane.b32.xlu0 %v3369, 8
        %v3442 = vpop.permute.xlu0 %3441
        %3443 = vrot.lane.b32.xlu0 %v3370, 8
        %v3444 = vpop.permute.xlu0 %3443
        %3445 = vrot.lane.b32.xlu0 %v3371, 8
        %v3446 = vpop.permute.xlu0 %3445
        %3447 = vrot.lane.b32.xlu0 %v3372, 8
        %v3448 = vpop.permute.xlu0 %3447
        %3449 = vrot.lane.b32.xlu0 %v3373, 8
        %v3450 = vpop.permute.xlu0 %3449
        %3451 = vrot.lane.b32.xlu0 %v3374, 8
        %v3452 = vpop.permute.xlu0 %3451
        %3453 = vrot.lane.b32.xlu0 %v3375, 8
        %v3454 = vpop.permute.xlu0 %3453
        %3455 = vrot.lane.b32.xlu0 %v3376, 8
        %v3456 = vpop.permute.xlu0 %3455
        %3457 = vrot.lane.b32.xlu0 %v3377, 8
        %v3458 = vpop.permute.xlu0 %3457
        %3459 = vrot.lane.b32.xlu0 %v3378, 8
        %v3460 = vpop.permute.xlu0 %3459
        %3461 = vrot.lane.b32.xlu0 %v3379, 8
        %v3462 = vpop.permute.xlu0 %3461
        %3463 = vrot.lane.b32.xlu0 %v3380, 8
        %v3464 = vpop.permute.xlu0 %3463
        %3465 = vrot.lane.b32.xlu0 %v3381, 8
        %v3466 = vpop.permute.xlu0 %3465
        %3467 = vrot.lane.b32.xlu0 %v3382, 8
        %v3468 = vpop.permute.xlu0 %3467
        %3469 = vrot.lane.b32.xlu0 %v3383, 8
        %v3470 = vpop.permute.xlu0 %3469
        %3471 = vrot.lane.b32.xlu0 %v3384, 8
        %v3472 = vpop.permute.xlu0 %3471
        %3473 = vrot.lane.b32.xlu0 %v3385, 8
        %v3474 = vpop.permute.xlu0 %3473
        %3475 = vrot.lane.b32.xlu0 %v3386, 8
        %v3476 = vpop.permute.xlu0 %3475
        %3477 = vrot.lane.b32.xlu0 %v3387, 8
        %v3478 = vpop.permute.xlu0 %3477
        %3479 = vrot.lane.b32.xlu0 %v3388, 8
        %v3480 = vpop.permute.xlu0 %3479
        %3481 = vrot.lane.b32.xlu0 %v3389, 8
        %v3482 = vpop.permute.xlu0 %3481
        %3483 = vrot.lane.b32.xlu0 %v3390, 8
        %v3484 = vpop.permute.xlu0 %3483
        %3485 = vrot.lane.b32.xlu0 %v3391, 8
        %v3486 = vpop.permute.xlu0 %3485
        %3487 = vrot.lane.b32.xlu0 %v3392, 8
        %v3488 = vpop.permute.xlu0 %3487
        %3521 = vst.msk [vmem:[#allocation3] sm:$0xff] %vm1242, %v3426
        %3522 = vst.msk [vmem:[#allocation3 + $0x8] sm:$0xff] %vm1242, %v3428
        %3523 = vst.msk [vmem:[#allocation3 + $0x10] sm:$0xff] %vm1242, %v3430
        %3524 = vst.msk [vmem:[#allocation3 + $0x18] sm:$0xff] %vm1242, %v3432
        %3525 = vst.msk [vmem:[#allocation3 + $0x20] sm:$0xff] %vm1242, %v3434
        %3526 = vst.msk [vmem:[#allocation3 + $0x28] sm:$0xff] %vm1242, %v3436
        %3527 = vst.msk [vmem:[#allocation3 + $0x30] sm:$0xff] %vm1242, %v3438
        %3528 = vst.msk [vmem:[#allocation3 + $0x38] sm:$0xff] %vm1242, %v3440
        %3529 = vst.msk [vmem:[#allocation3 + $0x40] sm:$0xff] %vm1242, %v3442
        %3530 = vst.msk [vmem:[#allocation3 + $0x48] sm:$0xff] %vm1242, %v3444
        %3531 = vst.msk [vmem:[#allocation3 + $0x50] sm:$0xff] %vm1242, %v3446
        %3532 = vst.msk [vmem:[#allocation3 + $0x58] sm:$0xff] %vm1242, %v3448
        %3533 = vst.msk [vmem:[#allocation3 + $0x60] sm:$0xff] %vm1242, %v3450
        %3534 = vst.msk [vmem:[#allocation3 + $0x68] sm:$0xff] %vm1242, %v3452
        %3535 = vst.msk [vmem:[#allocation3 + $0x70] sm:$0xff] %vm1242, %v3454
        %3536 = vst.msk [vmem:[#allocation3 + $0x78] sm:$0xff] %vm1242, %v3456
        %3537 = vst.msk [vmem:[#allocation3 + $0x80] sm:$0xff] %vm1242, %v3458
        %3538 = vst.msk [vmem:[#allocation3 + $0x88] sm:$0xff] %vm1242, %v3460
        %3539 = vst.msk [vmem:[#allocation3 + $0x90] sm:$0xff] %vm1242, %v3462
        %3540 = vst.msk [vmem:[#allocation3 + $0x98] sm:$0xff] %vm1242, %v3464
        %3541 = vst.msk [vmem:[#allocation3 + $0xa0] sm:$0xff] %vm1242, %v3466
        %3542 = vst.msk [vmem:[#allocation3 + $0xa8] sm:$0xff] %vm1242, %v3468
        %3543 = vst.msk [vmem:[#allocation3 + $0xb0] sm:$0xff] %vm1242, %v3470
        %3544 = vst.msk [vmem:[#allocation3 + $0xb8] sm:$0xff] %vm1242, %v3472
        %3545 = vst.msk [vmem:[#allocation3 + $0xc0] sm:$0xff] %vm1242, %v3474
        %3546 = vst.msk [vmem:[#allocation3 + $0xc8] sm:$0xff] %vm1242, %v3476
        %3547 = vst.msk [vmem:[#allocation3 + $0xd0] sm:$0xff] %vm1242, %v3478
        %3548 = vst.msk [vmem:[#allocation3 + $0xd8] sm:$0xff] %vm1242, %v3480
        %3549 = vst.msk [vmem:[#allocation3 + $0xe0] sm:$0xff] %vm1242, %v3482
        %3550 = vst.msk [vmem:[#allocation3 + $0xe8] sm:$0xff] %vm1242, %v3484
        %3551 = vst.msk [vmem:[#allocation3 + $0xf0] sm:$0xff] %vm1242, %v3486
        %3552 = vst.msk [vmem:[#allocation3 + $0xf8] sm:$0xff] %vm1242, %v3488
        %v3553 = vld [vmem:[%s792] sm:$0xff]
        %v3554 = vld [vmem:[%s792 + $0x8] sm:$0xff]
        %v3555 = vld [vmem:[%s792 + $0x18] sm:$0xff]
        %v3556 = vld [vmem:[%s792 + $0x20] sm:$0xff]
        %v3557 = vld [vmem:[%s792 + $0x30] sm:$0xff]
        %v3558 = vld [vmem:[%s792 + $0x38] sm:$0xff]
        %v3559 = vld [vmem:[%s792 + $0x48] sm:$0xff]
        %v3560 = vld [vmem:[%s792 + $0x50] sm:$0xff]
        %v3561 = vld [vmem:[%s792 + $0x60] sm:$0xff]
        %v3562 = vld [vmem:[%s792 + $0x68] sm:$0xff]
        %v3563 = vld [vmem:[%s792 + $0x78] sm:$0xff]
        %v3564 = vld [vmem:[%s792 + $0x80] sm:$0xff]
        %v3565 = vld [vmem:[%s792 + $0x90] sm:$0xff]
        %v3566 = vld [vmem:[%s792 + $0x98] sm:$0xff]
        %v3567 = vld [vmem:[%s792 + $0xa8] sm:$0xff]
        %v3568 = vld [vmem:[%s792 + $0xb0] sm:$0xff]
        %v3569 = vld [vmem:[%s792 + $0xc0] sm:$0xff]
        %v3570 = vld [vmem:[%s792 + $0xc8] sm:$0xff]
        %v3571 = vld [vmem:[%s792 + $0xd8] sm:$0xff]
        %v3572 = vld [vmem:[%s792 + $0xe0] sm:$0xff]
        %v3573 = vld [vmem:[%s792 + $0xf0] sm:$0xff]
        %v3574 = vld [vmem:[%s792 + $0xf8] sm:$0xff]
        %v3575 = vld [vmem:[%s792 + $0x108] sm:$0xff]
        %v3576 = vld [vmem:[%s792 + $0x110] sm:$0xff]
        %v3577 = vld [vmem:[%s792 + $0x120] sm:$0xff]
        %v3578 = vld [vmem:[%s792 + $0x128] sm:$0xff]
        %v3579 = vld [vmem:[%s792 + $0x138] sm:$0xff]
        %v3580 = vld [vmem:[%s792 + $0x140] sm:$0xff]
        %v3581 = vld [vmem:[%s792 + $0x150] sm:$0xff]
        %v3582 = vld [vmem:[%s792 + $0x158] sm:$0xff]
        %v3583 = vld [vmem:[%s792 + $0x168] sm:$0xff]
        %v3584 = vld [vmem:[%s792 + $0x170] sm:$0xff]
        %3617 = vrot.lane.b32.xlu0 %v3553, 12
        %v3618 = vpop.permute.xlu0 %3617
        %3619 = vrot.lane.b32.xlu0 %v3554, 12
        %v3620 = vpop.permute.xlu0 %3619
        %3621 = vrot.lane.b32.xlu0 %v3555, 12
        %v3622 = vpop.permute.xlu0 %3621
        %3623 = vrot.lane.b32.xlu0 %v3556, 12
        %v3624 = vpop.permute.xlu0 %3623
        %3625 = vrot.lane.b32.xlu0 %v3557, 12
        %v3626 = vpop.permute.xlu0 %3625
        %3627 = vrot.lane.b32.xlu0 %v3558, 12
        %v3628 = vpop.permute.xlu0 %3627
        %3629 = vrot.lane.b32.xlu0 %v3559, 12
        %v3630 = vpop.permute.xlu0 %3629
        %3631 = vrot.lane.b32.xlu0 %v3560, 12
        %v3632 = vpop.permute.xlu0 %3631
        %3633 = vrot.lane.b32.xlu0 %v3561, 12
        %v3634 = vpop.permute.xlu0 %3633
        %3635 = vrot.lane.b32.xlu0 %v3562, 12
        %v3636 = vpop.permute.xlu0 %3635
        %3637 = vrot.lane.b32.xlu0 %v3563, 12
        %v3638 = vpop.permute.xlu0 %3637
        %3639 = vrot.lane.b32.xlu0 %v3564, 12
        %v3640 = vpop.permute.xlu0 %3639
        %3641 = vrot.lane.b32.xlu0 %v3565, 12
        %v3642 = vpop.permute.xlu0 %3641
        %3643 = vrot.lane.b32.xlu0 %v3566, 12
        %v3644 = vpop.permute.xlu0 %3643
        %3645 = vrot.lane.b32.xlu0 %v3567, 12
        %v3646 = vpop.permute.xlu0 %3645
        %3647 = vrot.lane.b32.xlu0 %v3568, 12
        %v3648 = vpop.permute.xlu0 %3647
        %3649 = vrot.lane.b32.xlu0 %v3569, 12
        %v3650 = vpop.permute.xlu0 %3649
        %3651 = vrot.lane.b32.xlu0 %v3570, 12
        %v3652 = vpop.permute.xlu0 %3651
        %3653 = vrot.lane.b32.xlu0 %v3571, 12
        %v3654 = vpop.permute.xlu0 %3653
        %3655 = vrot.lane.b32.xlu0 %v3572, 12
        %v3656 = vpop.permute.xlu0 %3655
        %3657 = vrot.lane.b32.xlu0 %v3573, 12
        %v3658 = vpop.permute.xlu0 %3657
        %3659 = vrot.lane.b32.xlu0 %v3574, 12
        %v3660 = vpop.permute.xlu0 %3659
        %3661 = vrot.lane.b32.xlu0 %v3575, 12
        %v3662 = vpop.permute.xlu0 %3661
        %3663 = vrot.lane.b32.xlu0 %v3576, 12
        %v3664 = vpop.permute.xlu0 %3663
        %3665 = vrot.lane.b32.xlu0 %v3577, 12
        %v3666 = vpop.permute.xlu0 %3665
        %3667 = vrot.lane.b32.xlu0 %v3578, 12
        %v3668 = vpop.permute.xlu0 %3667
        %3669 = vrot.lane.b32.xlu0 %v3579, 12
        %v3670 = vpop.permute.xlu0 %3669
        %3671 = vrot.lane.b32.xlu0 %v3580, 12
        %v3672 = vpop.permute.xlu0 %3671
        %3673 = vrot.lane.b32.xlu0 %v3581, 12
        %v3674 = vpop.permute.xlu0 %3673
        %3675 = vrot.lane.b32.xlu0 %v3582, 12
        %v3676 = vpop.permute.xlu0 %3675
        %3677 = vrot.lane.b32.xlu0 %v3583, 12
        %v3678 = vpop.permute.xlu0 %3677
        %3679 = vrot.lane.b32.xlu0 %v3584, 12
        %v3680 = vpop.permute.xlu0 %3679
        %3713 = vst.msk [vmem:[#allocation3] sm:$0xff] %vm1435, %v3618
        %3714 = vst.msk [vmem:[#allocation3 + $0x8] sm:$0xff] %vm1435, %v3620
        %3715 = vst.msk [vmem:[#allocation3 + $0x10] sm:$0xff] %vm1435, %v3622
        %3716 = vst.msk [vmem:[#allocation3 + $0x18] sm:$0xff] %vm1435, %v3624
        %3717 = vst.msk [vmem:[#allocation3 + $0x20] sm:$0xff] %vm1435, %v3626
        %3718 = vst.msk [vmem:[#allocation3 + $0x28] sm:$0xff] %vm1435, %v3628
        %3719 = vst.msk [vmem:[#allocation3 + $0x30] sm:$0xff] %vm1435, %v3630
        %3720 = vst.msk [vmem:[#allocation3 + $0x38] sm:$0xff] %vm1435, %v3632
        %3721 = vst.msk [vmem:[#allocation3 + $0x40] sm:$0xff] %vm1435, %v3634
        %3722 = vst.msk [vmem:[#allocation3 + $0x48] sm:$0xff] %vm1435, %v3636
        %3723 = vst.msk [vmem:[#allocation3 + $0x50] sm:$0xff] %vm1435, %v3638
        %3724 = vst.msk [vmem:[#allocation3 + $0x58] sm:$0xff] %vm1435, %v3640
        %3725 = vst.msk [vmem:[#allocation3 + $0x60] sm:$0xff] %vm1435, %v3642
        %3726 = vst.msk [vmem:[#allocation3 + $0x68] sm:$0xff] %vm1435, %v3644
        %3727 = vst.msk [vmem:[#allocation3 + $0x70] sm:$0xff] %vm1435, %v3646
        %3728 = vst.msk [vmem:[#allocation3 + $0x78] sm:$0xff] %vm1435, %v3648
        %3729 = vst.msk [vmem:[#allocation3 + $0x80] sm:$0xff] %vm1435, %v3650
        %3730 = vst.msk [vmem:[#allocation3 + $0x88] sm:$0xff] %vm1435, %v3652
        %3731 = vst.msk [vmem:[#allocation3 + $0x90] sm:$0xff] %vm1435, %v3654
        %3732 = vst.msk [vmem:[#allocation3 + $0x98] sm:$0xff] %vm1435, %v3656
        %3733 = vst.msk [vmem:[#allocation3 + $0xa0] sm:$0xff] %vm1435, %v3658
        %3734 = vst.msk [vmem:[#allocation3 + $0xa8] sm:$0xff] %vm1435, %v3660
        %3735 = vst.msk [vmem:[#allocation3 + $0xb0] sm:$0xff] %vm1435, %v3662
        %3736 = vst.msk [vmem:[#allocation3 + $0xb8] sm:$0xff] %vm1435, %v3664
        %3737 = vst.msk [vmem:[#allocation3 + $0xc0] sm:$0xff] %vm1435, %v3666
        %3738 = vst.msk [vmem:[#allocation3 + $0xc8] sm:$0xff] %vm1435, %v3668
        %3739 = vst.msk [vmem:[#allocation3 + $0xd0] sm:$0xff] %vm1435, %v3670
        %3740 = vst.msk [vmem:[#allocation3 + $0xd8] sm:$0xff] %vm1435, %v3672
        %3741 = vst.msk [vmem:[#allocation3 + $0xe0] sm:$0xff] %vm1435, %v3674
        %3742 = vst.msk [vmem:[#allocation3 + $0xe8] sm:$0xff] %vm1435, %v3676
        %3743 = vst.msk [vmem:[#allocation3 + $0xf0] sm:$0xff] %vm1435, %v3678
        %3744 = vst.msk [vmem:[#allocation3 + $0xf8] sm:$0xff] %vm1435, %v3680
        %v3745 = vld [vmem:[%s792 + $0x1] sm:$0xff]
        %v3746 = vld [vmem:[%s792 + $0x9] sm:$0xff]
        %v3747 = vld [vmem:[%s792 + $0x19] sm:$0xff]
        %v3748 = vld [vmem:[%s792 + $0x21] sm:$0xff]
        %v3749 = vld [vmem:[%s792 + $0x31] sm:$0xff]
        %v3750 = vld [vmem:[%s792 + $0x39] sm:$0xff]
        %v3751 = vld [vmem:[%s792 + $0x49] sm:$0xff]
        %v3752 = vld [vmem:[%s792 + $0x51] sm:$0xff]
        %v3753 = vld [vmem:[%s792 + $0x61] sm:$0xff]
        %v3754 = vld [vmem:[%s792 + $0x69] sm:$0xff]
        %v3755 = vld [vmem:[%s792 + $0x79] sm:$0xff]
        %v3756 = vld [vmem:[%s792 + $0x81] sm:$0xff]
        %v3757 = vld [vmem:[%s792 + $0x91] sm:$0xff]
        %v3758 = vld [vmem:[%s792 + $0x99] sm:$0xff]
        %v3759 = vld [vmem:[%s792 + $0xa9] sm:$0xff]
        %v3760 = vld [vmem:[%s792 + $0xb1] sm:$0xff]
        %v3761 = vld [vmem:[%s792 + $0xc1] sm:$0xff]
        %v3762 = vld [vmem:[%s792 + $0xc9] sm:$0xff]
        %v3763 = vld [vmem:[%s792 + $0xd9] sm:$0xff]
        %v3764 = vld [vmem:[%s792 + $0xe1] sm:$0xff]
        %v3765 = vld [vmem:[%s792 + $0xf1] sm:$0xff]
        %v3766 = vld [vmem:[%s792 + $0xf9] sm:$0xff]
        %v3767 = vld [vmem:[%s792 + $0x109] sm:$0xff]
        %v3768 = vld [vmem:[%s792 + $0x111] sm:$0xff]
        %v3769 = vld [vmem:[%s792 + $0x121] sm:$0xff]
        %v3770 = vld [vmem:[%s792 + $0x129] sm:$0xff]
        %v3771 = vld [vmem:[%s792 + $0x139] sm:$0xff]
        %v3772 = vld [vmem:[%s792 + $0x141] sm:$0xff]
        %v3773 = vld [vmem:[%s792 + $0x151] sm:$0xff]
        %v3774 = vld [vmem:[%s792 + $0x159] sm:$0xff]
        %v3775 = vld [vmem:[%s792 + $0x169] sm:$0xff]
        %v3776 = vld [vmem:[%s792 + $0x171] sm:$0xff]
        %3809 = vrot.lane.b32.xlu0 %v3745, 16
        %v3810 = vpop.permute.xlu0 %3809
        %3811 = vrot.lane.b32.xlu0 %v3746, 16
        %v3812 = vpop.permute.xlu0 %3811
        %3813 = vrot.lane.b32.xlu0 %v3747, 16
        %v3814 = vpop.permute.xlu0 %3813
        %3815 = vrot.lane.b32.xlu0 %v3748, 16
        %v3816 = vpop.permute.xlu0 %3815
        %3817 = vrot.lane.b32.xlu0 %v3749, 16
        %v3818 = vpop.permute.xlu0 %3817
        %3819 = vrot.lane.b32.xlu0 %v3750, 16
        %v3820 = vpop.permute.xlu0 %3819
        %3821 = vrot.lane.b32.xlu0 %v3751, 16
        %v3822 = vpop.permute.xlu0 %3821
        %3823 = vrot.lane.b32.xlu0 %v3752, 16
        %v3824 = vpop.permute.xlu0 %3823
        %3825 = vrot.lane.b32.xlu0 %v3753, 16
        %v3826 = vpop.permute.xlu0 %3825
        %3827 = vrot.lane.b32.xlu0 %v3754, 16
        %v3828 = vpop.permute.xlu0 %3827
        %3829 = vrot.lane.b32.xlu0 %v3755, 16
        %v3830 = vpop.permute.xlu0 %3829
        %3831 = vrot.lane.b32.xlu0 %v3756, 16
        %v3832 = vpop.permute.xlu0 %3831
        %3833 = vrot.lane.b32.xlu0 %v3757, 16
        %v3834 = vpop.permute.xlu0 %3833
        %3835 = vrot.lane.b32.xlu0 %v3758, 16
        %v3836 = vpop.permute.xlu0 %3835
        %3837 = vrot.lane.b32.xlu0 %v3759, 16
        %v3838 = vpop.permute.xlu0 %3837
        %3839 = vrot.lane.b32.xlu0 %v3760, 16
        %v3840 = vpop.permute.xlu0 %3839
        %3841 = vrot.lane.b32.xlu0 %v3761, 16
        %v3842 = vpop.permute.xlu0 %3841
        %3843 = vrot.lane.b32.xlu0 %v3762, 16
        %v3844 = vpop.permute.xlu0 %3843
        %3845 = vrot.lane.b32.xlu0 %v3763, 16
        %v3846 = vpop.permute.xlu0 %3845
        %3847 = vrot.lane.b32.xlu0 %v3764, 16
        %v3848 = vpop.permute.xlu0 %3847
        %3849 = vrot.lane.b32.xlu0 %v3765, 16
        %v3850 = vpop.permute.xlu0 %3849
        %3851 = vrot.lane.b32.xlu0 %v3766, 16
        %v3852 = vpop.permute.xlu0 %3851
        %3853 = vrot.lane.b32.xlu0 %v3767, 16
        %v3854 = vpop.permute.xlu0 %3853
        %3855 = vrot.lane.b32.xlu0 %v3768, 16
        %v3856 = vpop.permute.xlu0 %3855
        %3857 = vrot.lane.b32.xlu0 %v3769, 16
        %v3858 = vpop.permute.xlu0 %3857
        %3859 = vrot.lane.b32.xlu0 %v3770, 16
        %v3860 = vpop.permute.xlu0 %3859
        %3861 = vrot.lane.b32.xlu0 %v3771, 16
        %v3862 = vpop.permute.xlu0 %3861
        %3863 = vrot.lane.b32.xlu0 %v3772, 16
        %v3864 = vpop.permute.xlu0 %3863
        %3865 = vrot.lane.b32.xlu0 %v3773, 16
        %v3866 = vpop.permute.xlu0 %3865
        %3867 = vrot.lane.b32.xlu0 %v3774, 16
        %v3868 = vpop.permute.xlu0 %3867
        %3869 = vrot.lane.b32.xlu0 %v3775, 16
        %v3870 = vpop.permute.xlu0 %3869
        %3871 = vrot.lane.b32.xlu0 %v3776, 16
        %v3872 = vpop.permute.xlu0 %3871
        %3905 = vst.msk [vmem:[#allocation3] sm:$0xff] %vm1628, %v3810
        %3906 = vst.msk [vmem:[#allocation3 + $0x8] sm:$0xff] %vm1628, %v3812
        %3907 = vst.msk [vmem:[#allocation3 + $0x10] sm:$0xff] %vm1628, %v3814
        %3908 = vst.msk [vmem:[#allocation3 + $0x18] sm:$0xff] %vm1628, %v3816
        %3909 = vst.msk [vmem:[#allocation3 + $0x20] sm:$0xff] %vm1628, %v3818
        %3910 = vst.msk [vmem:[#allocation3 + $0x28] sm:$0xff] %vm1628, %v3820
        %3911 = vst.msk [vmem:[#allocation3 + $0x30] sm:$0xff] %vm1628, %v3822
        %3912 = vst.msk [vmem:[#allocation3 + $0x38] sm:$0xff] %vm1628, %v3824
        %3913 = vst.msk [vmem:[#allocation3 + $0x40] sm:$0xff] %vm1628, %v3826
        %3914 = vst.msk [vmem:[#allocation3 + $0x48] sm:$0xff] %vm1628, %v3828
        %3915 = vst.msk [vmem:[#allocation3 + $0x50] sm:$0xff] %vm1628, %v3830
        %3916 = vst.msk [vmem:[#allocation3 + $0x58] sm:$0xff] %vm1628, %v3832
        %3917 = vst.msk [vmem:[#allocation3 + $0x60] sm:$0xff] %vm1628, %v3834
        %3918 = vst.msk [vmem:[#allocation3 + $0x68] sm:$0xff] %vm1628, %v3836
        %3919 = vst.msk [vmem:[#allocation3 + $0x70] sm:$0xff] %vm1628, %v3838
        %3920 = vst.msk [vmem:[#allocation3 + $0x78] sm:$0xff] %vm1628, %v3840
        %3921 = vst.msk [vmem:[#allocation3 + $0x80] sm:$0xff] %vm1628, %v3842
        %3922 = vst.msk [vmem:[#allocation3 + $0x88] sm:$0xff] %vm1628, %v3844
        %3923 = vst.msk [vmem:[#allocation3 + $0x90] sm:$0xff] %vm1628, %v3846
        %3924 = vst.msk [vmem:[#allocation3 + $0x98] sm:$0xff] %vm1628, %v3848
        %3925 = vst.msk [vmem:[#allocation3 + $0xa0] sm:$0xff] %vm1628, %v3850
        %3926 = vst.msk [vmem:[#allocation3 + $0xa8] sm:$0xff] %vm1628, %v3852
        %3927 = vst.msk [vmem:[#allocation3 + $0xb0] sm:$0xff] %vm1628, %v3854
        %3928 = vst.msk [vmem:[#allocation3 + $0xb8] sm:$0xff] %vm1628, %v3856
        %3929 = vst.msk [vmem:[#allocation3 + $0xc0] sm:$0xff] %vm1628, %v3858
        %3930 = vst.msk [vmem:[#allocation3 + $0xc8] sm:$0xff] %vm1628, %v3860
        %3931 = vst.msk [vmem:[#allocation3 + $0xd0] sm:$0xff] %vm1628, %v3862
        %3932 = vst.msk [vmem:[#allocation3 + $0xd8] sm:$0xff] %vm1628, %v3864
        %3933 = vst.msk [vmem:[#allocation3 + $0xe0] sm:$0xff] %vm1628, %v3866
        %3934 = vst.msk [vmem:[#allocation3 + $0xe8] sm:$0xff] %vm1628, %v3868
        %3935 = vst.msk [vmem:[#allocation3 + $0xf0] sm:$0xff] %vm1628, %v3870
        %3936 = vst.msk [vmem:[#allocation3 + $0xf8] sm:$0xff] %vm1628, %v3872
        %v3937 = vld [vmem:[%s792 + $0x2] sm:$0xff]
        %v3938 = vld [vmem:[%s792 + $0xa] sm:$0xff]
        %v3939 = vld [vmem:[%s792 + $0x1a] sm:$0xff]
        %v3940 = vld [vmem:[%s792 + $0x22] sm:$0xff]
        %v3941 = vld [vmem:[%s792 + $0x32] sm:$0xff]
        %v3942 = vld [vmem:[%s792 + $0x3a] sm:$0xff]
        %v3943 = vld [vmem:[%s792 + $0x4a] sm:$0xff]
        %v3944 = vld [vmem:[%s792 + $0x52] sm:$0xff]
        %v3945 = vld [vmem:[%s792 + $0x62] sm:$0xff]
        %v3946 = vld [vmem:[%s792 + $0x6a] sm:$0xff]
        %v3947 = vld [vmem:[%s792 + $0x7a] sm:$0xff]
        %v3948 = vld [vmem:[%s792 + $0x82] sm:$0xff]
        %v3949 = vld [vmem:[%s792 + $0x92] sm:$0xff]
        %v3950 = vld [vmem:[%s792 + $0x9a] sm:$0xff]
        %v3951 = vld [vmem:[%s792 + $0xaa] sm:$0xff]
        %v3952 = vld [vmem:[%s792 + $0xb2] sm:$0xff]
        %v3953 = vld [vmem:[%s792 + $0xc2] sm:$0xff]
        %v3954 = vld [vmem:[%s792 + $0xca] sm:$0xff]
        %v3955 = vld [vmem:[%s792 + $0xda] sm:$0xff]
        %v3956 = vld [vmem:[%s792 + $0xe2] sm:$0xff]
        %v3957 = vld [vmem:[%s792 + $0xf2] sm:$0xff]
        %v3958 = vld [vmem:[%s792 + $0xfa] sm:$0xff]
        %v3959 = vld [vmem:[%s792 + $0x10a] sm:$0xff]
        %v3960 = vld [vmem:[%s792 + $0x112] sm:$0xff]
        %v3961 = vld [vmem:[%s792 + $0x122] sm:$0xff]
        %v3962 = vld [vmem:[%s792 + $0x12a] sm:$0xff]
        %v3963 = vld [vmem:[%s792 + $0x13a] sm:$0xff]
        %v3964 = vld [vmem:[%s792 + $0x142] sm:$0xff]
        %v3965 = vld [vmem:[%s792 + $0x152] sm:$0xff]
        %v3966 = vld [vmem:[%s792 + $0x15a] sm:$0xff]
        %v3967 = vld [vmem:[%s792 + $0x16a] sm:$0xff]
        %v3968 = vld [vmem:[%s792 + $0x172] sm:$0xff]
        %4001 = vrot.lane.b32.xlu0 %v3937, 20
        %v4002 = vpop.permute.xlu0 %4001
        %4003 = vrot.lane.b32.xlu0 %v3938, 20
        %v4004 = vpop.permute.xlu0 %4003
        %4005 = vrot.lane.b32.xlu0 %v3939, 20
        %v4006 = vpop.permute.xlu0 %4005
        %4007 = vrot.lane.b32.xlu0 %v3940, 20
        %v4008 = vpop.permute.xlu0 %4007
        %4009 = vrot.lane.b32.xlu0 %v3941, 20
        %v4010 = vpop.permute.xlu0 %4009
        %4011 = vrot.lane.b32.xlu0 %v3942, 20
        %v4012 = vpop.permute.xlu0 %4011
        %4013 = vrot.lane.b32.xlu0 %v3943, 20
        %v4014 = vpop.permute.xlu0 %4013
        %4015 = vrot.lane.b32.xlu0 %v3944, 20
        %v4016 = vpop.permute.xlu0 %4015
        %4017 = vrot.lane.b32.xlu0 %v3945, 20
        %v4018 = vpop.permute.xlu0 %4017
        %4019 = vrot.lane.b32.xlu0 %v3946, 20
        %v4020 = vpop.permute.xlu0 %4019
        %4021 = vrot.lane.b32.xlu0 %v3947, 20
        %v4022 = vpop.permute.xlu0 %4021
        %4023 = vrot.lane.b32.xlu0 %v3948, 20
        %v4024 = vpop.permute.xlu0 %4023
        %4025 = vrot.lane.b32.xlu0 %v3949, 20
        %v4026 = vpop.permute.xlu0 %4025
        %4027 = vrot.lane.b32.xlu0 %v3950, 20
        %v4028 = vpop.permute.xlu0 %4027
        %4029 = vrot.lane.b32.xlu0 %v3951, 20
        %v4030 = vpop.permute.xlu0 %4029
        %4031 = vrot.lane.b32.xlu0 %v3952, 20
        %v4032 = vpop.permute.xlu0 %4031
        %4033 = vrot.lane.b32.xlu0 %v3953, 20
        %v4034 = vpop.permute.xlu0 %4033
        %4035 = vrot.lane.b32.xlu0 %v3954, 20
        %v4036 = vpop.permute.xlu0 %4035
        %4037 = vrot.lane.b32.xlu0 %v3955, 20
        %v4038 = vpop.permute.xlu0 %4037
        %4039 = vrot.lane.b32.xlu0 %v3956, 20
        %v4040 = vpop.permute.xlu0 %4039
        %4041 = vrot.lane.b32.xlu0 %v3957, 20
        %v4042 = vpop.permute.xlu0 %4041
        %4043 = vrot.lane.b32.xlu0 %v3958, 20
        %v4044 = vpop.permute.xlu0 %4043
        %4045 = vrot.lane.b32.xlu0 %v3959, 20
        %v4046 = vpop.permute.xlu0 %4045
        %4047 = vrot.lane.b32.xlu0 %v3960, 20
        %v4048 = vpop.permute.xlu0 %4047
        %4049 = vrot.lane.b32.xlu0 %v3961, 20
        %v4050 = vpop.permute.xlu0 %4049
        %4051 = vrot.lane.b32.xlu0 %v3962, 20
        %v4052 = vpop.permute.xlu0 %4051
        %4053 = vrot.lane.b32.xlu0 %v3963, 20
        %v4054 = vpop.permute.xlu0 %4053
        %4055 = vrot.lane.b32.xlu0 %v3964, 20
        %v4056 = vpop.permute.xlu0 %4055
        %4057 = vrot.lane.b32.xlu0 %v3965, 20
        %v4058 = vpop.permute.xlu0 %4057
        %4059 = vrot.lane.b32.xlu0 %v3966, 20
        %v4060 = vpop.permute.xlu0 %4059
        %4061 = vrot.lane.b32.xlu0 %v3967, 20
        %v4062 = vpop.permute.xlu0 %4061
        %4063 = vrot.lane.b32.xlu0 %v3968, 20
        %v4064 = vpop.permute.xlu0 %4063
        %4097 = vst.msk [vmem:[#allocation3] sm:$0xff] %vm1821, %v4002
        %4098 = vst.msk [vmem:[#allocation3 + $0x8] sm:$0xff] %vm1821, %v4004
        %4099 = vst.msk [vmem:[#allocation3 + $0x10] sm:$0xff] %vm1821, %v4006
        %4100 = vst.msk [vmem:[#allocation3 + $0x18] sm:$0xff] %vm1821, %v4008
        %4101 = vst.msk [vmem:[#allocation3 + $0x20] sm:$0xff] %vm1821, %v4010
        %4102 = vst.msk [vmem:[#allocation3 + $0x28] sm:$0xff] %vm1821, %v4012
        %4103 = vst.msk [vmem:[#allocation3 + $0x30] sm:$0xff] %vm1821, %v4014
        %4104 = vst.msk [vmem:[#allocation3 + $0x38] sm:$0xff] %vm1821, %v4016
        %4105 = vst.msk [vmem:[#allocation3 + $0x40] sm:$0xff] %vm1821, %v4018
        %4106 = vst.msk [vmem:[#allocation3 + $0x48] sm:$0xff] %vm1821, %v4020
        %4107 = vst.msk [vmem:[#allocation3 + $0x50] sm:$0xff] %vm1821, %v4022
        %4108 = vst.msk [vmem:[#allocation3 + $0x58] sm:$0xff] %vm1821, %v4024
        %4109 = vst.msk [vmem:[#allocation3 + $0x60] sm:$0xff] %vm1821, %v4026
        %4110 = vst.msk [vmem:[#allocation3 + $0x68] sm:$0xff] %vm1821, %v4028
        %4111 = vst.msk [vmem:[#allocation3 + $0x70] sm:$0xff] %vm1821, %v4030
        %4112 = vst.msk [vmem:[#allocation3 + $0x78] sm:$0xff] %vm1821, %v4032
        %4113 = vst.msk [vmem:[#allocation3 + $0x80] sm:$0xff] %vm1821, %v4034
        %4114 = vst.msk [vmem:[#allocation3 + $0x88] sm:$0xff] %vm1821, %v4036
        %4115 = vst.msk [vmem:[#allocation3 + $0x90] sm:$0xff] %vm1821, %v4038
        %4116 = vst.msk [vmem:[#allocation3 + $0x98] sm:$0xff] %vm1821, %v4040
        %4117 = vst.msk [vmem:[#allocation3 + $0xa0] sm:$0xff] %vm1821, %v4042
        %4118 = vst.msk [vmem:[#allocation3 + $0xa8] sm:$0xff] %vm1821, %v4044
        %4119 = vst.msk [vmem:[#allocation3 + $0xb0] sm:$0xff] %vm1821, %v4046
        %4120 = vst.msk [vmem:[#allocation3 + $0xb8] sm:$0xff] %vm1821, %v4048
        %4121 = vst.msk [vmem:[#allocation3 + $0xc0] sm:$0xff] %vm1821, %v4050
        %4122 = vst.msk [vmem:[#allocation3 + $0xc8] sm:$0xff] %vm1821, %v4052
        %4123 = vst.msk [vmem:[#allocation3 + $0xd0] sm:$0xff] %vm1821, %v4054
        %4124 = vst.msk [vmem:[#allocation3 + $0xd8] sm:$0xff] %vm1821, %v4056
        %4125 = vst.msk [vmem:[#allocation3 + $0xe0] sm:$0xff] %vm1821, %v4058
        %4126 = vst.msk [vmem:[#allocation3 + $0xe8] sm:$0xff] %vm1821, %v4060
        %4127 = vst.msk [vmem:[#allocation3 + $0xf0] sm:$0xff] %vm1821, %v4062
        %4128 = vst.msk [vmem:[#allocation3 + $0xf8] sm:$0xff] %vm1821, %v4064
        %v4129 = vld [vmem:[%s1854] sm:$0xff]
        %v4130 = vld [vmem:[%s1854 + $0x8] sm:$0xff]
        %v4131 = vld [vmem:[%s1854 + $0x18] sm:$0xff]
        %v4132 = vld [vmem:[%s1854 + $0x20] sm:$0xff]
        %v4133 = vld [vmem:[%s1854 + $0x30] sm:$0xff]
        %v4134 = vld [vmem:[%s1854 + $0x38] sm:$0xff]
        %v4135 = vld [vmem:[%s1854 + $0x48] sm:$0xff]
        %v4136 = vld [vmem:[%s1854 + $0x50] sm:$0xff]
        %v4137 = vld [vmem:[%s1854 + $0x60] sm:$0xff]
        %v4138 = vld [vmem:[%s1854 + $0x68] sm:$0xff]
        %v4139 = vld [vmem:[%s1854 + $0x78] sm:$0xff]
        %v4140 = vld [vmem:[%s1854 + $0x80] sm:$0xff]
        %v4141 = vld [vmem:[%s1854 + $0x90] sm:$0xff]
        %v4142 = vld [vmem:[%s1854 + $0x98] sm:$0xff]
        %v4143 = vld [vmem:[%s1854 + $0xa8] sm:$0xff]
        %v4144 = vld [vmem:[%s1854 + $0xb0] sm:$0xff]
        %v4145 = vld [vmem:[%s1854 + $0xc0] sm:$0xff]
        %v4146 = vld [vmem:[%s1854 + $0xc8] sm:$0xff]
        %v4147 = vld [vmem:[%s1854 + $0xd8] sm:$0xff]
        %v4148 = vld [vmem:[%s1854 + $0xe0] sm:$0xff]
        %v4149 = vld [vmem:[%s1854 + $0xf0] sm:$0xff]
        %v4150 = vld [vmem:[%s1854 + $0xf8] sm:$0xff]
        %v4151 = vld [vmem:[%s1854 + $0x108] sm:$0xff]
        %v4152 = vld [vmem:[%s1854 + $0x110] sm:$0xff]
        %v4153 = vld [vmem:[%s1854 + $0x120] sm:$0xff]
        %v4154 = vld [vmem:[%s1854 + $0x128] sm:$0xff]
        %v4155 = vld [vmem:[%s1854 + $0x138] sm:$0xff]
        %v4156 = vld [vmem:[%s1854 + $0x140] sm:$0xff]
        %v4157 = vld [vmem:[%s1854 + $0x150] sm:$0xff]
        %v4158 = vld [vmem:[%s1854 + $0x158] sm:$0xff]
        %v4159 = vld [vmem:[%s1854 + $0x168] sm:$0xff]
        %v4160 = vld [vmem:[%s1854 + $0x170] sm:$0xff]
        %4193 = vrot.lane.b32.xlu0 %v4129, 24
        %v4194 = vpop.permute.xlu0 %4193
        %4195 = vrot.lane.b32.xlu0 %v4130, 24
        %v4196 = vpop.permute.xlu0 %4195
        %4197 = vrot.lane.b32.xlu0 %v4131, 24
        %v4198 = vpop.permute.xlu0 %4197
        %4199 = vrot.lane.b32.xlu0 %v4132, 24
        %v4200 = vpop.permute.xlu0 %4199
        %4201 = vrot.lane.b32.xlu0 %v4133, 24
        %v4202 = vpop.permute.xlu0 %4201
        %4203 = vrot.lane.b32.xlu0 %v4134, 24
        %v4204 = vpop.permute.xlu0 %4203
        %4205 = vrot.lane.b32.xlu0 %v4135, 24
        %v4206 = vpop.permute.xlu0 %4205
        %4207 = vrot.lane.b32.xlu0 %v4136, 24
        %v4208 = vpop.permute.xlu0 %4207
        %4209 = vrot.lane.b32.xlu0 %v4137, 24
        %v4210 = vpop.permute.xlu0 %4209
        %4211 = vrot.lane.b32.xlu0 %v4138, 24
        %v4212 = vpop.permute.xlu0 %4211
        %4213 = vrot.lane.b32.xlu0 %v4139, 24
        %v4214 = vpop.permute.xlu0 %4213
        %4215 = vrot.lane.b32.xlu0 %v4140, 24
        %v4216 = vpop.permute.xlu0 %4215
        %4217 = vrot.lane.b32.xlu0 %v4141, 24
        %v4218 = vpop.permute.xlu0 %4217
        %4219 = vrot.lane.b32.xlu0 %v4142, 24
        %v4220 = vpop.permute.xlu0 %4219
        %4221 = vrot.lane.b32.xlu0 %v4143, 24
        %v4222 = vpop.permute.xlu0 %4221
        %4223 = vrot.lane.b32.xlu0 %v4144, 24
        %v4224 = vpop.permute.xlu0 %4223
        %4225 = vrot.lane.b32.xlu0 %v4145, 24
        %v4226 = vpop.permute.xlu0 %4225
        %4227 = vrot.lane.b32.xlu0 %v4146, 24
        %v4228 = vpop.permute.xlu0 %4227
        %4229 = vrot.lane.b32.xlu0 %v4147, 24
        %v4230 = vpop.permute.xlu0 %4229
        %4231 = vrot.lane.b32.xlu0 %v4148, 24
        %v4232 = vpop.permute.xlu0 %4231
        %4233 = vrot.lane.b32.xlu0 %v4149, 24
        %v4234 = vpop.permute.xlu0 %4233
        %4235 = vrot.lane.b32.xlu0 %v4150, 24
        %v4236 = vpop.permute.xlu0 %4235
        %4237 = vrot.lane.b32.xlu0 %v4151, 24
        %v4238 = vpop.permute.xlu0 %4237
        %4239 = vrot.lane.b32.xlu0 %v4152, 24
        %v4240 = vpop.permute.xlu0 %4239
        %4241 = vrot.lane.b32.xlu0 %v4153, 24
        %v4242 = vpop.permute.xlu0 %4241
        %4243 = vrot.lane.b32.xlu0 %v4154, 24
        %v4244 = vpop.permute.xlu0 %4243
        %4245 = vrot.lane.b32.xlu0 %v4155, 24
        %v4246 = vpop.permute.xlu0 %4245
        %4247 = vrot.lane.b32.xlu0 %v4156, 24
        %v4248 = vpop.permute.xlu0 %4247
        %4249 = vrot.lane.b32.xlu0 %v4157, 24
        %v4250 = vpop.permute.xlu0 %4249
        %4251 = vrot.lane.b32.xlu0 %v4158, 24
        %v4252 = vpop.permute.xlu0 %4251
        %4253 = vrot.lane.b32.xlu0 %v4159, 24
        %v4254 = vpop.permute.xlu0 %4253
        %4255 = vrot.lane.b32.xlu0 %v4160, 24
        %v4256 = vpop.permute.xlu0 %4255
        %4289 = vst.msk [vmem:[#allocation3] sm:$0xff] %vm2015, %v4194
        %4290 = vst.msk [vmem:[#allocation3 + $0x8] sm:$0xff] %vm2015, %v4196
        %4291 = vst.msk [vmem:[#allocation3 + $0x10] sm:$0xff] %vm2015, %v4198
        %4292 = vst.msk [vmem:[#allocation3 + $0x18] sm:$0xff] %vm2015, %v4200
        %4293 = vst.msk [vmem:[#allocation3 + $0x20] sm:$0xff] %vm2015, %v4202
        %4294 = vst.msk [vmem:[#allocation3 + $0x28] sm:$0xff] %vm2015, %v4204
        %4295 = vst.msk [vmem:[#allocation3 + $0x30] sm:$0xff] %vm2015, %v4206
        %4296 = vst.msk [vmem:[#allocation3 + $0x38] sm:$0xff] %vm2015, %v4208
        %4297 = vst.msk [vmem:[#allocation3 + $0x40] sm:$0xff] %vm2015, %v4210
        %4298 = vst.msk [vmem:[#allocation3 + $0x48] sm:$0xff] %vm2015, %v4212
        %4299 = vst.msk [vmem:[#allocation3 + $0x50] sm:$0xff] %vm2015, %v4214
        %4300 = vst.msk [vmem:[#allocation3 + $0x58] sm:$0xff] %vm2015, %v4216
        %4301 = vst.msk [vmem:[#allocation3 + $0x60] sm:$0xff] %vm2015, %v4218
        %4302 = vst.msk [vmem:[#allocation3 + $0x68] sm:$0xff] %vm2015, %v4220
        %4303 = vst.msk [vmem:[#allocation3 + $0x70] sm:$0xff] %vm2015, %v4222
        %4304 = vst.msk [vmem:[#allocation3 + $0x78] sm:$0xff] %vm2015, %v4224
        %4305 = vst.msk [vmem:[#allocation3 + $0x80] sm:$0xff] %vm2015, %v4226
        %4306 = vst.msk [vmem:[#allocation3 + $0x88] sm:$0xff] %vm2015, %v4228
        %4307 = vst.msk [vmem:[#allocation3 + $0x90] sm:$0xff] %vm2015, %v4230
        %4308 = vst.msk [vmem:[#allocation3 + $0x98] sm:$0xff] %vm2015, %v4232
        %4309 = vst.msk [vmem:[#allocation3 + $0xa0] sm:$0xff] %vm2015, %v4234
        %4310 = vst.msk [vmem:[#allocation3 + $0xa8] sm:$0xff] %vm2015, %v4236
        %4311 = vst.msk [vmem:[#allocation3 + $0xb0] sm:$0xff] %vm2015, %v4238
        %4312 = vst.msk [vmem:[#allocation3 + $0xb8] sm:$0xff] %vm2015, %v4240
        %4313 = vst.msk [vmem:[#allocation3 + $0xc0] sm:$0xff] %vm2015, %v4242
        %4314 = vst.msk [vmem:[#allocation3 + $0xc8] sm:$0xff] %vm2015, %v4244
        %4315 = vst.msk [vmem:[#allocation3 + $0xd0] sm:$0xff] %vm2015, %v4246
        %4316 = vst.msk [vmem:[#allocation3 + $0xd8] sm:$0xff] %vm2015, %v4248
        %4317 = vst.msk [vmem:[#allocation3 + $0xe0] sm:$0xff] %vm2015, %v4250
        %4318 = vst.msk [vmem:[#allocation3 + $0xe8] sm:$0xff] %vm2015, %v4252
        %4319 = vst.msk [vmem:[#allocation3 + $0xf0] sm:$0xff] %vm2015, %v4254
        %4320 = vst.msk [vmem:[#allocation3 + $0xf8] sm:$0xff] %vm2015, %v4256
        %v4321 = vld [vmem:[%s1854 + $0x1] sm:$0xff]
        %v4322 = vld [vmem:[%s1854 + $0x9] sm:$0xff]
        %v4323 = vld [vmem:[%s1854 + $0x19] sm:$0xff]
        %v4324 = vld [vmem:[%s1854 + $0x21] sm:$0xff]
        %v4325 = vld [vmem:[%s1854 + $0x31] sm:$0xff]
        %v4326 = vld [vmem:[%s1854 + $0x39] sm:$0xff]
        %v4327 = vld [vmem:[%s1854 + $0x49] sm:$0xff]
        %v4328 = vld [vmem:[%s1854 + $0x51] sm:$0xff]
        %v4329 = vld [vmem:[%s1854 + $0x61] sm:$0xff]
        %v4330 = vld [vmem:[%s1854 + $0x69] sm:$0xff]
        %v4331 = vld [vmem:[%s1854 + $0x79] sm:$0xff]
        %v4332 = vld [vmem:[%s1854 + $0x81] sm:$0xff]
        %v4333 = vld [vmem:[%s1854 + $0x91] sm:$0xff]
        %v4334 = vld [vmem:[%s1854 + $0x99] sm:$0xff]
        %v4335 = vld [vmem:[%s1854 + $0xa9] sm:$0xff]
        %v4336 = vld [vmem:[%s1854 + $0xb1] sm:$0xff]
        %v4337 = vld [vmem:[%s1854 + $0xc1] sm:$0xff]
        %v4338 = vld [vmem:[%s1854 + $0xc9] sm:$0xff]
        %v4339 = vld [vmem:[%s1854 + $0xd9] sm:$0xff]
        %v4340 = vld [vmem:[%s1854 + $0xe1] sm:$0xff]
        %v4341 = vld [vmem:[%s1854 + $0xf1] sm:$0xff]
        %v4342 = vld [vmem:[%s1854 + $0xf9] sm:$0xff]
        %v4343 = vld [vmem:[%s1854 + $0x109] sm:$0xff]
        %v4344 = vld [vmem:[%s1854 + $0x111] sm:$0xff]
        %v4345 = vld [vmem:[%s1854 + $0x121] sm:$0xff]
        %v4346 = vld [vmem:[%s1854 + $0x129] sm:$0xff]
        %v4347 = vld [vmem:[%s1854 + $0x139] sm:$0xff]
        %v4348 = vld [vmem:[%s1854 + $0x141] sm:$0xff]
        %v4349 = vld [vmem:[%s1854 + $0x151] sm:$0xff]
        %v4350 = vld [vmem:[%s1854 + $0x159] sm:$0xff]
        %v4351 = vld [vmem:[%s1854 + $0x169] sm:$0xff]
        %v4352 = vld [vmem:[%s1854 + $0x171] sm:$0xff]
        %4385 = vrot.lane.b32.xlu0 %v4321, 28
        %v4386 = vpop.permute.xlu0 %4385
        %4387 = vrot.lane.b32.xlu0 %v4322, 28
        %v4388 = vpop.permute.xlu0 %4387
        %4389 = vrot.lane.b32.xlu0 %v4323, 28
        %v4390 = vpop.permute.xlu0 %4389
        %4391 = vrot.lane.b32.xlu0 %v4324, 28
        %v4392 = vpop.permute.xlu0 %4391
        %4393 = vrot.lane.b32.xlu0 %v4325, 28
        %v4394 = vpop.permute.xlu0 %4393
        %4395 = vrot.lane.b32.xlu0 %v4326, 28
        %v4396 = vpop.permute.xlu0 %4395
        %4397 = vrot.lane.b32.xlu0 %v4327, 28
        %v4398 = vpop.permute.xlu0 %4397
        %4399 = vrot.lane.b32.xlu0 %v4328, 28
        %v4400 = vpop.permute.xlu0 %4399
        %4401 = vrot.lane.b32.xlu0 %v4329, 28
        %v4402 = vpop.permute.xlu0 %4401
        %4403 = vrot.lane.b32.xlu0 %v4330, 28
        %v4404 = vpop.permute.xlu0 %4403
        %4405 = vrot.lane.b32.xlu0 %v4331, 28
        %v4406 = vpop.permute.xlu0 %4405
        %4407 = vrot.lane.b32.xlu0 %v4332, 28
        %v4408 = vpop.permute.xlu0 %4407
        %4409 = vrot.lane.b32.xlu0 %v4333, 28
        %v4410 = vpop.permute.xlu0 %4409
        %4411 = vrot.lane.b32.xlu0 %v4334, 28
        %v4412 = vpop.permute.xlu0 %4411
        %4413 = vrot.lane.b32.xlu0 %v4335, 28
        %v4414 = vpop.permute.xlu0 %4413
        %4415 = vrot.lane.b32.xlu0 %v4336, 28
        %v4416 = vpop.permute.xlu0 %4415
        %4417 = vrot.lane.b32.xlu0 %v4337, 28
        %v4418 = vpop.permute.xlu0 %4417
        %4419 = vrot.lane.b32.xlu0 %v4338, 28
        %v4420 = vpop.permute.xlu0 %4419
        %4421 = vrot.lane.b32.xlu0 %v4339, 28
        %v4422 = vpop.permute.xlu0 %4421
        %4423 = vrot.lane.b32.xlu0 %v4340, 28
        %v4424 = vpop.permute.xlu0 %4423
        %4425 = vrot.lane.b32.xlu0 %v4341, 28
        %v4426 = vpop.permute.xlu0 %4425
        %4427 = vrot.lane.b32.xlu0 %v4342, 28
        %v4428 = vpop.permute.xlu0 %4427
        %4429 = vrot.lane.b32.xlu0 %v4343, 28
        %v4430 = vpop.permute.xlu0 %4429
        %4431 = vrot.lane.b32.xlu0 %v4344, 28
        %v4432 = vpop.permute.xlu0 %4431
        %4433 = vrot.lane.b32.xlu0 %v4345, 28
        %v4434 = vpop.permute.xlu0 %4433
        %4435 = vrot.lane.b32.xlu0 %v4346, 28
        %v4436 = vpop.permute.xlu0 %4435
        %4437 = vrot.lane.b32.xlu0 %v4347, 28
        %v4438 = vpop.permute.xlu0 %4437
        %4439 = vrot.lane.b32.xlu0 %v4348, 28
        %v4440 = vpop.permute.xlu0 %4439
        %4441 = vrot.lane.b32.xlu0 %v4349, 28
        %v4442 = vpop.permute.xlu0 %4441
        %4443 = vrot.lane.b32.xlu0 %v4350, 28
        %v4444 = vpop.permute.xlu0 %4443
        %4445 = vrot.lane.b32.xlu0 %v4351, 28
        %v4446 = vpop.permute.xlu0 %4445
        %4447 = vrot.lane.b32.xlu0 %v4352, 28
        %v4448 = vpop.permute.xlu0 %4447
        %4481 = vst.msk [vmem:[#allocation3] sm:$0xff] %vm2208, %v4386
        %4482 = vst.msk [vmem:[#allocation3 + $0x8] sm:$0xff] %vm2208, %v4388
        %4483 = vst.msk [vmem:[#allocation3 + $0x10] sm:$0xff] %vm2208, %v4390
        %4484 = vst.msk [vmem:[#allocation3 + $0x18] sm:$0xff] %vm2208, %v4392
        %4485 = vst.msk [vmem:[#allocation3 + $0x20] sm:$0xff] %vm2208, %v4394
        %4486 = vst.msk [vmem:[#allocation3 + $0x28] sm:$0xff] %vm2208, %v4396
        %4487 = vst.msk [vmem:[#allocation3 + $0x30] sm:$0xff] %vm2208, %v4398
        %4488 = vst.msk [vmem:[#allocation3 + $0x38] sm:$0xff] %vm2208, %v4400
        %4489 = vst.msk [vmem:[#allocation3 + $0x40] sm:$0xff] %vm2208, %v4402
        %4490 = vst.msk [vmem:[#allocation3 + $0x48] sm:$0xff] %vm2208, %v4404
        %4491 = vst.msk [vmem:[#allocation3 + $0x50] sm:$0xff] %vm2208, %v4406
        %4492 = vst.msk [vmem:[#allocation3 + $0x58] sm:$0xff] %vm2208, %v4408
        %4493 = vst.msk [vmem:[#allocation3 + $0x60] sm:$0xff] %vm2208, %v4410
        %4494 = vst.msk [vmem:[#allocation3 + $0x68] sm:$0xff] %vm2208, %v4412
        %4495 = vst.msk [vmem:[#allocation3 + $0x70] sm:$0xff] %vm2208, %v4414
        %4496 = vst.msk [vmem:[#allocation3 + $0x78] sm:$0xff] %vm2208, %v4416
        %4497 = vst.msk [vmem:[#allocation3 + $0x80] sm:$0xff] %vm2208, %v4418
        %4498 = vst.msk [vmem:[#allocation3 + $0x88] sm:$0xff] %vm2208, %v4420
        %4499 = vst.msk [vmem:[#allocation3 + $0x90] sm:$0xff] %vm2208, %v4422
        %4500 = vst.msk [vmem:[#allocation3 + $0x98] sm:$0xff] %vm2208, %v4424
        %4501 = vst.msk [vmem:[#allocation3 + $0xa0] sm:$0xff] %vm2208, %v4426
        %4502 = vst.msk [vmem:[#allocation3 + $0xa8] sm:$0xff] %vm2208, %v4428
        %4503 = vst.msk [vmem:[#allocation3 + $0xb0] sm:$0xff] %vm2208, %v4430
        %4504 = vst.msk [vmem:[#allocation3 + $0xb8] sm:$0xff] %vm2208, %v4432
        %4505 = vst.msk [vmem:[#allocation3 + $0xc0] sm:$0xff] %vm2208, %v4434
        %4506 = vst.msk [vmem:[#allocation3 + $0xc8] sm:$0xff] %vm2208, %v4436
        %4507 = vst.msk [vmem:[#allocation3 + $0xd0] sm:$0xff] %vm2208, %v4438
        %4508 = vst.msk [vmem:[#allocation3 + $0xd8] sm:$0xff] %vm2208, %v4440
        %4509 = vst.msk [vmem:[#allocation3 + $0xe0] sm:$0xff] %vm2208, %v4442
        %4510 = vst.msk [vmem:[#allocation3 + $0xe8] sm:$0xff] %vm2208, %v4444
        %4511 = vst.msk [vmem:[#allocation3 + $0xf0] sm:$0xff] %vm2208, %v4446
        %4512 = vst.msk [vmem:[#allocation3 + $0xf8] sm:$0xff] %vm2208, %v4448
        %v4513 = vld [vmem:[%s1854 + $0x2] sm:$0xff]
        %v4514 = vld [vmem:[%s1854 + $0xa] sm:$0xff]
        %v4515 = vld [vmem:[%s1854 + $0x1a] sm:$0xff]
        %v4516 = vld [vmem:[%s1854 + $0x22] sm:$0xff]
        %v4517 = vld [vmem:[%s1854 + $0x32] sm:$0xff]
        %v4518 = vld [vmem:[%s1854 + $0x3a] sm:$0xff]
        %v4519 = vld [vmem:[%s1854 + $0x4a] sm:$0xff]
        %v4520 = vld [vmem:[%s1854 + $0x52] sm:$0xff]
        %v4521 = vld [vmem:[%s1854 + $0x62] sm:$0xff]
        %v4522 = vld [vmem:[%s1854 + $0x6a] sm:$0xff]
        %v4523 = vld [vmem:[%s1854 + $0x7a] sm:$0xff]
        %v4524 = vld [vmem:[%s1854 + $0x82] sm:$0xff]
        %v4525 = vld [vmem:[%s1854 + $0x92] sm:$0xff]
        %v4526 = vld [vmem:[%s1854 + $0x9a] sm:$0xff]
        %v4527 = vld [vmem:[%s1854 + $0xaa] sm:$0xff]
        %v4528 = vld [vmem:[%s1854 + $0xb2] sm:$0xff]
        %v4529 = vld [vmem:[%s1854 + $0xc2] sm:$0xff]
        %v4530 = vld [vmem:[%s1854 + $0xca] sm:$0xff]
        %v4531 = vld [vmem:[%s1854 + $0xda] sm:$0xff]
        %v4532 = vld [vmem:[%s1854 + $0xe2] sm:$0xff]
        %v4533 = vld [vmem:[%s1854 + $0xf2] sm:$0xff]
        %v4534 = vld [vmem:[%s1854 + $0xfa] sm:$0xff]
        %v4535 = vld [vmem:[%s1854 + $0x10a] sm:$0xff]
        %v4536 = vld [vmem:[%s1854 + $0x112] sm:$0xff]
        %v4537 = vld [vmem:[%s1854 + $0x122] sm:$0xff]
        %v4538 = vld [vmem:[%s1854 + $0x12a] sm:$0xff]
        %v4539 = vld [vmem:[%s1854 + $0x13a] sm:$0xff]
        %v4540 = vld [vmem:[%s1854 + $0x142] sm:$0xff]
        %v4541 = vld [vmem:[%s1854 + $0x152] sm:$0xff]
        %v4542 = vld [vmem:[%s1854 + $0x15a] sm:$0xff]
        %v4543 = vld [vmem:[%s1854 + $0x16a] sm:$0xff]
        %v4544 = vld [vmem:[%s1854 + $0x172] sm:$0xff]
        %4577 = vrot.lane.b32.xlu0 %v4513, 32
        %v4578 = vpop.permute.xlu0 %4577
        %4579 = vrot.lane.b32.xlu0 %v4514, 32
        %v4580 = vpop.permute.xlu0 %4579
        %4581 = vrot.lane.b32.xlu0 %v4515, 32
        %v4582 = vpop.permute.xlu0 %4581
        %4583 = vrot.lane.b32.xlu0 %v4516, 32
        %v4584 = vpop.permute.xlu0 %4583
        %4585 = vrot.lane.b32.xlu0 %v4517, 32
        %v4586 = vpop.permute.xlu0 %4585
        %4587 = vrot.lane.b32.xlu0 %v4518, 32
        %v4588 = vpop.permute.xlu0 %4587
        %4589 = vrot.lane.b32.xlu0 %v4519, 32
        %v4590 = vpop.permute.xlu0 %4589
        %4591 = vrot.lane.b32.xlu0 %v4520, 32
        %v4592 = vpop.permute.xlu0 %4591
        %4593 = vrot.lane.b32.xlu0 %v4521, 32
        %v4594 = vpop.permute.xlu0 %4593
        %4595 = vrot.lane.b32.xlu0 %v4522, 32
        %v4596 = vpop.permute.xlu0 %4595
        %4597 = vrot.lane.b32.xlu0 %v4523, 32
        %v4598 = vpop.permute.xlu0 %4597
        %4599 = vrot.lane.b32.xlu0 %v4524, 32
        %v4600 = vpop.permute.xlu0 %4599
        %4601 = vrot.lane.b32.xlu0 %v4525, 32
        %v4602 = vpop.permute.xlu0 %4601
        %4603 = vrot.lane.b32.xlu0 %v4526, 32
        %v4604 = vpop.permute.xlu0 %4603
        %4605 = vrot.lane.b32.xlu0 %v4527, 32
        %v4606 = vpop.permute.xlu0 %4605
        %4607 = vrot.lane.b32.xlu0 %v4528, 32
        %v4608 = vpop.permute.xlu0 %4607
        %4609 = vrot.lane.b32.xlu0 %v4529, 32
        %v4610 = vpop.permute.xlu0 %4609
        %4611 = vrot.lane.b32.xlu0 %v4530, 32
        %v4612 = vpop.permute.xlu0 %4611
        %4613 = vrot.lane.b32.xlu0 %v4531, 32
        %v4614 = vpop.permute.xlu0 %4613
        %4615 = vrot.lane.b32.xlu0 %v4532, 32
        %v4616 = vpop.permute.xlu0 %4615
        %4617 = vrot.lane.b32.xlu0 %v4533, 32
        %v4618 = vpop.permute.xlu0 %4617
        %4619 = vrot.lane.b32.xlu0 %v4534, 32
        %v4620 = vpop.permute.xlu0 %4619
        %4621 = vrot.lane.b32.xlu0 %v4535, 32
        %v4622 = vpop.permute.xlu0 %4621
        %4623 = vrot.lane.b32.xlu0 %v4536, 32
        %v4624 = vpop.permute.xlu0 %4623
        %4625 = vrot.lane.b32.xlu0 %v4537, 32
        %v4626 = vpop.permute.xlu0 %4625
        %4627 = vrot.lane.b32.xlu0 %v4538, 32
        %v4628 = vpop.permute.xlu0 %4627
        %4629 = vrot.lane.b32.xlu0 %v4539, 32
        %v4630 = vpop.permute.xlu0 %4629
        %4631 = vrot.lane.b32.xlu0 %v4540, 32
        %v4632 = vpop.permute.xlu0 %4631
        %4633 = vrot.lane.b32.xlu0 %v4541, 32
        %v4634 = vpop.permute.xlu0 %4633
        %4635 = vrot.lane.b32.xlu0 %v4542, 32
        %v4636 = vpop.permute.xlu0 %4635
        %4637 = vrot.lane.b32.xlu0 %v4543, 32
        %v4638 = vpop.permute.xlu0 %4637
        %4639 = vrot.lane.b32.xlu0 %v4544, 32
        %v4640 = vpop.permute.xlu0 %4639
        %4673 = vst.msk [vmem:[#allocation3] sm:$0xff] %vm2401, %v4578
        %4674 = vst.msk [vmem:[#allocation3 + $0x8] sm:$0xff] %vm2401, %v4580
        %4675 = vst.msk [vmem:[#allocation3 + $0x10] sm:$0xff] %vm2401, %v4582
        %4676 = vst.msk [vmem:[#allocation3 + $0x18] sm:$0xff] %vm2401, %v4584
        %4677 = vst.msk [vmem:[#allocation3 + $0x20] sm:$0xff] %vm2401, %v4586
        %4678 = vst.msk [vmem:[#allocation3 + $0x28] sm:$0xff] %vm2401, %v4588
        %4679 = vst.msk [vmem:[#allocation3 + $0x30] sm:$0xff] %vm2401, %v4590
        %4680 = vst.msk [vmem:[#allocation3 + $0x38] sm:$0xff] %vm2401, %v4592
        %4681 = vst.msk [vmem:[#allocation3 + $0x40] sm:$0xff] %vm2401, %v4594
        %4682 = vst.msk [vmem:[#allocation3 + $0x48] sm:$0xff] %vm2401, %v4596
        %4683 = vst.msk [vmem:[#allocation3 + $0x50] sm:$0xff] %vm2401, %v4598
        %4684 = vst.msk [vmem:[#allocation3 + $0x58] sm:$0xff] %vm2401, %v4600
        %4685 = vst.msk [vmem:[#allocation3 + $0x60] sm:$0xff] %vm2401, %v4602
        %4686 = vst.msk [vmem:[#allocation3 + $0x68] sm:$0xff] %vm2401, %v4604
        %4687 = vst.msk [vmem:[#allocation3 + $0x70] sm:$0xff] %vm2401, %v4606
        %4688 = vst.msk [vmem:[#allocation3 + $0x78] sm:$0xff] %vm2401, %v4608
        %4689 = vst.msk [vmem:[#allocation3 + $0x80] sm:$0xff] %vm2401, %v4610
        %4690 = vst.msk [vmem:[#allocation3 + $0x88] sm:$0xff] %vm2401, %v4612
        %4691 = vst.msk [vmem:[#allocation3 + $0x90] sm:$0xff] %vm2401, %v4614
        %4692 = vst.msk [vmem:[#allocation3 + $0x98] sm:$0xff] %vm2401, %v4616
        %4693 = vst.msk [vmem:[#allocation3 + $0xa0] sm:$0xff] %vm2401, %v4618
        %4694 = vst.msk [vmem:[#allocation3 + $0xa8] sm:$0xff] %vm2401, %v4620
        %4695 = vst.msk [vmem:[#allocation3 + $0xb0] sm:$0xff] %vm2401, %v4622
        %4696 = vst.msk [vmem:[#allocation3 + $0xb8] sm:$0xff] %vm2401, %v4624
        %4697 = vst.msk [vmem:[#allocation3 + $0xc0] sm:$0xff] %vm2401, %v4626
        %4698 = vst.msk [vmem:[#allocation3 + $0xc8] sm:$0xff] %vm2401, %v4628
        %4699 = vst.msk [vmem:[#allocation3 + $0xd0] sm:$0xff] %vm2401, %v4630
        %4700 = vst.msk [vmem:[#allocation3 + $0xd8] sm:$0xff] %vm2401, %v4632
        %4701 = vst.msk [vmem:[#allocation3 + $0xe0] sm:$0xff] %vm2401, %v4634
        %4702 = vst.msk [vmem:[#allocation3 + $0xe8] sm:$0xff] %vm2401, %v4636
        %4703 = vst.msk [vmem:[#allocation3 + $0xf0] sm:$0xff] %vm2401, %v4638
        %4704 = vst.msk [vmem:[#allocation3 + $0xf8] sm:$0xff] %vm2401, %v4640
        %v4705 = vld [vmem:[#allocation3] sm:$0xff]
        %v4706 = vld [vmem:[#allocation3 + $0x8] sm:$0xff]
        %v4707 = vld [vmem:[#allocation3 + $0x10] sm:$0xff]
        %v4708 = vld [vmem:[#allocation3 + $0x18] sm:$0xff]
        %v4709 = vld [vmem:[#allocation3 + $0x20] sm:$0xff]
        %v4710 = vld [vmem:[#allocation3 + $0x28] sm:$0xff]
        %v4711 = vld [vmem:[#allocation3 + $0x30] sm:$0xff]
        %v4712 = vld [vmem:[#allocation3 + $0x38] sm:$0xff]
        %v4713 = vld [vmem:[#allocation3 + $0x40] sm:$0xff]
        %v4714 = vld [vmem:[#allocation3 + $0x48] sm:$0xff]
        %v4715 = vld [vmem:[#allocation3 + $0x50] sm:$0xff]
        %v4716 = vld [vmem:[#allocation3 + $0x58] sm:$0xff]
        %v4717 = vld [vmem:[#allocation3 + $0x60] sm:$0xff]
        %v4718 = vld [vmem:[#allocation3 + $0x68] sm:$0xff]
        %v4719 = vld [vmem:[#allocation3 + $0x70] sm:$0xff]
        %v4720 = vld [vmem:[#allocation3 + $0x78] sm:$0xff]
        %v4721 = vld [vmem:[#allocation3 + $0x80] sm:$0xff]
        %v4722 = vld [vmem:[#allocation3 + $0x88] sm:$0xff]
        %v4723 = vld [vmem:[#allocation3 + $0x90] sm:$0xff]
        %v4724 = vld [vmem:[#allocation3 + $0x98] sm:$0xff]
        %v4725 = vld [vmem:[#allocation3 + $0xa0] sm:$0xff]
        %v4726 = vld [vmem:[#allocation3 + $0xa8] sm:$0xff]
        %v4727 = vld [vmem:[#allocation3 + $0xb0] sm:$0xff]
        %v4728 = vld [vmem:[#allocation3 + $0xb8] sm:$0xff]
        %v4729 = vld [vmem:[#allocation3 + $0xc0] sm:$0xff]
        %v4730 = vld [vmem:[#allocation3 + $0xc8] sm:$0xff]
        %v4731 = vld [vmem:[#allocation3 + $0xd0] sm:$0xff]
        %v4732 = vld [vmem:[#allocation3 + $0xd8] sm:$0xff]
        %v4733 = vld [vmem:[#allocation3 + $0xe0] sm:$0xff]
        %v4734 = vld [vmem:[#allocation3 + $0xe8] sm:$0xff]
        %v4735 = vld [vmem:[#allocation3 + $0xf0] sm:$0xff]
        %v4736 = vld [vmem:[#allocation3 + $0xf8] sm:$0xff]
        %v4737 = vld [vmem:[%s3] sm:$0xff]
        %v4738 = vld [vmem:[%s3 + $0x8] sm:$0xff]
        %v4739 = vld [vmem:[%s3 + $0x10] sm:$0xff]
        %v4740 = vld [vmem:[%s3 + $0x18] sm:$0xff]
        %v4741 = vld [vmem:[%s3 + $0x20] sm:$0xf]
        %v4742 = vperm.slane %v3072, 0
        %v4744 = vsel %vm2472, %v4705, 0
        %v4747 = vsel %vm2472, %v4706, 0
        %v4750 = vsel %vm2472, %v4707, 0
        %v4753 = vsel %vm2472, %v4708, 0
        %v4756 = vsel %vm2472, %v4709, 0
        %v4759 = vsel %vm2472, %v4710, 0
        %v4762 = vsel %vm2472, %v4711, 0
        %v4765 = vsel %vm2472, %v4712, 0
        %v4768 = vsel %vm2472, %v4713, 0
        %v4771 = vsel %vm2472, %v4714, 0
        %v4774 = vsel %vm2472, %v4715, 0
        %v4777 = vsel %vm2472, %v4716, 0
        %v4780 = vsel %vm2472, %v4717, 0
        %v4783 = vsel %vm2472, %v4718, 0
        %v4786 = vsel %vm2472, %v4719, 0
        %v4789 = vsel %vm2472, %v4720, 0
        %v4792 = vsel %vm2472, %v4721, 0
        %v4795 = vsel %vm2472, %v4722, 0
        %v4798 = vsel %vm2472, %v4723, 0
        %v4801 = vsel %vm2472, %v4724, 0
        %v4804 = vsel %vm2472, %v4725, 0
        %v4807 = vsel %vm2472, %v4726, 0
        %v4810 = vsel %vm2472, %v4727, 0
        %v4813 = vsel %vm2472, %v4728, 0
        %v4816 = vsel %vm2472, %v4729, 0
        %v4819 = vsel %vm2472, %v4730, 0
        %v4822 = vsel %vm2472, %v4731, 0
        %v4825 = vsel %vm2472, %v4732, 0
        %v4828 = vsel %vm2472, %v4733, 0
        %v4831 = vsel %vm2472, %v4734, 0
        %v4834 = vsel %vm2472, %v4735, 0
        %v4837 = vsel %vm2472, %v4736, 0
        %v4840 = vsel %vm2569, %v4741, 0
        %4842 = vmatpush.msra.mxu0 0.0
        %4843 = vmatpush.msra.mxu0 0.0
        %4844 = vmatpush.msra.mxu0 0.0
        %4845 = vmatpush.msra.mxu0 0.0
        %4846 = vmatpush.msra.mxu0 0.0
        %4847 = vmatpush.msra.mxu0 0.0
        %4848 = vmatpush.msra.mxu0 0.0
        %4849 = vmatpush.msra.mxu0 0.0
        %4850 = vmatpush.msra.mxu0 0.0
        %4851 = vmatpush.msra.mxu0 0.0
        %4852 = vmatpush.msra.mxu0 0.0
        %4853 = vmatpush.msra.mxu0 %v4840
        %4854 = vmatpush.msra.mxu0 %v4740
        %4855 = vmatpush.msra.mxu0 %v4739
        %4856 = vmatpush.msra.mxu0 %v4738
        %4857 = vmatpush.msra.mxu0 %v4737
        %4858 = vmatmul.f32.gmra.mxu0 %v4744
        %v4859 = vpop.f32.mrf.mxu0
        %v4860 = vadd.f32 %v4742, %v4859
        %4861 = vmatmul.f32.gmra.mxu0 %v4747
        %v4862 = vpop.f32.mrf.mxu0
        %v4863 = vadd.f32 %v4742, %v4862
        %4864 = vmatmul.f32.gmra.mxu0 %v4750
        %v4865 = vpop.f32.mrf.mxu0
        %v4866 = vadd.f32 %v4742, %v4865
        %4867 = vmatmul.f32.gmra.mxu0 %v4753
        %v4868 = vpop.f32.mrf.mxu0
        %v4869 = vadd.f32 %v4742, %v4868
        %4870 = vmatmul.f32.gmra.mxu0 %v4756
        %v4871 = vpop.f32.mrf.mxu0
        %v4872 = vadd.f32 %v4742, %v4871
        %4873 = vmatmul.f32.gmra.mxu0 %v4759
        %v4874 = vpop.f32.mrf.mxu0
        %v4875 = vadd.f32 %v4742, %v4874
        %4876 = vmatmul.f32.gmra.mxu0 %v4762
        %v4877 = vpop.f32.mrf.mxu0
        %v4878 = vadd.f32 %v4742, %v4877
        %4879 = vmatmul.f32.gmra.mxu0 %v4765
        %v4880 = vpop.f32.mrf.mxu0
        %v4881 = vadd.f32 %v4742, %v4880
        %4882 = vmatmul.f32.gmra.mxu0 %v4768
        %v4883 = vpop.f32.mrf.mxu0
        %v4884 = vadd.f32 %v4742, %v4883
        %4885 = vmatmul.f32.gmra.mxu0 %v4771
        %v4886 = vpop.f32.mrf.mxu0
        %v4887 = vadd.f32 %v4742, %v4886
        %4888 = vmatmul.f32.gmra.mxu0 %v4774
        %v4889 = vpop.f32.mrf.mxu0
        %v4890 = vadd.f32 %v4742, %v4889
        %4891 = vmatmul.f32.gmra.mxu0 %v4777
        %v4892 = vpop.f32.mrf.mxu0
        %v4893 = vadd.f32 %v4742, %v4892
        %4894 = vmatmul.f32.gmra.mxu0 %v4780
        %v4895 = vpop.f32.mrf.mxu0
        %v4896 = vadd.f32 %v4742, %v4895
        %4897 = vmatmul.f32.gmra.mxu0 %v4783
        %v4898 = vpop.f32.mrf.mxu0
        %v4899 = vadd.f32 %v4742, %v4898
        %4900 = vmatmul.f32.gmra.mxu0 %v4786
        %v4901 = vpop.f32.mrf.mxu0
        %v4902 = vadd.f32 %v4742, %v4901
        %4903 = vmatmul.f32.gmra.mxu0 %v4789
        %v4904 = vpop.f32.mrf.mxu0
        %v4905 = vadd.f32 %v4742, %v4904
        %4906 = vmatmul.f32.gmra.mxu0 %v4792
        %v4907 = vpop.f32.mrf.mxu0
        %v4908 = vadd.f32 %v4742, %v4907
        %4909 = vmatmul.f32.gmra.mxu0 %v4795
        %v4910 = vpop.f32.mrf.mxu0
        %v4911 = vadd.f32 %v4742, %v4910
        %4912 = vmatmul.f32.gmra.mxu0 %v4798
        %v4913 = vpop.f32.mrf.mxu0
        %v4914 = vadd.f32 %v4742, %v4913
        %4915 = vmatmul.f32.gmra.mxu0 %v4801
        %v4916 = vpop.f32.mrf.mxu0
        %v4917 = vadd.f32 %v4742, %v4916
        %4918 = vmatmul.f32.gmra.mxu0 %v4804
        %v4919 = vpop.f32.mrf.mxu0
        %v4920 = vadd.f32 %v4742, %v4919
        %4921 = vmatmul.f32.gmra.mxu0 %v4807
        %v4922 = vpop.f32.mrf.mxu0
        %v4923 = vadd.f32 %v4742, %v4922
        %4924 = vmatmul.f32.gmra.mxu0 %v4810
        %v4925 = vpop.f32.mrf.mxu0
        %v4926 = vadd.f32 %v4742, %v4925
        %4927 = vmatmul.f32.gmra.mxu0 %v4813
        %v4928 = vpop.f32.mrf.mxu0
        %v4929 = vadd.f32 %v4742, %v4928
        %4930 = vmatmul.f32.gmra.mxu0 %v4816
        %v4931 = vpop.f32.mrf.mxu0
        %v4932 = vadd.f32 %v4742, %v4931
        %4933 = vmatmul.f32.gmra.mxu0 %v4819
        %v4934 = vpop.f32.mrf.mxu0
        %v4935 = vadd.f32 %v4742, %v4934
        %4936 = vmatmul.f32.gmra.mxu0 %v4822
        %v4937 = vpop.f32.mrf.mxu0
        %v4938 = vadd.f32 %v4742, %v4937
        %4939 = vmatmul.f32.gmra.mxu0 %v4825
        %v4940 = vpop.f32.mrf.mxu0
        %v4941 = vadd.f32 %v4742, %v4940
        %4942 = vmatmul.f32.gmra.mxu0 %v4828
        %v4943 = vpop.f32.mrf.mxu0
        %v4944 = vadd.f32 %v4742, %v4943
        %4945 = vmatmul.f32.gmra.mxu0 %v4831
        %v4946 = vpop.f32.mrf.mxu0
        %v4947 = vadd.f32 %v4742, %v4946
        %4948 = vmatmul.f32.gmra.mxu0 %v4834
        %v4949 = vpop.f32.mrf.mxu0
        %v4950 = vadd.f32 %v4742, %v4949
        %4951 = vmatmul.f32.gmra.mxu0 %v4837
        %v4952 = vpop.f32.mrf.mxu0
        %v4953 = vadd.f32 %v4742, %v4952
        %4954 = vdwg.mxu0
        %v4955 = vld [vmem:[%s5] sm:$0xf]
        %v4956 = vld [vmem:[%s6] sm:$0x1]
        %v4958 = vperm.slane %v4956, 0
        %v4961 = vsel %vm349, %v4860, 0
        %v4964 = vsel %vm349, %v4863, 0
        %v4967 = vsel %vm349, %v4866, 0
        %v4970 = vsel %vm349, %v4869, 0
        %v4973 = vsel %vm349, %v4872, 0
        %v4976 = vsel %vm349, %v4875, 0
        %v4979 = vsel %vm349, %v4878, 0
        %v4982 = vsel %vm349, %v4881, 0
        %v4985 = vsel %vm349, %v4884, 0
        %v4988 = vsel %vm349, %v4887, 0
        %v4991 = vsel %vm349, %v4890, 0
        %v4994 = vsel %vm349, %v4893, 0
        %v4997 = vsel %vm349, %v4896, 0
        %v5000 = vsel %vm349, %v4899, 0
        %v5003 = vsel %vm349, %v4902, 0
        %v5006 = vsel %vm349, %v4905, 0
        %v5009 = vsel %vm349, %v4908, 0
        %v5012 = vsel %vm349, %v4911, 0
        %v5015 = vsel %vm349, %v4914, 0
        %v5018 = vsel %vm349, %v4917, 0
        %v5021 = vsel %vm349, %v4920, 0
        %v5024 = vsel %vm349, %v4923, 0
        %v5027 = vsel %vm349, %v4926, 0
        %v5030 = vsel %vm349, %v4929, 0
        %v5033 = vsel %vm349, %v4932, 0
        %v5036 = vsel %vm349, %v4935, 0
        %v5039 = vsel %vm349, %v4938, 0
        %v5042 = vsel %vm349, %v4941, 0
        %v5045 = vsel %vm349, %v4944, 0
        %v5048 = vsel %vm349, %v4947, 0
        %v5051 = vsel %vm349, %v4950, 0
        %v5054 = vsel %vm349, %v4953, 0
        %v5057 = vsel %vm2569, %v4955, 0
        %5059 = vmatpush.msra.mxu0 0.0
        %5060 = vmatpush.msra.mxu0 0.0
        %5061 = vmatpush.msra.mxu0 0.0
        %5062 = vmatpush.msra.mxu0 0.0
        %5063 = vmatpush.msra.mxu0 0.0
        %5064 = vmatpush.msra.mxu0 0.0
        %5065 = vmatpush.msra.mxu0 0.0
        %5066 = vmatpush.msra.mxu0 0.0
        %5067 = vmatpush.msra.mxu0 0.0
        %5068 = vmatpush.msra.mxu0 0.0
        %5069 = vmatpush.msra.mxu0 0.0
        %5070 = vmatpush.msra.mxu0 0.0
        %5071 = vmatpush.msra.mxu0 0.0
        %5072 = vmatpush.msra.mxu0 0.0
        %5073 = vmatpush.msra.mxu0 0.0
        %5074 = vmatpush.msra.mxu0 %v5057
        %5075 = vmatmul.f32.gmra.mxu0 %v4961
        %v5076 = vpop.f32.mrf.mxu0
        %v5077 = vadd.f32 %v4958, %v5076
        %5078 = vmatmul.f32.gmra.mxu0 %v4964
        %v5079 = vpop.f32.mrf.mxu0
        %v5080 = vadd.f32 %v4958, %v5079
        %5081 = vmatmul.f32.gmra.mxu0 %v4967
        %v5082 = vpop.f32.mrf.mxu0
        %v5083 = vadd.f32 %v4958, %v5082
        %5084 = vmatmul.f32.gmra.mxu0 %v4970
        %v5085 = vpop.f32.mrf.mxu0
        %v5086 = vadd.f32 %v4958, %v5085
        %5087 = vmatmul.f32.gmra.mxu0 %v4973
        %v5088 = vpop.f32.mrf.mxu0
        %v5089 = vadd.f32 %v4958, %v5088
        %5090 = vmatmul.f32.gmra.mxu0 %v4976
        %v5091 = vpop.f32.mrf.mxu0
        %v5092 = vadd.f32 %v4958, %v5091
        %5093 = vmatmul.f32.gmra.mxu0 %v4979
        %v5094 = vpop.f32.mrf.mxu0
        %v5095 = vadd.f32 %v4958, %v5094
        %5096 = vmatmul.f32.gmra.mxu0 %v4982
        %v5097 = vpop.f32.mrf.mxu0
        %v5098 = vadd.f32 %v4958, %v5097
        %5099 = vmatmul.f32.gmra.mxu0 %v4985
        %v5100 = vpop.f32.mrf.mxu0
        %v5101 = vadd.f32 %v4958, %v5100
        %5102 = vmatmul.f32.gmra.mxu0 %v4988
        %v5103 = vpop.f32.mrf.mxu0
        %v5104 = vadd.f32 %v4958, %v5103
        %5105 = vmatmul.f32.gmra.mxu0 %v4991
        %v5106 = vpop.f32.mrf.mxu0
        %v5107 = vadd.f32 %v4958, %v5106
        %5108 = vmatmul.f32.gmra.mxu0 %v4994
        %v5109 = vpop.f32.mrf.mxu0
        %v5110 = vadd.f32 %v4958, %v5109
        %5111 = vmatmul.f32.gmra.mxu0 %v4997
        %v5112 = vpop.f32.mrf.mxu0
        %v5113 = vadd.f32 %v4958, %v5112
        %5114 = vmatmul.f32.gmra.mxu0 %v5000
        %v5115 = vpop.f32.mrf.mxu0
        %v5116 = vadd.f32 %v4958, %v5115
        %5117 = vmatmul.f32.gmra.mxu0 %v5003
        %v5118 = vpop.f32.mrf.mxu0
        %v5119 = vadd.f32 %v4958, %v5118
        %5120 = vmatmul.f32.gmra.mxu0 %v5006
        %v5121 = vpop.f32.mrf.mxu0
        %v5122 = vadd.f32 %v4958, %v5121
        %5123 = vmatmul.f32.gmra.mxu0 %v5009
        %v5124 = vpop.f32.mrf.mxu0
        %v5125 = vadd.f32 %v4958, %v5124
        %5126 = vmatmul.f32.gmra.mxu0 %v5012
        %v5127 = vpop.f32.mrf.mxu0
        %v5128 = vadd.f32 %v4958, %v5127
        %5129 = vmatmul.f32.gmra.mxu0 %v5015
        %v5130 = vpop.f32.mrf.mxu0
        %v5131 = vadd.f32 %v4958, %v5130
        %5132 = vmatmul.f32.gmra.mxu0 %v5018
        %v5133 = vpop.f32.mrf.mxu0
        %v5134 = vadd.f32 %v4958, %v5133
        %5135 = vmatmul.f32.gmra.mxu0 %v5021
        %v5136 = vpop.f32.mrf.mxu0
        %v5137 = vadd.f32 %v4958, %v5136
        %5138 = vmatmul.f32.gmra.mxu0 %v5024
        %v5139 = vpop.f32.mrf.mxu0
        %v5140 = vadd.f32 %v4958, %v5139
        %5141 = vmatmul.f32.gmra.mxu0 %v5027
        %v5142 = vpop.f32.mrf.mxu0
        %v5143 = vadd.f32 %v4958, %v5142
        %5144 = vmatmul.f32.gmra.mxu0 %v5030
        %v5145 = vpop.f32.mrf.mxu0
        %v5146 = vadd.f32 %v4958, %v5145
        %5147 = vmatmul.f32.gmra.mxu0 %v5033
        %v5148 = vpop.f32.mrf.mxu0
        %v5149 = vadd.f32 %v4958, %v5148
        %5150 = vmatmul.f32.gmra.mxu0 %v5036
        %v5151 = vpop.f32.mrf.mxu0
        %v5152 = vadd.f32 %v4958, %v5151
        %5153 = vmatmul.f32.gmra.mxu0 %v5039
        %v5154 = vpop.f32.mrf.mxu0
        %v5155 = vadd.f32 %v4958, %v5154
        %5156 = vmatmul.f32.gmra.mxu0 %v5042
        %v5157 = vpop.f32.mrf.mxu0
        %v5158 = vadd.f32 %v4958, %v5157
        %5159 = vmatmul.f32.gmra.mxu0 %v5045
        %v5160 = vpop.f32.mrf.mxu0
        %v5161 = vadd.f32 %v4958, %v5160
        %5162 = vmatmul.f32.gmra.mxu0 %v5048
        %v5163 = vpop.f32.mrf.mxu0
        %v5164 = vadd.f32 %v4958, %v5163
        %5165 = vmatmul.f32.gmra.mxu0 %v5051
        %v5166 = vpop.f32.mrf.mxu0
        %v5167 = vadd.f32 %v4958, %v5166
        %5168 = vmatmul.f32.gmra.mxu0 %v5054
        %v5169 = vpop.f32.mrf.mxu0
        %v5170 = vadd.f32 %v4958, %v5169
        %5171 = vdwg.mxu0
        %v5172 = vtanh.pop %v5077
        %v5173 = vtanh.pop %v5080
        %v5174 = vtanh.pop %v5083
        %v5175 = vtanh.pop %v5086
        %v5176 = vtanh.pop %v5089
        %v5177 = vtanh.pop %v5092
        %v5178 = vtanh.pop %v5095
        %v5179 = vtanh.pop %v5098
        %v5180 = vtanh.pop %v5101
        %v5181 = vtanh.pop %v5104
        %v5182 = vtanh.pop %v5107
        %v5183 = vtanh.pop %v5110
        %v5184 = vtanh.pop %v5113
        %v5185 = vtanh.pop %v5116
        %v5186 = vtanh.pop %v5119
        %v5187 = vtanh.pop %v5122
        %v5188 = vtanh.pop %v5125
        %v5189 = vtanh.pop %v5128
        %v5190 = vtanh.pop %v5131
        %v5191 = vtanh.pop %v5134
        %v5192 = vtanh.pop %v5137
        %v5193 = vtanh.pop %v5140
        %v5194 = vtanh.pop %v5143
        %v5195 = vtanh.pop %v5146
        %v5196 = vtanh.pop %v5149
        %v5197 = vtanh.pop %v5152
        %v5198 = vtanh.pop %v5155
        %v5199 = vtanh.pop %v5158
        %v5200 = vtanh.pop %v5161
        %v5201 = vtanh.pop %v5164
        %v5202 = vtanh.pop %v5167
        %v5203 = vtanh.pop %v5170
        %v5204 = vsub.f32 0.0, %v5077
        %v5205 = vsub.f32 0.0, %v5080
        %v5206 = vsub.f32 0.0, %v5083
        %v5207 = vsub.f32 0.0, %v5086
        %v5208 = vsub.f32 0.0, %v5089
        %v5209 = vsub.f32 0.0, %v5092
        %v5210 = vsub.f32 0.0, %v5095
        %v5211 = vsub.f32 0.0, %v5098
        %v5212 = vsub.f32 0.0, %v5101
        %v5213 = vsub.f32 0.0, %v5104
        %v5214 = vsub.f32 0.0, %v5107
        %v5215 = vsub.f32 0.0, %v5110
        %v5216 = vsub.f32 0.0, %v5113
        %v5217 = vsub.f32 0.0, %v5116
        %v5218 = vsub.f32 0.0, %v5119
        %v5219 = vsub.f32 0.0, %v5122
        %v5220 = vsub.f32 0.0, %v5125
        %v5221 = vsub.f32 0.0, %v5128
        %v5222 = vsub.f32 0.0, %v5131
        %v5223 = vsub.f32 0.0, %v5134
        %v5224 = vsub.f32 0.0, %v5137
        %v5225 = vsub.f32 0.0, %v5140
        %v5226 = vsub.f32 0.0, %v5143
        %v5227 = vsub.f32 0.0, %v5146
        %v5228 = vsub.f32 0.0, %v5149
        %v5229 = vsub.f32 0.0, %v5152
        %v5230 = vsub.f32 0.0, %v5155
        %v5231 = vsub.f32 0.0, %v5158
        %v5232 = vsub.f32 0.0, %v5161
        %v5233 = vsub.f32 0.0, %v5164
        %v5234 = vsub.f32 0.0, %v5167
        %v5235 = vsub.f32 0.0, %v5170
        %v5236 = vmul.f32 %v5204, 1.442695
        %v5237 = vpow.pop %v5236
        %v5238 = vmul.f32 %v5205, 1.442695
        %v5239 = vpow.pop %v5238
        %v5240 = vmul.f32 %v5206, 1.442695
        %v5241 = vpow.pop %v5240
        %v5242 = vmul.f32 %v5207, 1.442695
        %v5243 = vpow.pop %v5242
        %v5244 = vmul.f32 %v5208, 1.442695
        %v5245 = vpow.pop %v5244
        %v5246 = vmul.f32 %v5209, 1.442695
        %v5247 = vpow.pop %v5246
        %v5248 = vmul.f32 %v5210, 1.442695
        %v5249 = vpow.pop %v5248
        %v5250 = vmul.f32 %v5211, 1.442695
        %v5251 = vpow.pop %v5250
        %v5252 = vmul.f32 %v5212, 1.442695
        %v5253 = vpow.pop %v5252
        %v5254 = vmul.f32 %v5213, 1.442695
        %v5255 = vpow.pop %v5254
        %v5256 = vmul.f32 %v5214, 1.442695
        %v5257 = vpow.pop %v5256
        %v5258 = vmul.f32 %v5215, 1.442695
        %v5259 = vpow.pop %v5258
        %v5260 = vmul.f32 %v5216, 1.442695
        %v5261 = vpow.pop %v5260
        %v5262 = vmul.f32 %v5217, 1.442695
        %v5263 = vpow.pop %v5262
        %v5264 = vmul.f32 %v5218, 1.442695
        %v5265 = vpow.pop %v5264
        %v5266 = vmul.f32 %v5219, 1.442695
        %v5267 = vpow.pop %v5266
        %v5268 = vmul.f32 %v5220, 1.442695
        %v5269 = vpow.pop %v5268
        %v5270 = vmul.f32 %v5221, 1.442695
        %v5271 = vpow.pop %v5270
        %v5272 = vmul.f32 %v5222, 1.442695
        %v5273 = vpow.pop %v5272
        %v5274 = vmul.f32 %v5223, 1.442695
        %v5275 = vpow.pop %v5274
        %v5276 = vmul.f32 %v5224, 1.442695
        %v5277 = vpow.pop %v5276
        %v5278 = vmul.f32 %v5225, 1.442695
        %v5279 = vpow.pop %v5278
        %v5280 = vmul.f32 %v5226, 1.442695
        %v5281 = vpow.pop %v5280
        %v5282 = vmul.f32 %v5227, 1.442695
        %v5283 = vpow.pop %v5282
        %v5284 = vmul.f32 %v5228, 1.442695
        %v5285 = vpow.pop %v5284
        %v5286 = vmul.f32 %v5229, 1.442695
        %v5287 = vpow.pop %v5286
        %v5288 = vmul.f32 %v5230, 1.442695
        %v5289 = vpow.pop %v5288
        %v5290 = vmul.f32 %v5231, 1.442695
        %v5291 = vpow.pop %v5290
        %v5292 = vmul.f32 %v5232, 1.442695
        %v5293 = vpow.pop %v5292
        %v5294 = vmul.f32 %v5233, 1.442695
        %v5295 = vpow.pop %v5294
        %v5296 = vmul.f32 %v5234, 1.442695
        %v5297 = vpow.pop %v5296
        %v5298 = vmul.f32 %v5235, 1.442695
        %v5299 = vpow.pop %v5298
        %v5300 = vadd.f32 %v5237, 1.0
        %v5301 = vadd.f32 %v5239, 1.0
        %v5302 = vadd.f32 %v5241, 1.0
        %v5303 = vadd.f32 %v5243, 1.0
        %v5304 = vadd.f32 %v5245, 1.0
        %v5305 = vadd.f32 %v5247, 1.0
        %v5306 = vadd.f32 %v5249, 1.0
        %v5307 = vadd.f32 %v5251, 1.0
        %v5308 = vadd.f32 %v5253, 1.0
        %v5309 = vadd.f32 %v5255, 1.0
        %v5310 = vadd.f32 %v5257, 1.0
        %v5311 = vadd.f32 %v5259, 1.0
        %v5312 = vadd.f32 %v5261, 1.0
        %v5313 = vadd.f32 %v5263, 1.0
        %v5314 = vadd.f32 %v5265, 1.0
        %v5315 = vadd.f32 %v5267, 1.0
        %v5316 = vadd.f32 %v5269, 1.0
        %v5317 = vadd.f32 %v5271, 1.0
        %v5318 = vadd.f32 %v5273, 1.0
        %v5319 = vadd.f32 %v5275, 1.0
        %v5320 = vadd.f32 %v5277, 1.0
        %v5321 = vadd.f32 %v5279, 1.0
        %v5322 = vadd.f32 %v5281, 1.0
        %v5323 = vadd.f32 %v5283, 1.0
        %v5324 = vadd.f32 %v5285, 1.0
        %v5325 = vadd.f32 %v5287, 1.0
        %v5326 = vadd.f32 %v5289, 1.0
        %v5327 = vadd.f32 %v5291, 1.0
        %v5328 = vadd.f32 %v5293, 1.0
        %v5329 = vadd.f32 %v5295, 1.0
        %v5330 = vadd.f32 %v5297, 1.0
        %v5331 = vadd.f32 %v5299, 1.0
        %v5332 = vrcp.pop %v5300
        %v5333 = vmul.f32 %v5300, %v5332
        %v5334 = vsub.f32 1.0, %v5333
        %v5335 = vmul.f32 %v5332, %v5334
        %v5336 = vadd.f32 %v5332, %v5335
        %vm5337 = vweird.f32 %v5300
        %vm5338 = vweird.f32 %v5332
        %vm5339 = vmor %vm5337, %vm5338
        %v5340 = vsel %vm5339, %v5332, %v5336
        %v5341 = vand.u32 2147483647, %v5300
        %vm5342 = vcmp.eq.f32.partialorder %v5341, 8.507059e+37
        %v5343 = vand.u32 %v5300, 2147483648
        %v5344 = vor.u32 1.1754944e-38, %v5343
        %v5345 = vsel %vm5342, %v5344, %v5340
        %v5346 = vmul.f32 1.0, %v5345
        %v5347 = vrcp.pop %v5301
        %v5348 = vmul.f32 %v5301, %v5347
        %v5349 = vsub.f32 1.0, %v5348
        %v5350 = vmul.f32 %v5347, %v5349
        %v5351 = vadd.f32 %v5347, %v5350
        %vm5352 = vweird.f32 %v5301
        %vm5353 = vweird.f32 %v5347
        %vm5354 = vmor %vm5352, %vm5353
        %v5355 = vsel %vm5354, %v5347, %v5351
        %v5356 = vand.u32 2147483647, %v5301
        %vm5357 = vcmp.eq.f32.partialorder %v5356, 8.507059e+37
        %v5358 = vand.u32 %v5301, 2147483648
        %v5359 = vor.u32 1.1754944e-38, %v5358
        %v5360 = vsel %vm5357, %v5359, %v5355
        %v5361 = vmul.f32 1.0, %v5360
        %v5362 = vrcp.pop %v5302
        %v5363 = vmul.f32 %v5302, %v5362
        %v5364 = vsub.f32 1.0, %v5363
        %v5365 = vmul.f32 %v5362, %v5364
        %v5366 = vadd.f32 %v5362, %v5365
        %vm5367 = vweird.f32 %v5302
        %vm5368 = vweird.f32 %v5362
        %vm5369 = vmor %vm5367, %vm5368
        %v5370 = vsel %vm5369, %v5362, %v5366
        %v5371 = vand.u32 2147483647, %v5302
        %vm5372 = vcmp.eq.f32.partialorder %v5371, 8.507059e+37
        %v5373 = vand.u32 %v5302, 2147483648
        %v5374 = vor.u32 1.1754944e-38, %v5373
        %v5375 = vsel %vm5372, %v5374, %v5370
        %v5376 = vmul.f32 1.0, %v5375
        %v5377 = vrcp.pop %v5303
        %v5378 = vmul.f32 %v5303, %v5377
        %v5379 = vsub.f32 1.0, %v5378
        %v5380 = vmul.f32 %v5377, %v5379
        %v5381 = vadd.f32 %v5377, %v5380
        %vm5382 = vweird.f32 %v5303
        %vm5383 = vweird.f32 %v5377
        %vm5384 = vmor %vm5382, %vm5383
        %v5385 = vsel %vm5384, %v5377, %v5381
        %v5386 = vand.u32 2147483647, %v5303
        %vm5387 = vcmp.eq.f32.partialorder %v5386, 8.507059e+37
        %v5388 = vand.u32 %v5303, 2147483648
        %v5389 = vor.u32 1.1754944e-38, %v5388
        %v5390 = vsel %vm5387, %v5389, %v5385
        %v5391 = vmul.f32 1.0, %v5390
        %v5392 = vrcp.pop %v5304
        %v5393 = vmul.f32 %v5304, %v5392
        %v5394 = vsub.f32 1.0, %v5393
        %v5395 = vmul.f32 %v5392, %v5394
        %v5396 = vadd.f32 %v5392, %v5395
        %vm5397 = vweird.f32 %v5304
        %vm5398 = vweird.f32 %v5392
        %vm5399 = vmor %vm5397, %vm5398
        %v5400 = vsel %vm5399, %v5392, %v5396
        %v5401 = vand.u32 2147483647, %v5304
        %vm5402 = vcmp.eq.f32.partialorder %v5401, 8.507059e+37
        %v5403 = vand.u32 %v5304, 2147483648
        %v5404 = vor.u32 1.1754944e-38, %v5403
        %v5405 = vsel %vm5402, %v5404, %v5400
        %v5406 = vmul.f32 1.0, %v5405
        %v5407 = vrcp.pop %v5305
        %v5408 = vmul.f32 %v5305, %v5407
        %v5409 = vsub.f32 1.0, %v5408
        %v5410 = vmul.f32 %v5407, %v5409
        %v5411 = vadd.f32 %v5407, %v5410
        %vm5412 = vweird.f32 %v5305
        %vm5413 = vweird.f32 %v5407
        %vm5414 = vmor %vm5412, %vm5413
        %v5415 = vsel %vm5414, %v5407, %v5411
        %v5416 = vand.u32 2147483647, %v5305
        %vm5417 = vcmp.eq.f32.partialorder %v5416, 8.507059e+37
        %v5418 = vand.u32 %v5305, 2147483648
        %v5419 = vor.u32 1.1754944e-38, %v5418
        %v5420 = vsel %vm5417, %v5419, %v5415
        %v5421 = vmul.f32 1.0, %v5420
        %v5422 = vrcp.pop %v5306
        %v5423 = vmul.f32 %v5306, %v5422
        %v5424 = vsub.f32 1.0, %v5423
        %v5425 = vmul.f32 %v5422, %v5424
        %v5426 = vadd.f32 %v5422, %v5425
        %vm5427 = vweird.f32 %v5306
        %vm5428 = vweird.f32 %v5422
        %vm5429 = vmor %vm5427, %vm5428
        %v5430 = vsel %vm5429, %v5422, %v5426
        %v5431 = vand.u32 2147483647, %v5306
        %vm5432 = vcmp.eq.f32.partialorder %v5431, 8.507059e+37
        %v5433 = vand.u32 %v5306, 2147483648
        %v5434 = vor.u32 1.1754944e-38, %v5433
        %v5435 = vsel %vm5432, %v5434, %v5430
        %v5436 = vmul.f32 1.0, %v5435
        %v5437 = vrcp.pop %v5307
        %v5438 = vmul.f32 %v5307, %v5437
        %v5439 = vsub.f32 1.0, %v5438
        %v5440 = vmul.f32 %v5437, %v5439
        %v5441 = vadd.f32 %v5437, %v5440
        %vm5442 = vweird.f32 %v5307
        %vm5443 = vweird.f32 %v5437
        %vm5444 = vmor %vm5442, %vm5443
        %v5445 = vsel %vm5444, %v5437, %v5441
        %v5446 = vand.u32 2147483647, %v5307
        %vm5447 = vcmp.eq.f32.partialorder %v5446, 8.507059e+37
        %v5448 = vand.u32 %v5307, 2147483648
        %v5449 = vor.u32 1.1754944e-38, %v5448
        %v5450 = vsel %vm5447, %v5449, %v5445
        %v5451 = vmul.f32 1.0, %v5450
        %v5452 = vrcp.pop %v5308
        %v5453 = vmul.f32 %v5308, %v5452
        %v5454 = vsub.f32 1.0, %v5453
        %v5455 = vmul.f32 %v5452, %v5454
        %v5456 = vadd.f32 %v5452, %v5455
        %vm5457 = vweird.f32 %v5308
        %vm5458 = vweird.f32 %v5452
        %vm5459 = vmor %vm5457, %vm5458
        %v5460 = vsel %vm5459, %v5452, %v5456
        %v5461 = vand.u32 2147483647, %v5308
        %vm5462 = vcmp.eq.f32.partialorder %v5461, 8.507059e+37
        %v5463 = vand.u32 %v5308, 2147483648
        %v5464 = vor.u32 1.1754944e-38, %v5463
        %v5465 = vsel %vm5462, %v5464, %v5460
        %v5466 = vmul.f32 1.0, %v5465
        %v5467 = vrcp.pop %v5309
        %v5468 = vmul.f32 %v5309, %v5467
        %v5469 = vsub.f32 1.0, %v5468
        %v5470 = vmul.f32 %v5467, %v5469
        %v5471 = vadd.f32 %v5467, %v5470
        %vm5472 = vweird.f32 %v5309
        %vm5473 = vweird.f32 %v5467
        %vm5474 = vmor %vm5472, %vm5473
        %v5475 = vsel %vm5474, %v5467, %v5471
        %v5476 = vand.u32 2147483647, %v5309
        %vm5477 = vcmp.eq.f32.partialorder %v5476, 8.507059e+37
        %v5478 = vand.u32 %v5309, 2147483648
        %v5479 = vor.u32 1.1754944e-38, %v5478
        %v5480 = vsel %vm5477, %v5479, %v5475
        %v5481 = vmul.f32 1.0, %v5480
        %v5482 = vrcp.pop %v5310
        %v5483 = vmul.f32 %v5310, %v5482
        %v5484 = vsub.f32 1.0, %v5483
        %v5485 = vmul.f32 %v5482, %v5484
        %v5486 = vadd.f32 %v5482, %v5485
        %vm5487 = vweird.f32 %v5310
        %vm5488 = vweird.f32 %v5482
        %vm5489 = vmor %vm5487, %vm5488
        %v5490 = vsel %vm5489, %v5482, %v5486
        %v5491 = vand.u32 2147483647, %v5310
        %vm5492 = vcmp.eq.f32.partialorder %v5491, 8.507059e+37
        %v5493 = vand.u32 %v5310, 2147483648
        %v5494 = vor.u32 1.1754944e-38, %v5493
        %v5495 = vsel %vm5492, %v5494, %v5490
        %v5496 = vmul.f32 1.0, %v5495
        %v5497 = vrcp.pop %v5311
        %v5498 = vmul.f32 %v5311, %v5497
        %v5499 = vsub.f32 1.0, %v5498
        %v5500 = vmul.f32 %v5497, %v5499
        %v5501 = vadd.f32 %v5497, %v5500
        %vm5502 = vweird.f32 %v5311
        %vm5503 = vweird.f32 %v5497
        %vm5504 = vmor %vm5502, %vm5503
        %v5505 = vsel %vm5504, %v5497, %v5501
        %v5506 = vand.u32 2147483647, %v5311
        %vm5507 = vcmp.eq.f32.partialorder %v5506, 8.507059e+37
        %v5508 = vand.u32 %v5311, 2147483648
        %v5509 = vor.u32 1.1754944e-38, %v5508
        %v5510 = vsel %vm5507, %v5509, %v5505
        %v5511 = vmul.f32 1.0, %v5510
        %v5512 = vrcp.pop %v5312
        %v5513 = vmul.f32 %v5312, %v5512
        %v5514 = vsub.f32 1.0, %v5513
        %v5515 = vmul.f32 %v5512, %v5514
        %v5516 = vadd.f32 %v5512, %v5515
        %vm5517 = vweird.f32 %v5312
        %vm5518 = vweird.f32 %v5512
        %vm5519 = vmor %vm5517, %vm5518
        %v5520 = vsel %vm5519, %v5512, %v5516
        %v5521 = vand.u32 2147483647, %v5312
        %vm5522 = vcmp.eq.f32.partialorder %v5521, 8.507059e+37
        %v5523 = vand.u32 %v5312, 2147483648
        %v5524 = vor.u32 1.1754944e-38, %v5523
        %v5525 = vsel %vm5522, %v5524, %v5520
        %v5526 = vmul.f32 1.0, %v5525
        %v5527 = vrcp.pop %v5313
        %v5528 = vmul.f32 %v5313, %v5527
        %v5529 = vsub.f32 1.0, %v5528
        %v5530 = vmul.f32 %v5527, %v5529
        %v5531 = vadd.f32 %v5527, %v5530
        %vm5532 = vweird.f32 %v5313
        %vm5533 = vweird.f32 %v5527
        %vm5534 = vmor %vm5532, %vm5533
        %v5535 = vsel %vm5534, %v5527, %v5531
        %v5536 = vand.u32 2147483647, %v5313
        %vm5537 = vcmp.eq.f32.partialorder %v5536, 8.507059e+37
        %v5538 = vand.u32 %v5313, 2147483648
        %v5539 = vor.u32 1.1754944e-38, %v5538
        %v5540 = vsel %vm5537, %v5539, %v5535
        %v5541 = vmul.f32 1.0, %v5540
        %v5542 = vrcp.pop %v5314
        %v5543 = vmul.f32 %v5314, %v5542
        %v5544 = vsub.f32 1.0, %v5543
        %v5545 = vmul.f32 %v5542, %v5544
        %v5546 = vadd.f32 %v5542, %v5545
        %vm5547 = vweird.f32 %v5314
        %vm5548 = vweird.f32 %v5542
        %vm5549 = vmor %vm5547, %vm5548
        %v5550 = vsel %vm5549, %v5542, %v5546
        %v5551 = vand.u32 2147483647, %v5314
        %vm5552 = vcmp.eq.f32.partialorder %v5551, 8.507059e+37
        %v5553 = vand.u32 %v5314, 2147483648
        %v5554 = vor.u32 1.1754944e-38, %v5553
        %v5555 = vsel %vm5552, %v5554, %v5550
        %v5556 = vmul.f32 1.0, %v5555
        %v5557 = vrcp.pop %v5315
        %v5558 = vmul.f32 %v5315, %v5557
        %v5559 = vsub.f32 1.0, %v5558
        %v5560 = vmul.f32 %v5557, %v5559
        %v5561 = vadd.f32 %v5557, %v5560
        %vm5562 = vweird.f32 %v5315
        %vm5563 = vweird.f32 %v5557
        %vm5564 = vmor %vm5562, %vm5563
        %v5565 = vsel %vm5564, %v5557, %v5561
        %v5566 = vand.u32 2147483647, %v5315
        %vm5567 = vcmp.eq.f32.partialorder %v5566, 8.507059e+37
        %v5568 = vand.u32 %v5315, 2147483648
        %v5569 = vor.u32 1.1754944e-38, %v5568
        %v5570 = vsel %vm5567, %v5569, %v5565
        %v5571 = vmul.f32 1.0, %v5570
        %v5572 = vrcp.pop %v5316
        %v5573 = vmul.f32 %v5316, %v5572
        %v5574 = vsub.f32 1.0, %v5573
        %v5575 = vmul.f32 %v5572, %v5574
        %v5576 = vadd.f32 %v5572, %v5575
        %vm5577 = vweird.f32 %v5316
        %vm5578 = vweird.f32 %v5572
        %vm5579 = vmor %vm5577, %vm5578
        %v5580 = vsel %vm5579, %v5572, %v5576
        %v5581 = vand.u32 2147483647, %v5316
        %vm5582 = vcmp.eq.f32.partialorder %v5581, 8.507059e+37
        %v5583 = vand.u32 %v5316, 2147483648
        %v5584 = vor.u32 1.1754944e-38, %v5583
        %v5585 = vsel %vm5582, %v5584, %v5580
        %v5586 = vmul.f32 1.0, %v5585
        %v5587 = vrcp.pop %v5317
        %v5588 = vmul.f32 %v5317, %v5587
        %v5589 = vsub.f32 1.0, %v5588
        %v5590 = vmul.f32 %v5587, %v5589
        %v5591 = vadd.f32 %v5587, %v5590
        %vm5592 = vweird.f32 %v5317
        %vm5593 = vweird.f32 %v5587
        %vm5594 = vmor %vm5592, %vm5593
        %v5595 = vsel %vm5594, %v5587, %v5591
        %v5596 = vand.u32 2147483647, %v5317
        %vm5597 = vcmp.eq.f32.partialorder %v5596, 8.507059e+37
        %v5598 = vand.u32 %v5317, 2147483648
        %v5599 = vor.u32 1.1754944e-38, %v5598
        %v5600 = vsel %vm5597, %v5599, %v5595
        %v5601 = vmul.f32 1.0, %v5600
        %v5602 = vrcp.pop %v5318
        %v5603 = vmul.f32 %v5318, %v5602
        %v5604 = vsub.f32 1.0, %v5603
        %v5605 = vmul.f32 %v5602, %v5604
        %v5606 = vadd.f32 %v5602, %v5605
        %vm5607 = vweird.f32 %v5318
        %vm5608 = vweird.f32 %v5602
        %vm5609 = vmor %vm5607, %vm5608
        %v5610 = vsel %vm5609, %v5602, %v5606
        %v5611 = vand.u32 2147483647, %v5318
        %vm5612 = vcmp.eq.f32.partialorder %v5611, 8.507059e+37
        %v5613 = vand.u32 %v5318, 2147483648
        %v5614 = vor.u32 1.1754944e-38, %v5613
        %v5615 = vsel %vm5612, %v5614, %v5610
        %v5616 = vmul.f32 1.0, %v5615
        %v5617 = vrcp.pop %v5319
        %v5618 = vmul.f32 %v5319, %v5617
        %v5619 = vsub.f32 1.0, %v5618
        %v5620 = vmul.f32 %v5617, %v5619
        %v5621 = vadd.f32 %v5617, %v5620
        %vm5622 = vweird.f32 %v5319
        %vm5623 = vweird.f32 %v5617
        %vm5624 = vmor %vm5622, %vm5623
        %v5625 = vsel %vm5624, %v5617, %v5621
        %v5626 = vand.u32 2147483647, %v5319
        %vm5627 = vcmp.eq.f32.partialorder %v5626, 8.507059e+37
        %v5628 = vand.u32 %v5319, 2147483648
        %v5629 = vor.u32 1.1754944e-38, %v5628
        %v5630 = vsel %vm5627, %v5629, %v5625
        %v5631 = vmul.f32 1.0, %v5630
        %v5632 = vrcp.pop %v5320
        %v5633 = vmul.f32 %v5320, %v5632
        %v5634 = vsub.f32 1.0, %v5633
        %v5635 = vmul.f32 %v5632, %v5634
        %v5636 = vadd.f32 %v5632, %v5635
        %vm5637 = vweird.f32 %v5320
        %vm5638 = vweird.f32 %v5632
        %vm5639 = vmor %vm5637, %vm5638
        %v5640 = vsel %vm5639, %v5632, %v5636
        %v5641 = vand.u32 2147483647, %v5320
        %vm5642 = vcmp.eq.f32.partialorder %v5641, 8.507059e+37
        %v5643 = vand.u32 %v5320, 2147483648
        %v5644 = vor.u32 1.1754944e-38, %v5643
        %v5645 = vsel %vm5642, %v5644, %v5640
        %v5646 = vmul.f32 1.0, %v5645
        %v5647 = vrcp.pop %v5321
        %v5648 = vmul.f32 %v5321, %v5647
        %v5649 = vsub.f32 1.0, %v5648
        %v5650 = vmul.f32 %v5647, %v5649
        %v5651 = vadd.f32 %v5647, %v5650
        %vm5652 = vweird.f32 %v5321
        %vm5653 = vweird.f32 %v5647
        %vm5654 = vmor %vm5652, %vm5653
        %v5655 = vsel %vm5654, %v5647, %v5651
        %v5656 = vand.u32 2147483647, %v5321
        %vm5657 = vcmp.eq.f32.partialorder %v5656, 8.507059e+37
        %v5658 = vand.u32 %v5321, 2147483648
        %v5659 = vor.u32 1.1754944e-38, %v5658
        %v5660 = vsel %vm5657, %v5659, %v5655
        %v5661 = vmul.f32 1.0, %v5660
        %v5662 = vrcp.pop %v5322
        %v5663 = vmul.f32 %v5322, %v5662
        %v5664 = vsub.f32 1.0, %v5663
        %v5665 = vmul.f32 %v5662, %v5664
        %v5666 = vadd.f32 %v5662, %v5665
        %vm5667 = vweird.f32 %v5322
        %vm5668 = vweird.f32 %v5662
        %vm5669 = vmor %vm5667, %vm5668
        %v5670 = vsel %vm5669, %v5662, %v5666
        %v5671 = vand.u32 2147483647, %v5322
        %vm5672 = vcmp.eq.f32.partialorder %v5671, 8.507059e+37
        %v5673 = vand.u32 %v5322, 2147483648
        %v5674 = vor.u32 1.1754944e-38, %v5673
        %v5675 = vsel %vm5672, %v5674, %v5670
        %v5676 = vmul.f32 1.0, %v5675
        %v5677 = vrcp.pop %v5323
        %v5678 = vmul.f32 %v5323, %v5677
        %v5679 = vsub.f32 1.0, %v5678
        %v5680 = vmul.f32 %v5677, %v5679
        %v5681 = vadd.f32 %v5677, %v5680
        %vm5682 = vweird.f32 %v5323
        %vm5683 = vweird.f32 %v5677
        %vm5684 = vmor %vm5682, %vm5683
        %v5685 = vsel %vm5684, %v5677, %v5681
        %v5686 = vand.u32 2147483647, %v5323
        %vm5687 = vcmp.eq.f32.partialorder %v5686, 8.507059e+37
        %v5688 = vand.u32 %v5323, 2147483648
        %v5689 = vor.u32 1.1754944e-38, %v5688
        %v5690 = vsel %vm5687, %v5689, %v5685
        %v5691 = vmul.f32 1.0, %v5690
        %v5692 = vrcp.pop %v5324
        %v5693 = vmul.f32 %v5324, %v5692
        %v5694 = vsub.f32 1.0, %v5693
        %v5695 = vmul.f32 %v5692, %v5694
        %v5696 = vadd.f32 %v5692, %v5695
        %vm5697 = vweird.f32 %v5324
        %vm5698 = vweird.f32 %v5692
        %vm5699 = vmor %vm5697, %vm5698
        %v5700 = vsel %vm5699, %v5692, %v5696
        %v5701 = vand.u32 2147483647, %v5324
        %vm5702 = vcmp.eq.f32.partialorder %v5701, 8.507059e+37
        %v5703 = vand.u32 %v5324, 2147483648
        %v5704 = vor.u32 1.1754944e-38, %v5703
        %v5705 = vsel %vm5702, %v5704, %v5700
        %v5706 = vmul.f32 1.0, %v5705
        %v5707 = vrcp.pop %v5325
        %v5708 = vmul.f32 %v5325, %v5707
        %v5709 = vsub.f32 1.0, %v5708
        %v5710 = vmul.f32 %v5707, %v5709
        %v5711 = vadd.f32 %v5707, %v5710
        %vm5712 = vweird.f32 %v5325
        %vm5713 = vweird.f32 %v5707
        %vm5714 = vmor %vm5712, %vm5713
        %v5715 = vsel %vm5714, %v5707, %v5711
        %v5716 = vand.u32 2147483647, %v5325
        %vm5717 = vcmp.eq.f32.partialorder %v5716, 8.507059e+37
        %v5718 = vand.u32 %v5325, 2147483648
        %v5719 = vor.u32 1.1754944e-38, %v5718
        %v5720 = vsel %vm5717, %v5719, %v5715
        %v5721 = vmul.f32 1.0, %v5720
        %v5722 = vrcp.pop %v5326
        %v5723 = vmul.f32 %v5326, %v5722
        %v5724 = vsub.f32 1.0, %v5723
        %v5725 = vmul.f32 %v5722, %v5724
        %v5726 = vadd.f32 %v5722, %v5725
        %vm5727 = vweird.f32 %v5326
        %vm5728 = vweird.f32 %v5722
        %vm5729 = vmor %vm5727, %vm5728
        %v5730 = vsel %vm5729, %v5722, %v5726
        %v5731 = vand.u32 2147483647, %v5326
        %vm5732 = vcmp.eq.f32.partialorder %v5731, 8.507059e+37
        %v5733 = vand.u32 %v5326, 2147483648
        %v5734 = vor.u32 1.1754944e-38, %v5733
        %v5735 = vsel %vm5732, %v5734, %v5730
        %v5736 = vmul.f32 1.0, %v5735
        %v5737 = vrcp.pop %v5327
        %v5738 = vmul.f32 %v5327, %v5737
        %v5739 = vsub.f32 1.0, %v5738
        %v5740 = vmul.f32 %v5737, %v5739
        %v5741 = vadd.f32 %v5737, %v5740
        %vm5742 = vweird.f32 %v5327
        %vm5743 = vweird.f32 %v5737
        %vm5744 = vmor %vm5742, %vm5743
        %v5745 = vsel %vm5744, %v5737, %v5741
        %v5746 = vand.u32 2147483647, %v5327
        %vm5747 = vcmp.eq.f32.partialorder %v5746, 8.507059e+37
        %v5748 = vand.u32 %v5327, 2147483648
        %v5749 = vor.u32 1.1754944e-38, %v5748
        %v5750 = vsel %vm5747, %v5749, %v5745
        %v5751 = vmul.f32 1.0, %v5750
        %v5752 = vrcp.pop %v5328
        %v5753 = vmul.f32 %v5328, %v5752
        %v5754 = vsub.f32 1.0, %v5753
        %v5755 = vmul.f32 %v5752, %v5754
        %v5756 = vadd.f32 %v5752, %v5755
        %vm5757 = vweird.f32 %v5328
        %vm5758 = vweird.f32 %v5752
        %vm5759 = vmor %vm5757, %vm5758
        %v5760 = vsel %vm5759, %v5752, %v5756
        %v5761 = vand.u32 2147483647, %v5328
        %vm5762 = vcmp.eq.f32.partialorder %v5761, 8.507059e+37
        %v5763 = vand.u32 %v5328, 2147483648
        %v5764 = vor.u32 1.1754944e-38, %v5763
        %v5765 = vsel %vm5762, %v5764, %v5760
        %v5766 = vmul.f32 1.0, %v5765
        %v5767 = vrcp.pop %v5329
        %v5768 = vmul.f32 %v5329, %v5767
        %v5769 = vsub.f32 1.0, %v5768
        %v5770 = vmul.f32 %v5767, %v5769
        %v5771 = vadd.f32 %v5767, %v5770
        %vm5772 = vweird.f32 %v5329
        %vm5773 = vweird.f32 %v5767
        %vm5774 = vmor %vm5772, %vm5773
        %v5775 = vsel %vm5774, %v5767, %v5771
        %v5776 = vand.u32 2147483647, %v5329
        %vm5777 = vcmp.eq.f32.partialorder %v5776, 8.507059e+37
        %v5778 = vand.u32 %v5329, 2147483648
        %v5779 = vor.u32 1.1754944e-38, %v5778
        %v5780 = vsel %vm5777, %v5779, %v5775
        %v5781 = vmul.f32 1.0, %v5780
        %v5782 = vrcp.pop %v5330
        %v5783 = vmul.f32 %v5330, %v5782
        %v5784 = vsub.f32 1.0, %v5783
        %v5785 = vmul.f32 %v5782, %v5784
        %v5786 = vadd.f32 %v5782, %v5785
        %vm5787 = vweird.f32 %v5330
        %vm5788 = vweird.f32 %v5782
        %vm5789 = vmor %vm5787, %vm5788
        %v5790 = vsel %vm5789, %v5782, %v5786
        %v5791 = vand.u32 2147483647, %v5330
        %vm5792 = vcmp.eq.f32.partialorder %v5791, 8.507059e+37
        %v5793 = vand.u32 %v5330, 2147483648
        %v5794 = vor.u32 1.1754944e-38, %v5793
        %v5795 = vsel %vm5792, %v5794, %v5790
        %v5796 = vmul.f32 1.0, %v5795
        %v5797 = vrcp.pop %v5331
        %v5798 = vmul.f32 %v5331, %v5797
        %v5799 = vsub.f32 1.0, %v5798
        %v5800 = vmul.f32 %v5797, %v5799
        %v5801 = vadd.f32 %v5797, %v5800
        %vm5802 = vweird.f32 %v5331
        %vm5803 = vweird.f32 %v5797
        %vm5804 = vmor %vm5802, %vm5803
        %v5805 = vsel %vm5804, %v5797, %v5801
        %v5806 = vand.u32 2147483647, %v5331
        %vm5807 = vcmp.eq.f32.partialorder %v5806, 8.507059e+37
        %v5808 = vand.u32 %v5331, 2147483648
        %v5809 = vor.u32 1.1754944e-38, %v5808
        %v5810 = vsel %vm5807, %v5809, %v5805
        %v5811 = vmul.f32 1.0, %v5810
        %5844 = vrot.lane.b32.xlu0 %v5346, 124
        %v5845 = vpop.permute.xlu0 %5844
        %5846 = vrot.lane.b32.xlu0 %v5361, 124
        %v5847 = vpop.permute.xlu0 %5846
        %5848 = vrot.lane.b32.xlu0 %v5376, 124
        %v5849 = vpop.permute.xlu0 %5848
        %5850 = vrot.lane.b32.xlu0 %v5391, 124
        %v5851 = vpop.permute.xlu0 %5850
        %5852 = vrot.lane.b32.xlu0 %v5406, 124
        %v5853 = vpop.permute.xlu0 %5852
        %5854 = vrot.lane.b32.xlu0 %v5421, 124
        %v5855 = vpop.permute.xlu0 %5854
        %5856 = vrot.lane.b32.xlu0 %v5436, 124
        %v5857 = vpop.permute.xlu0 %5856
        %5858 = vrot.lane.b32.xlu0 %v5451, 124
        %v5859 = vpop.permute.xlu0 %5858
        %5860 = vrot.lane.b32.xlu0 %v5466, 124
        %v5861 = vpop.permute.xlu0 %5860
        %5862 = vrot.lane.b32.xlu0 %v5481, 124
        %v5863 = vpop.permute.xlu0 %5862
        %5864 = vrot.lane.b32.xlu0 %v5496, 124
        %v5865 = vpop.permute.xlu0 %5864
        %5866 = vrot.lane.b32.xlu0 %v5511, 124
        %v5867 = vpop.permute.xlu0 %5866
        %5868 = vrot.lane.b32.xlu0 %v5526, 124
        %v5869 = vpop.permute.xlu0 %5868
        %5870 = vrot.lane.b32.xlu0 %v5541, 124
        %v5871 = vpop.permute.xlu0 %5870
        %5872 = vrot.lane.b32.xlu0 %v5556, 124
        %v5873 = vpop.permute.xlu0 %5872
        %5874 = vrot.lane.b32.xlu0 %v5571, 124
        %v5875 = vpop.permute.xlu0 %5874
        %5876 = vrot.lane.b32.xlu0 %v5586, 124
        %v5877 = vpop.permute.xlu0 %5876
        %5878 = vrot.lane.b32.xlu0 %v5601, 124
        %v5879 = vpop.permute.xlu0 %5878
        %5880 = vrot.lane.b32.xlu0 %v5616, 124
        %v5881 = vpop.permute.xlu0 %5880
        %5882 = vrot.lane.b32.xlu0 %v5631, 124
        %v5883 = vpop.permute.xlu0 %5882
        %5884 = vrot.lane.b32.xlu0 %v5646, 124
        %v5885 = vpop.permute.xlu0 %5884
        %5886 = vrot.lane.b32.xlu0 %v5661, 124
        %v5887 = vpop.permute.xlu0 %5886
        %5888 = vrot.lane.b32.xlu0 %v5676, 124
        %v5889 = vpop.permute.xlu0 %5888
        %5890 = vrot.lane.b32.xlu0 %v5691, 124
        %v5891 = vpop.permute.xlu0 %5890
        %5892 = vrot.lane.b32.xlu0 %v5706, 124
        %v5893 = vpop.permute.xlu0 %5892
        %5894 = vrot.lane.b32.xlu0 %v5721, 124
        %v5895 = vpop.permute.xlu0 %5894
        %5896 = vrot.lane.b32.xlu0 %v5736, 124
        %v5897 = vpop.permute.xlu0 %5896
        %5898 = vrot.lane.b32.xlu0 %v5751, 124
        %v5899 = vpop.permute.xlu0 %5898
        %5900 = vrot.lane.b32.xlu0 %v5766, 124
        %v5901 = vpop.permute.xlu0 %5900
        %5902 = vrot.lane.b32.xlu0 %v5781, 124
        %v5903 = vpop.permute.xlu0 %5902
        %5904 = vrot.lane.b32.xlu0 %v5796, 124
        %v5905 = vpop.permute.xlu0 %5904
        %5906 = vrot.lane.b32.xlu0 %v5811, 124
        %v5907 = vpop.permute.xlu0 %5906
        %v5940 = vmul.f32 %v5172, %v5845
        %v5941 = vmul.f32 %v5173, %v5847
        %v5942 = vmul.f32 %v5174, %v5849
        %v5943 = vmul.f32 %v5175, %v5851
        %v5944 = vmul.f32 %v5176, %v5853
        %v5945 = vmul.f32 %v5177, %v5855
        %v5946 = vmul.f32 %v5178, %v5857
        %v5947 = vmul.f32 %v5179, %v5859
        %v5948 = vmul.f32 %v5180, %v5861
        %v5949 = vmul.f32 %v5181, %v5863
        %v5950 = vmul.f32 %v5182, %v5865
        %v5951 = vmul.f32 %v5183, %v5867
        %v5952 = vmul.f32 %v5184, %v5869
        %v5953 = vmul.f32 %v5185, %v5871
        %v5954 = vmul.f32 %v5186, %v5873
        %v5955 = vmul.f32 %v5187, %v5875
        %v5956 = vmul.f32 %v5188, %v5877
        %v5957 = vmul.f32 %v5189, %v5879
        %v5958 = vmul.f32 %v5190, %v5881
        %v5959 = vmul.f32 %v5191, %v5883
        %v5960 = vmul.f32 %v5192, %v5885
        %v5961 = vmul.f32 %v5193, %v5887
        %v5962 = vmul.f32 %v5194, %v5889
        %v5963 = vmul.f32 %v5195, %v5891
        %v5964 = vmul.f32 %v5196, %v5893
        %v5965 = vmul.f32 %v5197, %v5895
        %v5966 = vmul.f32 %v5198, %v5897
        %v5967 = vmul.f32 %v5199, %v5899
        %v5968 = vmul.f32 %v5200, %v5901
        %v5969 = vmul.f32 %v5201, %v5903
        %v5970 = vmul.f32 %v5202, %v5905
        %v5971 = vmul.f32 %v5203, %v5907
        %v5972 = vadd.f32 %v5940, %v300
        %v5973 = vadd.f32 %v5941, %v301
        %v5974 = vadd.f32 %v5942, %v302
        %v5975 = vadd.f32 %v5943, %v303
        %v5976 = vadd.f32 %v5944, %v304
        %v5977 = vadd.f32 %v5945, %v305
        %v5978 = vadd.f32 %v5946, %v306
        %v5979 = vadd.f32 %v5947, %v307
        %v5980 = vadd.f32 %v5948, %v308
        %v5981 = vadd.f32 %v5949, %v309
        %v5982 = vadd.f32 %v5950, %v310
        %v5983 = vadd.f32 %v5951, %v311
        %v5984 = vadd.f32 %v5952, %v312
        %v5985 = vadd.f32 %v5953, %v313
        %v5986 = vadd.f32 %v5954, %v314
        %v5987 = vadd.f32 %v5955, %v315
        %v5988 = vadd.f32 %v5956, %v332
        %v5989 = vadd.f32 %v5957, %v333
        %v5990 = vadd.f32 %v5958, %v334
        %v5991 = vadd.f32 %v5959, %v335
        %v5992 = vadd.f32 %v5960, %v336
        %v5993 = vadd.f32 %v5961, %v337
        %v5994 = vadd.f32 %v5962, %v338
        %v5995 = vadd.f32 %v5963, %v339
        %v5996 = vadd.f32 %v5964, %v340
        %v5997 = vadd.f32 %v5965, %v341
        %v5998 = vadd.f32 %v5966, %v342
        %v5999 = vadd.f32 %v5967, %v343
        %v6000 = vadd.f32 %v5968, %v344
        %v6001 = vadd.f32 %v5969, %v345
        %v6002 = vadd.f32 %v5970, %v346
        %v6003 = vadd.f32 %v5971, %v347
        %6004 = vxpose.xlu0.b32.start [1/16] %v5972, 128
        %6005 = vxpose.xlu0.b32.cont [2/16] %v5973, 128
        %6006 = vxpose.xlu0.b32.cont [3/16] %v5974, 128
        %6007 = vxpose.xlu0.b32.cont [4/16] %v5975, 128
        %6008 = vxpose.xlu0.b32.cont [5/16] %v5976, 128
        %6009 = vxpose.xlu0.b32.cont [6/16] %v5977, 128
        %6010 = vxpose.xlu0.b32.cont [7/16] %v5978, 128
        %6011 = vxpose.xlu0.b32.cont [8/16] %v5979, 128
        %6012 = vxpose.xlu0.b32.cont [9/16] %v5980, 128
        %6013 = vxpose.xlu0.b32.cont [10/16] %v5981, 128
        %6014 = vxpose.xlu0.b32.cont [11/16] %v5982, 128
        %6015 = vxpose.xlu0.b32.cont [12/16] %v5983, 128
        %6016 = vxpose.xlu0.b32.cont [13/16] %v5984, 128
        %6017 = vxpose.xlu0.b32.cont [14/16] %v5985, 128
        %6018 = vxpose.xlu0.b32.cont [15/16] %v5986, 128
        %6019 = vxpose.xlu0.b32.end [16/16] %v5987, 128
        %v6020 = vpop.trf.xlu0
        %v6021 = vpop.trf.xlu0
        %v6022 = vpop.trf.xlu0
        %v6023 = vpop.trf.xlu0
        %v6024 = vpop.trf.xlu0
        %v6025 = vpop.trf.xlu0
        %v6026 = vpop.trf.xlu0
        %v6027 = vpop.trf.xlu0
        %v6028 = vpop.trf.xlu0
        %v6029 = vpop.trf.xlu0
        %v6030 = vpop.trf.xlu0
        %v6031 = vpop.trf.xlu0
        %v6032 = vpop.trf.xlu0
        %v6033 = vpop.trf.xlu0
        %v6034 = vpop.trf.xlu0
        %v6035 = vpop.trf.xlu0
        %6036 = vxpose.xlu0.b32.start [1/16] %v5988, 128
        %6037 = vxpose.xlu0.b32.cont [2/16] %v5989, 128
        %6038 = vxpose.xlu0.b32.cont [3/16] %v5990, 128
        %6039 = vxpose.xlu0.b32.cont [4/16] %v5991, 128
        %6040 = vxpose.xlu0.b32.cont [5/16] %v5992, 128
        %6041 = vxpose.xlu0.b32.cont [6/16] %v5993, 128
        %6042 = vxpose.xlu0.b32.cont [7/16] %v5994, 128
        %6043 = vxpose.xlu0.b32.cont [8/16] %v5995, 128
        %6044 = vxpose.xlu0.b32.cont [9/16] %v5996, 128
        %6045 = vxpose.xlu0.b32.cont [10/16] %v5997, 128
        %6046 = vxpose.xlu0.b32.cont [11/16] %v5998, 128
        %6047 = vxpose.xlu0.b32.cont [12/16] %v5999, 128
        %6048 = vxpose.xlu0.b32.cont [13/16] %v6000, 128
        %6049 = vxpose.xlu0.b32.cont [14/16] %v6001, 128
        %6050 = vxpose.xlu0.b32.cont [15/16] %v6002, 128
        %6051 = vxpose.xlu0.b32.end [16/16] %v6003, 128
        %v6052 = vpop.trf.xlu0
        %v6053 = vpop.trf.xlu0
        %v6054 = vpop.trf.xlu0
        %v6055 = vpop.trf.xlu0
        %v6056 = vpop.trf.xlu0
        %v6057 = vpop.trf.xlu0
        %v6058 = vpop.trf.xlu0
        %v6059 = vpop.trf.xlu0
        %v6060 = vpop.trf.xlu0
        %v6061 = vpop.trf.xlu0
        %v6062 = vpop.trf.xlu0
        %v6063 = vpop.trf.xlu0
        %v6064 = vpop.trf.xlu0
        %v6065 = vpop.trf.xlu0
        %v6066 = vpop.trf.xlu0
        %v6067 = vpop.trf.xlu0
        %v6070 = vrot.slane %v6052, 4
        %v6071 = vsel %vm2569, %v6020, %v6070
        %6073 = vst [vmem:[%s271] sm:$0xff] %v6071
        %s6074 = sand.u32 %s181, 1
        %s6075 = scalar_lea.sflag [#allocation5], %s6074
        %s6076 = sand.u32 %s181, 1
        %s6077 = smul.addr %s6076, 8
        %s6078 = scalar_lea.vmem [#allocation4], %s6077
        // Predicated region
        $region49: #{tpu_custom_call.1} parent=47 // pred_check
          %p6079 = pneg %p191
        $region50: #{tpu_custom_call.1} parent=47 // pred_check_branch
          %6081 = sbr.rel (%p6079) target = $region52
        $region51: #{tpu_custom_call.1} parent=47 // pred_region
          %6083 = vsyncadd %s6075, 0
          %s6084 = smul.addr %s21, 2
          %s6085 = smul.addr %s6084, 4
          %s6086 = scalar_lea.hbm %s7, %s6085
          %s6088 = sshll.u32 %s6078, 4
          %s6089 = int_to_ptr.vmem [resolvable:$true] %s6088
          %s6090 = sshll.u32 %s6086, 4
          %s6091 = int_to_ptr.hbm [resolvable:$true] %s6090
          %6093 = dma.vmem_to_hbm [thread:$0]  %s6089, 128, %s6091, %s6075
        $region52: #{tpu_custom_call.1} parent=47 // pred_fallthru
          _
      $region48: #{tpu_custom_call.1} parent=5 // pred_fallthru
        _
      %p6094 = scmp.le.s32.totalorder 2, %s16
      // Predicated region
      $region53: #{tpu_custom_call.1} parent=5 // pred_check
        %p6095 = pneg %p6094
      $region54: #{tpu_custom_call.1} parent=5 // pred_check_branch
        %6097 = sbr.rel (%p6095) target = $region56
      $region55: #{tpu_custom_call.1} parent=5 // pred_region
        %s6098 = ssub.s32 %s16, 2
        // Predicated region
        $region57: #{tpu_custom_call.1} parent=55 // pred_check
          %p6099 = pneg %p197
        $region58: #{tpu_custom_call.1} parent=55 // pred_check_branch
          %6101 = sbr.rel (%p6099) target = $region60
        $region59: #{tpu_custom_call.1} parent=55 // pred_region
          %s6102 = sand.u32 %s182, 1
          %s6103 = scalar_lea.sflag [#allocation5], %s6102
          %s6104 = sand.u32 %s182, 1
          %s6105 = smul.addr %s6104, 8
          %s6106 = scalar_lea.vmem [#allocation4], %s6105
          %6108 = dma.done %s6103, 128
        $region60: #{tpu_custom_call.1} parent=55 // pred_fallthru
          _
      $region56: #{tpu_custom_call.1} parent=5 // pred_fallthru
        _
    $region6: #{tpu_custom_call.1} parent=1 // loop_footer
      %s20 = sadd.s32 1, %s16
    $region7: #{tpu_custom_call.1} parent=1 // loop_footer_branch
      %15 = sbr.rel target = $region3
    $region8: #{tpu_custom_call.1} parent=1 // loop_exit
      _
    %6109 = vsyncpa [#allocation5], 1
    %s6110 = scalar_lea.sflag [#allocation5], 1
    %6111 = vsyncpa %s6110, 1

</llo_original>
